<compile_context>
chip_gen: v5e
topology: v5e:2x2
jax: 0.10.0
libtpu: 0.0.40
codegen_flags: <defaults>
</compile_context>

<pallas_src>
import numpy as np
import jax
import jax.numpy as jnp
from jax.experimental import pallas as pl
from jax.experimental.pallas import tpu as pltpu


def _down_kernel(x_ref, m_ref, w1_ref, t1_ref, w2_ref, t2_ref, out_ref):
    bb, H, W, Cin = x_ref.shape
    Cout = w1_ref.shape[2]
    HW = H * W
    M = bb * HW

    # f32 working copy of the activations (robust sublane rolls); MXU operands
    # are cast to bf16 per tap, right before each dot.
    x2 = x_ref[...].astype(jnp.float32).reshape(M, Cin)

    def masked_tap(v2, t, dy, dx):
        # v2: (M, C).  Returns v2 shifted so that row (b, h, w) holds
        # v2[b, h+dy, w+dx], with out-of-image positions zeroed (== zero pad).
        s = dy * W + dx
        tap = v2 if s == 0 else pltpu.roll(v2, (-s) % M, axis=0)
        if dy == 0 and dx == 0:
            return tap                      # centre tap needs no mask
        m = m_ref[t]                        # (HW, 1) {0,1} boundary mask
        if bb == 1:
            return tap * m
        c = tap.shape[1]
        return (tap.reshape(bb, HW, c) * m[None]).reshape(M, c)

    def conv3x3(v2, w_ref):
        # 3x3 "same" conv as 9 shifted (M, C) @ (C, Cout) MXU matmuls,
        # accumulated in f32.  Tap order t = ky*3 + kx matches the wrapper's
        # (ky, kx, ci, co) weight reshape.
        acc = jnp.zeros((M, Cout), jnp.float32)
        t = 0
        for dy in (-1, 0, 1):
            for dx in (-1, 0, 1):
                tap = masked_tap(v2, t, dy, dx).astype(jnp.bfloat16)
                acc = acc + jnp.dot(tap, w_ref[t],
                                    preferred_element_type=jnp.float32)
                t += 1
        return acc

    # conv1 (BN scale pre-folded into w1) + per-channel shift + ReLU.
    # Dropout(0.1) is the identity at inference.
    y1 = jnp.maximum(conv3x3(x2, w1_ref) + t1_ref[...], 0.0)
    # conv2 + per-channel shift + ReLU.
    y2 = jnp.maximum(conv3x3(y1, w2_ref) + t2_ref[...], 0.0)

    # MaxPool2d(2): H-pooling via a free leading-dim split, W-pooling via one
    # small reshape; result written as a single lane-dense full-block store.
    H2, W2 = H // 2, W // 2
    ph = jnp.max(y2.reshape(bb, H2, 2, W, Cout), axis=2)
    pw = jnp.max(ph.reshape(bb, H2, W2, 2, Cout), axis=3)
    out_ref[...] = pw.reshape(bb, H2, W2 * Cout).astype(out_ref.dtype)


def _boundary_masks(H, W):
    """(9, H*W, 1) {0,1} masks; tap t = ky*3+kx is valid where the shifted
    pixel (h+ky-1, w+kx-1) lies inside the image (realizes the conv's zero
    padding without any pad/concat copies in the kernel)."""
    masks = np.zeros((9, H, W), np.float32)
    t = 0
    for dy in (-1, 0, 1):
        for dx in (-1, 0, 1):
            masks[t, max(0, -dy):H - max(0, dy), max(0, -dx):W - max(0, dx)] = 1.0
            t += 1
    return masks.reshape(9, H * W, 1)


def down_pallas(x_nchw, p, batch_block=1):
    N, Cin, H, W = x_nchw.shape
    Cout = p['w1'].shape[0]
    eps = 1e-5
    bb = batch_block
    assert N % bb == 0 and H % 2 == 0 and W % 2 == 0

    # NCHW -> NHWC, bf16 activations in HBM (halves the input DMA traffic).
    x = jnp.transpose(x_nchw, (0, 2, 3, 1)).astype(jnp.bfloat16)

    # Fold BatchNorm (running stats) + conv bias: the scale goes into the
    # weights, only a per-channel shift remains in-kernel.
    s1 = p['g1'] / jnp.sqrt(p['v1'] + eps)
    t1 = (p['be1'] + (p['b1'] - p['m1']) * s1).reshape(1, Cout).astype(jnp.float32)
    s2 = p['g2'] / jnp.sqrt(p['v2'] + eps)
    t2 = (p['be2'] + (p['b2'] - p['m2']) * s2).reshape(1, Cout).astype(jnp.float32)

    # OIHW -> (tap = ky*3+kx, ci, co), BN scale folded in, bf16 for the MXU.
    w1 = (jnp.transpose(p['w1'], (2, 3, 1, 0)) * s1[None, None, None, :]) \
        .reshape(9, Cin, Cout).astype(jnp.bfloat16)
    w2 = (jnp.transpose(p['w2'], (2, 3, 1, 0)) * s2[None, None, None, :]) \
        .reshape(9, Cout, Cout).astype(jnp.bfloat16)

    masks = jnp.asarray(_boundary_masks(H, W))

    # TODO(synk): for large images add an H-tile grid axis with a 1-row halo
    # (manual DMA) and tile Cout to 128/256 on a grid axis so the matmul K/N
    # dims fill the MXU; at this toy size whole images fit comfortably in VMEM.
    H2, W2 = H // 2, W // 2
    out_flat = pl.pallas_call(
        _down_kernel,
        out_shape=jax.ShapeDtypeStruct((N, H2, W2 * Cout), jnp.float32),
        grid_spec=pltpu.PrefetchScalarGridSpec(
            num_scalar_prefetch=0,
            grid=(N // bb,),
            in_specs=[
                pl.BlockSpec((bb, H, W, Cin), lambda n: (n, 0, 0, 0)),
                pl.BlockSpec((9, H * W, 1), lambda n: (0, 0, 0)),
                pl.BlockSpec((9, Cin, Cout), lambda n: (0, 0, 0)),
                pl.BlockSpec((1, Cout), lambda n: (0, 0)),
                pl.BlockSpec((9, Cout, Cout), lambda n: (0, 0, 0)),
                pl.BlockSpec((1, Cout), lambda n: (0, 0)),
            ],
            out_specs=pl.BlockSpec((bb, H2, W2 * Cout), lambda n: (n, 0, 0)),
        ),
        compiler_params=pltpu.CompilerParams(
            dimension_semantics=("parallel",),
            vmem_limit_bytes=32 * 1024 * 1024,
        ),
    )(x, masks, w1, t1, w2, t2)

    out_nhwc = out_flat.reshape(N, H2, W2, Cout)    # free: row-major order matches
    return jnp.transpose(out_nhwc, (0, 3, 1, 2))    # NCHW to match the module API
    # TODO(synk): in a fused NHWC pipeline, return out_nhwc directly (ideally in
    # bf16) and skip this transpose; it re-reads/re-writes the output in HBM.
    # TODO(synk): training-mode BatchNorm (batch statistics) and stochastic
    # Dropout(0.1) are not implemented; this kernel uses eval/inference semantics.


def down_reference(x_nchw, p):
    """Pure-JAX f32 reference (inference semantics) for validation."""
    eps = 1e-5

    def conv(x, w, b):
        y = jax.lax.conv_general_dilated(
            x, w, window_strides=(1, 1), padding=((1, 1), (1, 1)),
            dimension_numbers=('NCHW', 'OIHW', 'NCHW'))
        return y + b[None, :, None, None]

    def bn(x, g, be, m, v):
        return ((x - m[None, :, None, None])
                / jnp.sqrt(v[None, :, None, None] + eps)
                * g[None, :, None, None] + be[None, :, None, None])

    y = jnp.maximum(bn(conv(x_nchw, p['w1'], p['b1']),
                       p['g1'], p['be1'], p['m1'], p['v1']), 0.0)
    y = jnp.maximum(bn(conv(y, p['w2'], p['b2']),
                       p['g2'], p['be2'], p['m2'], p['v2']), 0.0)
    y = jax.lax.reduce_window(y, -jnp.inf, jax.lax.max,
                              (1, 1, 2, 2), (1, 1, 2, 2), 'VALID')
    return y


if __name__ == "__main__":
    N, Cin, Cout, H, W = 2, 4, 8, 16, 16
    key = jax.random.PRNGKey(0)
    ks = jax.random.split(key, 13)

    params = dict(
        w1=0.1 * jax.random.normal(ks[0], (Cout, Cin, 3, 3), jnp.float32),
        b1=0.1 * jax.random.normal(ks[1], (Cout,), jnp.float32),
        g1=1.0 + 0.1 * jax.random.normal(ks[2], (Cout,), jnp.float32),
        be1=0.1 * jax.random.normal(ks[3], (Cout,), jnp.float32),
        m1=0.1 * jax.random.normal(ks[4], (Cout,), jnp.float32),
        v1=jax.random.uniform(ks[5], (Cout,), jnp.float32, 0.5, 1.5),
        w2=0.1 * jax.random.normal(ks[6], (Cout, Cout, 3, 3), jnp.float32),
        b2=0.1 * jax.random.normal(ks[7], (Cout,), jnp.float32),
        g2=1.0 + 0.1 * jax.random.normal(ks[8], (Cout,), jnp.float32),
        be2=0.1 * jax.random.normal(ks[9], (Cout,), jnp.float32),
        m2=0.1 * jax.random.normal(ks[10], (Cout,), jnp.float32),
        v2=jax.random.uniform(ks[11], (Cout,), jnp.float32, 0.5, 1.5),
    )
    x = jax.random.normal(ks[12], (N, Cin, H, W), jnp.float32)

    out = down_pallas(x, params)
    out = jax.block_until_ready(out)

    ref = down_reference(x, params)
    assert out.shape == (N, Cout, H // 2, W // 2), out.shape
    max_err = float(jnp.max(jnp.abs(out - ref)))
    # bf16 matmul inputs (f32 accumulation) -> relaxed tolerance vs f32 reference
    assert jnp.allclose(out, ref, atol=2e-2, rtol=2e-2), max_err

    print("KERNEL_OK")
</pallas_src>

<mosaic_0001>
module attributes {stable_mosaic.version = 11 : i64} {
  func.func @_down_kernel(%arg0: i32, %arg1: memref<1x16x16x4xbf16, #tpu.memory_space<vmem>>, %arg2: memref<9x256x1xf32, #tpu.memory_space<vmem>>, %arg3: memref<9x4x8xbf16, #tpu.memory_space<vmem>>, %arg4: memref<1x8xf32, #tpu.memory_space<vmem>>, %arg5: memref<9x8x8xbf16, #tpu.memory_space<vmem>>, %arg6: memref<1x8xf32, #tpu.memory_space<vmem>>, %arg7: memref<1x8x64xf32, #tpu.memory_space<vmem>>) attributes {dimension_semantics = [#tpu.dimension_semantics<parallel>], iteration_bounds = array<i64: 2>, scalar_prefetch = 0 : i64, scratch_operands = 0 : i64, tpu.core_type = #tpu.core_type<tc>, window_params = [{transform_indices = @transform_0, window_bounds = array<i64: 1, 16, 16, 4>}, {pipeline_mode = #tpu.pipeline_mode<synchronous>, transform_indices = @transform_1, window_bounds = array<i64: 9, 256, 1>}, {pipeline_mode = #tpu.pipeline_mode<synchronous>, transform_indices = @transform_2, window_bounds = array<i64: 9, 4, 8>}, {pipeline_mode = #tpu.pipeline_mode<synchronous>, transform_indices = @transform_3, window_bounds = array<i64: 1, 8>}, {pipeline_mode = #tpu.pipeline_mode<synchronous>, transform_indices = @transform_4, window_bounds = array<i64: 9, 8, 8>}, {pipeline_mode = #tpu.pipeline_mode<synchronous>, transform_indices = @transform_5, window_bounds = array<i64: 1, 8>}, {transform_indices = @transform_6, window_bounds = array<i64: 1, 8, 64>}]} {
    %c0 = arith.constant 0 : index
    %c0_0 = arith.constant 0 : index
    %c0_1 = arith.constant 0 : index
    %c0_2 = arith.constant 0 : index
    %0 = vector.load %arg1[%c0, %c0_0, %c0_1, %c0_2] : memref<1x16x16x4xbf16, #tpu.memory_space<vmem>>, vector<1x16x16x4xbf16>
    %1 = arith.extf %0 : vector<1x16x16x4xbf16> to vector<1x16x16x4xf32>
    %2 = vector.shape_cast %1 : vector<1x16x16x4xf32> to vector<256x4xf32>
    %cst = arith.constant 0.000000e+00 : f32
    %3 = vector.broadcast %cst : f32 to vector<256x8xf32>
    %c17_i32 = arith.constant 17 : i32
    %4 = tpu.dynamic_rotate %2 by %c17_i32 dim 0 : vector<256x4xf32>, i32 -> vector<256x4xf32>
    %c0_3 = arith.constant 0 : index
    %c0_4 = arith.constant 0 : index
    %c0_5 = arith.constant 0 : index
    %5 = vector.load %arg2[%c0_3, %c0_4, %c0_5] : memref<9x256x1xf32, #tpu.memory_space<vmem>>, vector<1x256x1xf32>
    %6 = vector.shape_cast %5 : vector<1x256x1xf32> to vector<256x1xf32>
    %7 = vector.broadcast %6 : vector<256x1xf32> to vector<256x4xf32>
    %8 = arith.mulf %4, %7 : vector<256x4xf32>
    %9 = arith.truncf %8 : vector<256x4xf32> to vector<256x4xbf16>
    %c0_6 = arith.constant 0 : index
    %c0_7 = arith.constant 0 : index
    %c0_8 = arith.constant 0 : index
    %10 = vector.load %arg3[%c0_6, %c0_7, %c0_8] : memref<9x4x8xbf16, #tpu.memory_space<vmem>>, vector<1x4x8xbf16>
    %11 = vector.shape_cast %10 : vector<1x4x8xbf16> to vector<4x8xbf16>
    %cst_9 = arith.constant dense<0.000000e+00> : vector<256x8xf32>
    %12 = tpu.matmul %9, %11, %cst_9 {dimension_numbers = #tpu.dot_dimension_numbers<[1], [0], [0], [1], [0, 0, 1, 1], [], []>} : vector<256x4xbf16>, vector<4x8xbf16>, vector<256x8xf32> -> vector<256x8xf32>
    %13 = arith.addf %3, %12 : vector<256x8xf32>
    %c16_i32 = arith.constant 16 : i32
    %14 = tpu.dynamic_rotate %2 by %c16_i32 dim 0 : vector<256x4xf32>, i32 -> vector<256x4xf32>
    %c1 = arith.constant 1 : index
    %c0_10 = arith.constant 0 : index
    %c0_11 = arith.constant 0 : index
    %15 = vector.load %arg2[%c1, %c0_10, %c0_11] : memref<9x256x1xf32, #tpu.memory_space<vmem>>, vector<1x256x1xf32>
    %16 = vector.shape_cast %15 : vector<1x256x1xf32> to vector<256x1xf32>
    %17 = vector.broadcast %16 : vector<256x1xf32> to vector<256x4xf32>
    %18 = arith.mulf %14, %17 : vector<256x4xf32>
    %19 = arith.truncf %18 : vector<256x4xf32> to vector<256x4xbf16>
    %c1_12 = arith.constant 1 : index
    %c0_13 = arith.constant 0 : index
    %c0_14 = arith.constant 0 : index
    %20 = vector.load %arg3[%c1_12, %c0_13, %c0_14] : memref<9x4x8xbf16, #tpu.memory_space<vmem>>, vector<1x4x8xbf16>
    %21 = vector.shape_cast %20 : vector<1x4x8xbf16> to vector<4x8xbf16>
    %cst_15 = arith.constant dense<0.000000e+00> : vector<256x8xf32>
    %22 = tpu.matmul %19, %21, %cst_15 {dimension_numbers = #tpu.dot_dimension_numbers<[1], [0], [0], [1], [0, 0, 1, 1], [], []>} : vector<256x4xbf16>, vector<4x8xbf16>, vector<256x8xf32> -> vector<256x8xf32>
    %23 = arith.addf %13, %22 : vector<256x8xf32>
    %c15_i32 = arith.constant 15 : i32
    %24 = tpu.dynamic_rotate %2 by %c15_i32 dim 0 : vector<256x4xf32>, i32 -> vector<256x4xf32>
    %c2 = arith.constant 2 : index
    %c0_16 = arith.constant 0 : index
    %c0_17 = arith.constant 0 : index
    %25 = vector.load %arg2[%c2, %c0_16, %c0_17] : memref<9x256x1xf32, #tpu.memory_space<vmem>>, vector<1x256x1xf32>
    %26 = vector.shape_cast %25 : vector<1x256x1xf32> to vector<256x1xf32>
    %27 = vector.broadcast %26 : vector<256x1xf32> to vector<256x4xf32>
    %28 = arith.mulf %24, %27 : vector<256x4xf32>
    %29 = arith.truncf %28 : vector<256x4xf32> to vector<256x4xbf16>
    %c2_18 = arith.constant 2 : index
    %c0_19 = arith.constant 0 : index
    %c0_20 = arith.constant 0 : index
    %30 = vector.load %arg3[%c2_18, %c0_19, %c0_20] : memref<9x4x8xbf16, #tpu.memory_space<vmem>>, vector<1x4x8xbf16>
    %31 = vector.shape_cast %30 : vector<1x4x8xbf16> to vector<4x8xbf16>
    %cst_21 = arith.constant dense<0.000000e+00> : vector<256x8xf32>
    %32 = tpu.matmul %29, %31, %cst_21 {dimension_numbers = #tpu.dot_dimension_numbers<[1], [0], [0], [1], [0, 0, 1, 1], [], []>} : vector<256x4xbf16>, vector<4x8xbf16>, vector<256x8xf32> -> vector<256x8xf32>
    %33 = arith.addf %23, %32 : vector<256x8xf32>
    %c1_i32 = arith.constant 1 : i32
    %34 = tpu.dynamic_rotate %2 by %c1_i32 dim 0 : vector<256x4xf32>, i32 -> vector<256x4xf32>
    %c3 = arith.constant 3 : index
    %c0_22 = arith.constant 0 : index
    %c0_23 = arith.constant 0 : index
    %35 = vector.load %arg2[%c3, %c0_22, %c0_23] : memref<9x256x1xf32, #tpu.memory_space<vmem>>, vector<1x256x1xf32>
    %36 = vector.shape_cast %35 : vector<1x256x1xf32> to vector<256x1xf32>
    %37 = vector.broadcast %36 : vector<256x1xf32> to vector<256x4xf32>
    %38 = arith.mulf %34, %37 : vector<256x4xf32>
    %39 = arith.truncf %38 : vector<256x4xf32> to vector<256x4xbf16>
    %c3_24 = arith.constant 3 : index
    %c0_25 = arith.constant 0 : index
    %c0_26 = arith.constant 0 : index
    %40 = vector.load %arg3[%c3_24, %c0_25, %c0_26] : memref<9x4x8xbf16, #tpu.memory_space<vmem>>, vector<1x4x8xbf16>
    %41 = vector.shape_cast %40 : vector<1x4x8xbf16> to vector<4x8xbf16>
    %cst_27 = arith.constant dense<0.000000e+00> : vector<256x8xf32>
    %42 = tpu.matmul %39, %41, %cst_27 {dimension_numbers = #tpu.dot_dimension_numbers<[1], [0], [0], [1], [0, 0, 1, 1], [], []>} : vector<256x4xbf16>, vector<4x8xbf16>, vector<256x8xf32> -> vector<256x8xf32>
    %43 = arith.addf %33, %42 : vector<256x8xf32>
    %44 = arith.truncf %2 : vector<256x4xf32> to vector<256x4xbf16>
    %c4 = arith.constant 4 : index
    %c0_28 = arith.constant 0 : index
    %c0_29 = arith.constant 0 : index
    %45 = vector.load %arg3[%c4, %c0_28, %c0_29] : memref<9x4x8xbf16, #tpu.memory_space<vmem>>, vector<1x4x8xbf16>
    %46 = vector.shape_cast %45 : vector<1x4x8xbf16> to vector<4x8xbf16>
    %cst_30 = arith.constant dense<0.000000e+00> : vector<256x8xf32>
    %47 = tpu.matmul %44, %46, %cst_30 {dimension_numbers = #tpu.dot_dimension_numbers<[1], [0], [0], [1], [0, 0, 1, 1], [], []>} : vector<256x4xbf16>, vector<4x8xbf16>, vector<256x8xf32> -> vector<256x8xf32>
    %48 = arith.addf %43, %47 : vector<256x8xf32>
    %c255_i32 = arith.constant 255 : i32
    %49 = tpu.dynamic_rotate %2 by %c255_i32 dim 0 : vector<256x4xf32>, i32 -> vector<256x4xf32>
    %c5 = arith.constant 5 : index
    %c0_31 = arith.constant 0 : index
    %c0_32 = arith.constant 0 : index
    %50 = vector.load %arg2[%c5, %c0_31, %c0_32] : memref<9x256x1xf32, #tpu.memory_space<vmem>>, vector<1x256x1xf32>
    %51 = vector.shape_cast %50 : vector<1x256x1xf32> to vector<256x1xf32>
    %52 = vector.broadcast %51 : vector<256x1xf32> to vector<256x4xf32>
    %53 = arith.mulf %49, %52 : vector<256x4xf32>
    %54 = arith.truncf %53 : vector<256x4xf32> to vector<256x4xbf16>
    %c5_33 = arith.constant 5 : index
    %c0_34 = arith.constant 0 : index
    %c0_35 = arith.constant 0 : index
    %55 = vector.load %arg3[%c5_33, %c0_34, %c0_35] : memref<9x4x8xbf16, #tpu.memory_space<vmem>>, vector<1x4x8xbf16>
    %56 = vector.shape_cast %55 : vector<1x4x8xbf16> to vector<4x8xbf16>
    %cst_36 = arith.constant dense<0.000000e+00> : vector<256x8xf32>
    %57 = tpu.matmul %54, %56, %cst_36 {dimension_numbers = #tpu.dot_dimension_numbers<[1], [0], [0], [1], [0, 0, 1, 1], [], []>} : vector<256x4xbf16>, vector<4x8xbf16>, vector<256x8xf32> -> vector<256x8xf32>
    %58 = arith.addf %48, %57 : vector<256x8xf32>
    %c241_i32 = arith.constant 241 : i32
    %59 = tpu.dynamic_rotate %2 by %c241_i32 dim 0 : vector<256x4xf32>, i32 -> vector<256x4xf32>
    %c6 = arith.constant 6 : index
    %c0_37 = arith.constant 0 : index
    %c0_38 = arith.constant 0 : index
    %60 = vector.load %arg2[%c6, %c0_37, %c0_38] : memref<9x256x1xf32, #tpu.memory_space<vmem>>, vector<1x256x1xf32>
    %61 = vector.shape_cast %60 : vector<1x256x1xf32> to vector<256x1xf32>
    %62 = vector.broadcast %61 : vector<256x1xf32> to vector<256x4xf32>
    %63 = arith.mulf %59, %62 : vector<256x4xf32>
    %64 = arith.truncf %63 : vector<256x4xf32> to vector<256x4xbf16>
    %c6_39 = arith.constant 6 : index
    %c0_40 = arith.constant 0 : index
    %c0_41 = arith.constant 0 : index
    %65 = vector.load %arg3[%c6_39, %c0_40, %c0_41] : memref<9x4x8xbf16, #tpu.memory_space<vmem>>, vector<1x4x8xbf16>
    %66 = vector.shape_cast %65 : vector<1x4x8xbf16> to vector<4x8xbf16>
    %cst_42 = arith.constant dense<0.000000e+00> : vector<256x8xf32>
    %67 = tpu.matmul %64, %66, %cst_42 {dimension_numbers = #tpu.dot_dimension_numbers<[1], [0], [0], [1], [0, 0, 1, 1], [], []>} : vector<256x4xbf16>, vector<4x8xbf16>, vector<256x8xf32> -> vector<256x8xf32>
    %68 = arith.addf %58, %67 : vector<256x8xf32>
    %c240_i32 = arith.constant 240 : i32
    %69 = tpu.dynamic_rotate %2 by %c240_i32 dim 0 : vector<256x4xf32>, i32 -> vector<256x4xf32>
    %c7 = arith.constant 7 : index
    %c0_43 = arith.constant 0 : index
    %c0_44 = arith.constant 0 : index
    %70 = vector.load %arg2[%c7, %c0_43, %c0_44] : memref<9x256x1xf32, #tpu.memory_space<vmem>>, vector<1x256x1xf32>
    %71 = vector.shape_cast %70 : vector<1x256x1xf32> to vector<256x1xf32>
    %72 = vector.broadcast %71 : vector<256x1xf32> to vector<256x4xf32>
    %73 = arith.mulf %69, %72 : vector<256x4xf32>
    %74 = arith.truncf %73 : vector<256x4xf32> to vector<256x4xbf16>
    %c7_45 = arith.constant 7 : index
    %c0_46 = arith.constant 0 : index
    %c0_47 = arith.constant 0 : index
    %75 = vector.load %arg3[%c7_45, %c0_46, %c0_47] : memref<9x4x8xbf16, #tpu.memory_space<vmem>>, vector<1x4x8xbf16>
    %76 = vector.shape_cast %75 : vector<1x4x8xbf16> to vector<4x8xbf16>
    %cst_48 = arith.constant dense<0.000000e+00> : vector<256x8xf32>
    %77 = tpu.matmul %74, %76, %cst_48 {dimension_numbers = #tpu.dot_dimension_numbers<[1], [0], [0], [1], [0, 0, 1, 1], [], []>} : vector<256x4xbf16>, vector<4x8xbf16>, vector<256x8xf32> -> vector<256x8xf32>
    %78 = arith.addf %68, %77 : vector<256x8xf32>
    %c239_i32 = arith.constant 239 : i32
    %79 = tpu.dynamic_rotate %2 by %c239_i32 dim 0 : vector<256x4xf32>, i32 -> vector<256x4xf32>
    %c8 = arith.constant 8 : index
    %c0_49 = arith.constant 0 : index
    %c0_50 = arith.constant 0 : index
    %80 = vector.load %arg2[%c8, %c0_49, %c0_50] : memref<9x256x1xf32, #tpu.memory_space<vmem>>, vector<1x256x1xf32>
    %81 = vector.shape_cast %80 : vector<1x256x1xf32> to vector<256x1xf32>
    %82 = vector.broadcast %81 : vector<256x1xf32> to vector<256x4xf32>
    %83 = arith.mulf %79, %82 : vector<256x4xf32>
    %84 = arith.truncf %83 : vector<256x4xf32> to vector<256x4xbf16>
    %c8_51 = arith.constant 8 : index
    %c0_52 = arith.constant 0 : index
    %c0_53 = arith.constant 0 : index
    %85 = vector.load %arg3[%c8_51, %c0_52, %c0_53] : memref<9x4x8xbf16, #tpu.memory_space<vmem>>, vector<1x4x8xbf16>
    %86 = vector.shape_cast %85 : vector<1x4x8xbf16> to vector<4x8xbf16>
    %cst_54 = arith.constant dense<0.000000e+00> : vector<256x8xf32>
    %87 = tpu.matmul %84, %86, %cst_54 {dimension_numbers = #tpu.dot_dimension_numbers<[1], [0], [0], [1], [0, 0, 1, 1], [], []>} : vector<256x4xbf16>, vector<4x8xbf16>, vector<256x8xf32> -> vector<256x8xf32>
    %88 = arith.addf %78, %87 : vector<256x8xf32>
    %c0_55 = arith.constant 0 : index
    %c0_56 = arith.constant 0 : index
    %89 = vector.load %arg4[%c0_55, %c0_56] : memref<1x8xf32, #tpu.memory_space<vmem>>, vector<1x8xf32>
    %90 = vector.broadcast %89 : vector<1x8xf32> to vector<256x8xf32>
    %91 = arith.addf %88, %90 : vector<256x8xf32>
    %cst_57 = arith.constant 0.000000e+00 : f32
    %92 = vector.broadcast %cst_57 : f32 to vector<256x8xf32>
    %93 = arith.maximumf %91, %92 : vector<256x8xf32>
    %cst_58 = arith.constant 0.000000e+00 : f32
    %94 = vector.broadcast %cst_58 : f32 to vector<256x8xf32>
    %c17_i32_59 = arith.constant 17 : i32
    %95 = tpu.dynamic_rotate %93 by %c17_i32_59 dim 0 : vector<256x8xf32>, i32 -> vector<256x8xf32>
    %c0_60 = arith.constant 0 : index
    %c0_61 = arith.constant 0 : index
    %c0_62 = arith.constant 0 : index
    %96 = vector.load %arg2[%c0_60, %c0_61, %c0_62] : memref<9x256x1xf32, #tpu.memory_space<vmem>>, vector<1x256x1xf32>
    %97 = vector.shape_cast %96 : vector<1x256x1xf32> to vector<256x1xf32>
    %98 = vector.broadcast %97 : vector<256x1xf32> to vector<256x8xf32>
    %99 = arith.mulf %95, %98 : vector<256x8xf32>
    %100 = arith.truncf %99 : vector<256x8xf32> to vector<256x8xbf16>
    %c0_63 = arith.constant 0 : index
    %c0_64 = arith.constant 0 : index
    %c0_65 = arith.constant 0 : index
    %101 = vector.load %arg5[%c0_63, %c0_64, %c0_65] : memref<9x8x8xbf16, #tpu.memory_space<vmem>>, vector<1x8x8xbf16>
    %102 = vector.shape_cast %101 : vector<1x8x8xbf16> to vector<8x8xbf16>
    %cst_66 = arith.constant dense<0.000000e+00> : vector<256x8xf32>
    %103 = tpu.matmul %100, %102, %cst_66 {dimension_numbers = #tpu.dot_dimension_numbers<[1], [0], [0], [1], [0, 0, 1, 1], [], []>} : vector<256x8xbf16>, vector<8x8xbf16>, vector<256x8xf32> -> vector<256x8xf32>
    %104 = arith.addf %94, %103 : vector<256x8xf32>
    %c16_i32_67 = arith.constant 16 : i32
    %105 = tpu.dynamic_rotate %93 by %c16_i32_67 dim 0 : vector<256x8xf32>, i32 -> vector<256x8xf32>
    %c1_68 = arith.constant 1 : index
    %c0_69 = arith.constant 0 : index
    %c0_70 = arith.constant 0 : index
    %106 = vector.load %arg2[%c1_68, %c0_69, %c0_70] : memref<9x256x1xf32, #tpu.memory_space<vmem>>, vector<1x256x1xf32>
    %107 = vector.shape_cast %106 : vector<1x256x1xf32> to vector<256x1xf32>
    %108 = vector.broadcast %107 : vector<256x1xf32> to vector<256x8xf32>
    %109 = arith.mulf %105, %108 : vector<256x8xf32>
    %110 = arith.truncf %109 : vector<256x8xf32> to vector<256x8xbf16>
    %c1_71 = arith.constant 1 : index
    %c0_72 = arith.constant 0 : index
    %c0_73 = arith.constant 0 : index
    %111 = vector.load %arg5[%c1_71, %c0_72, %c0_73] : memref<9x8x8xbf16, #tpu.memory_space<vmem>>, vector<1x8x8xbf16>
    %112 = vector.shape_cast %111 : vector<1x8x8xbf16> to vector<8x8xbf16>
    %cst_74 = arith.constant dense<0.000000e+00> : vector<256x8xf32>
    %113 = tpu.matmul %110, %112, %cst_74 {dimension_numbers = #tpu.dot_dimension_numbers<[1], [0], [0], [1], [0, 0, 1, 1], [], []>} : vector<256x8xbf16>, vector<8x8xbf16>, vector<256x8xf32> -> vector<256x8xf32>
    %114 = arith.addf %104, %113 : vector<256x8xf32>
    %c15_i32_75 = arith.constant 15 : i32
    %115 = tpu.dynamic_rotate %93 by %c15_i32_75 dim 0 : vector<256x8xf32>, i32 -> vector<256x8xf32>
    %c2_76 = arith.constant 2 : index
    %c0_77 = arith.constant 0 : index
    %c0_78 = arith.constant 0 : index
    %116 = vector.load %arg2[%c2_76, %c0_77, %c0_78] : memref<9x256x1xf32, #tpu.memory_space<vmem>>, vector<1x256x1xf32>
    %117 = vector.shape_cast %116 : vector<1x256x1xf32> to vector<256x1xf32>
    %118 = vector.broadcast %117 : vector<256x1xf32> to vector<256x8xf32>
    %119 = arith.mulf %115, %118 : vector<256x8xf32>
    %120 = arith.truncf %119 : vector<256x8xf32> to vector<256x8xbf16>
    %c2_79 = arith.constant 2 : index
    %c0_80 = arith.constant 0 : index
    %c0_81 = arith.constant 0 : index
    %121 = vector.load %arg5[%c2_79, %c0_80, %c0_81] : memref<9x8x8xbf16, #tpu.memory_space<vmem>>, vector<1x8x8xbf16>
    %122 = vector.shape_cast %121 : vector<1x8x8xbf16> to vector<8x8xbf16>
    %cst_82 = arith.constant dense<0.000000e+00> : vector<256x8xf32>
    %123 = tpu.matmul %120, %122, %cst_82 {dimension_numbers = #tpu.dot_dimension_numbers<[1], [0], [0], [1], [0, 0, 1, 1], [], []>} : vector<256x8xbf16>, vector<8x8xbf16>, vector<256x8xf32> -> vector<256x8xf32>
    %124 = arith.addf %114, %123 : vector<256x8xf32>
    %c1_i32_83 = arith.constant 1 : i32
    %125 = tpu.dynamic_rotate %93 by %c1_i32_83 dim 0 : vector<256x8xf32>, i32 -> vector<256x8xf32>
    %c3_84 = arith.constant 3 : index
    %c0_85 = arith.constant 0 : index
    %c0_86 = arith.constant 0 : index
    %126 = vector.load %arg2[%c3_84, %c0_85, %c0_86] : memref<9x256x1xf32, #tpu.memory_space<vmem>>, vector<1x256x1xf32>
    %127 = vector.shape_cast %126 : vector<1x256x1xf32> to vector<256x1xf32>
    %128 = vector.broadcast %127 : vector<256x1xf32> to vector<256x8xf32>
    %129 = arith.mulf %125, %128 : vector<256x8xf32>
    %130 = arith.truncf %129 : vector<256x8xf32> to vector<256x8xbf16>
    %c3_87 = arith.constant 3 : index
    %c0_88 = arith.constant 0 : index
    %c0_89 = arith.constant 0 : index
    %131 = vector.load %arg5[%c3_87, %c0_88, %c0_89] : memref<9x8x8xbf16, #tpu.memory_space<vmem>>, vector<1x8x8xbf16>
    %132 = vector.shape_cast %131 : vector<1x8x8xbf16> to vector<8x8xbf16>
    %cst_90 = arith.constant dense<0.000000e+00> : vector<256x8xf32>
    %133 = tpu.matmul %130, %132, %cst_90 {dimension_numbers = #tpu.dot_dimension_numbers<[1], [0], [0], [1], [0, 0, 1, 1], [], []>} : vector<256x8xbf16>, vector<8x8xbf16>, vector<256x8xf32> -> vector<256x8xf32>
    %134 = arith.addf %124, %133 : vector<256x8xf32>
    %135 = arith.truncf %93 : vector<256x8xf32> to vector<256x8xbf16>
    %c4_91 = arith.constant 4 : index
    %c0_92 = arith.constant 0 : index
    %c0_93 = arith.constant 0 : index
    %136 = vector.load %arg5[%c4_91, %c0_92, %c0_93] : memref<9x8x8xbf16, #tpu.memory_space<vmem>>, vector<1x8x8xbf16>
    %137 = vector.shape_cast %136 : vector<1x8x8xbf16> to vector<8x8xbf16>
    %cst_94 = arith.constant dense<0.000000e+00> : vector<256x8xf32>
    %138 = tpu.matmul %135, %137, %cst_94 {dimension_numbers = #tpu.dot_dimension_numbers<[1], [0], [0], [1], [0, 0, 1, 1], [], []>} : vector<256x8xbf16>, vector<8x8xbf16>, vector<256x8xf32> -> vector<256x8xf32>
    %139 = arith.addf %134, %138 : vector<256x8xf32>
    %c255_i32_95 = arith.constant 255 : i32
    %140 = tpu.dynamic_rotate %93 by %c255_i32_95 dim 0 : vector<256x8xf32>, i32 -> vector<256x8xf32>
    %c5_96 = arith.constant 5 : index
    %c0_97 = arith.constant 0 : index
    %c0_98 = arith.constant 0 : index
    %141 = vector.load %arg2[%c5_96, %c0_97, %c0_98] : memref<9x256x1xf32, #tpu.memory_space<vmem>>, vector<1x256x1xf32>
    %142 = vector.shape_cast %141 : vector<1x256x1xf32> to vector<256x1xf32>
    %143 = vector.broadcast %142 : vector<256x1xf32> to vector<256x8xf32>
    %144 = arith.mulf %140, %143 : vector<256x8xf32>
    %145 = arith.truncf %144 : vector<256x8xf32> to vector<256x8xbf16>
    %c5_99 = arith.constant 5 : index
    %c0_100 = arith.constant 0 : index
    %c0_101 = arith.constant 0 : index
    %146 = vector.load %arg5[%c5_99, %c0_100, %c0_101] : memref<9x8x8xbf16, #tpu.memory_space<vmem>>, vector<1x8x8xbf16>
    %147 = vector.shape_cast %146 : vector<1x8x8xbf16> to vector<8x8xbf16>
    %cst_102 = arith.constant dense<0.000000e+00> : vector<256x8xf32>
    %148 = tpu.matmul %145, %147, %cst_102 {dimension_numbers = #tpu.dot_dimension_numbers<[1], [0], [0], [1], [0, 0, 1, 1], [], []>} : vector<256x8xbf16>, vector<8x8xbf16>, vector<256x8xf32> -> vector<256x8xf32>
    %149 = arith.addf %139, %148 : vector<256x8xf32>
    %c241_i32_103 = arith.constant 241 : i32
    %150 = tpu.dynamic_rotate %93 by %c241_i32_103 dim 0 : vector<256x8xf32>, i32 -> vector<256x8xf32>
    %c6_104 = arith.constant 6 : index
    %c0_105 = arith.constant 0 : index
    %c0_106 = arith.constant 0 : index
    %151 = vector.load %arg2[%c6_104, %c0_105, %c0_106] : memref<9x256x1xf32, #tpu.memory_space<vmem>>, vector<1x256x1xf32>
    %152 = vector.shape_cast %151 : vector<1x256x1xf32> to vector<256x1xf32>
    %153 = vector.broadcast %152 : vector<256x1xf32> to vector<256x8xf32>
    %154 = arith.mulf %150, %153 : vector<256x8xf32>
    %155 = arith.truncf %154 : vector<256x8xf32> to vector<256x8xbf16>
    %c6_107 = arith.constant 6 : index
    %c0_108 = arith.constant 0 : index
    %c0_109 = arith.constant 0 : index
    %156 = vector.load %arg5[%c6_107, %c0_108, %c0_109] : memref<9x8x8xbf16, #tpu.memory_space<vmem>>, vector<1x8x8xbf16>
    %157 = vector.shape_cast %156 : vector<1x8x8xbf16> to vector<8x8xbf16>
    %cst_110 = arith.constant dense<0.000000e+00> : vector<256x8xf32>
    %158 = tpu.matmul %155, %157, %cst_110 {dimension_numbers = #tpu.dot_dimension_numbers<[1], [0], [0], [1], [0, 0, 1, 1], [], []>} : vector<256x8xbf16>, vector<8x8xbf16>, vector<256x8xf32> -> vector<256x8xf32>
    %159 = arith.addf %149, %158 : vector<256x8xf32>
    %c240_i32_111 = arith.constant 240 : i32
    %160 = tpu.dynamic_rotate %93 by %c240_i32_111 dim 0 : vector<256x8xf32>, i32 -> vector<256x8xf32>
    %c7_112 = arith.constant 7 : index
    %c0_113 = arith.constant 0 : index
    %c0_114 = arith.constant 0 : index
    %161 = vector.load %arg2[%c7_112, %c0_113, %c0_114] : memref<9x256x1xf32, #tpu.memory_space<vmem>>, vector<1x256x1xf32>
    %162 = vector.shape_cast %161 : vector<1x256x1xf32> to vector<256x1xf32>
    %163 = vector.broadcast %162 : vector<256x1xf32> to vector<256x8xf32>
    %164 = arith.mulf %160, %163 : vector<256x8xf32>
    %165 = arith.truncf %164 : vector<256x8xf32> to vector<256x8xbf16>
    %c7_115 = arith.constant 7 : index
    %c0_116 = arith.constant 0 : index
    %c0_117 = arith.constant 0 : index
    %166 = vector.load %arg5[%c7_115, %c0_116, %c0_117] : memref<9x8x8xbf16, #tpu.memory_space<vmem>>, vector<1x8x8xbf16>
    %167 = vector.shape_cast %166 : vector<1x8x8xbf16> to vector<8x8xbf16>
    %cst_118 = arith.constant dense<0.000000e+00> : vector<256x8xf32>
    %168 = tpu.matmul %165, %167, %cst_118 {dimension_numbers = #tpu.dot_dimension_numbers<[1], [0], [0], [1], [0, 0, 1, 1], [], []>} : vector<256x8xbf16>, vector<8x8xbf16>, vector<256x8xf32> -> vector<256x8xf32>
    %169 = arith.addf %159, %168 : vector<256x8xf32>
    %c239_i32_119 = arith.constant 239 : i32
    %170 = tpu.dynamic_rotate %93 by %c239_i32_119 dim 0 : vector<256x8xf32>, i32 -> vector<256x8xf32>
    %c8_120 = arith.constant 8 : index
    %c0_121 = arith.constant 0 : index
    %c0_122 = arith.constant 0 : index
    %171 = vector.load %arg2[%c8_120, %c0_121, %c0_122] : memref<9x256x1xf32, #tpu.memory_space<vmem>>, vector<1x256x1xf32>
    %172 = vector.shape_cast %171 : vector<1x256x1xf32> to vector<256x1xf32>
    %173 = vector.broadcast %172 : vector<256x1xf32> to vector<256x8xf32>
    %174 = arith.mulf %170, %173 : vector<256x8xf32>
    %175 = arith.truncf %174 : vector<256x8xf32> to vector<256x8xbf16>
    %c8_123 = arith.constant 8 : index
    %c0_124 = arith.constant 0 : index
    %c0_125 = arith.constant 0 : index
    %176 = vector.load %arg5[%c8_123, %c0_124, %c0_125] : memref<9x8x8xbf16, #tpu.memory_space<vmem>>, vector<1x8x8xbf16>
    %177 = vector.shape_cast %176 : vector<1x8x8xbf16> to vector<8x8xbf16>
    %cst_126 = arith.constant dense<0.000000e+00> : vector<256x8xf32>
    %178 = tpu.matmul %175, %177, %cst_126 {dimension_numbers = #tpu.dot_dimension_numbers<[1], [0], [0], [1], [0, 0, 1, 1], [], []>} : vector<256x8xbf16>, vector<8x8xbf16>, vector<256x8xf32> -> vector<256x8xf32>
    %179 = arith.addf %169, %178 : vector<256x8xf32>
    %c0_127 = arith.constant 0 : index
    %c0_128 = arith.constant 0 : index
    %180 = vector.load %arg6[%c0_127, %c0_128] : memref<1x8xf32, #tpu.memory_space<vmem>>, vector<1x8xf32>
    %181 = vector.broadcast %180 : vector<1x8xf32> to vector<256x8xf32>
    %182 = arith.addf %179, %181 : vector<256x8xf32>
    %cst_129 = arith.constant 0.000000e+00 : f32
    %183 = vector.broadcast %cst_129 : f32 to vector<256x8xf32>
    %184 = arith.maximumf %182, %183 : vector<256x8xf32>
    %185 = vector.shape_cast %184 : vector<256x8xf32> to vector<1x8x2x16x8xf32>
    %cst_130 = arith.constant dense<0xFF800000> : vector<1x8x16x8xf32>
    %186 = vector.multi_reduction <maximumf>, %185, %cst_130 [2] : vector<1x8x2x16x8xf32> to vector<1x8x16x8xf32>
    %187 = vector.shape_cast %186 : vector<1x8x16x8xf32> to vector<1x8x8x2x8xf32>
    %cst_131 = arith.constant dense<0xFF800000> : vector<1x8x8x8xf32>
    %188 = vector.multi_reduction <maximumf>, %187, %cst_131 [3] : vector<1x8x8x2x8xf32> to vector<1x8x8x8xf32>
    %189 = vector.shape_cast %188 : vector<1x8x8x8xf32> to vector<1x8x64xf32>
    %c0_132 = arith.constant 0 : index
    %c0_133 = arith.constant 0 : index
    %c0_134 = arith.constant 0 : index
    %190 = vector.load %arg7[%c0_132, %c0_133, %c0_134] : memref<1x8x64xf32, #tpu.memory_space<vmem>>, vector<1x8x64xf32>
    tpu.vector_store %arg7[%c0_132, %c0_133, %c0_134], %189 {strides = array<i32>} : memref<1x8x64xf32, #tpu.memory_space<vmem>>, vector<1x8x64xf32>,
    return
  }
  func.func @transform_0(%arg0: i32) -> (i32, i32, i32, i32) {
    %c0_i32 = arith.constant 0 : i32
    %c0_i32_0 = arith.constant 0 : i32
    %c0_i32_1 = arith.constant 0 : i32
    %c0_i32_2 = arith.constant 0 : i32
    return %arg0, %c0_i32, %c0_i32_0, %c0_i32_1 : i32, i32, i32, i32
  }
  func.func @transform_1(%arg0: i32) -> (i32, i32, i32) {
    %c0_i32 = arith.constant 0 : i32
    %c0_i32_0 = arith.constant 0 : i32
    %c0_i32_1 = arith.constant 0 : i32
    %c0_i32_2 = arith.constant 0 : i32
    return %c0_i32, %c0_i32_0, %c0_i32_1 : i32, i32, i32
  }
  func.func @transform_2(%arg0: i32) -> (i32, i32, i32) {
    %c0_i32 = arith.constant 0 : i32
    %c0_i32_0 = arith.constant 0 : i32
    %c0_i32_1 = arith.constant 0 : i32
    %c0_i32_2 = arith.constant 0 : i32
    return %c0_i32, %c0_i32_0, %c0_i32_1 : i32, i32, i32
  }
  func.func @transform_3(%arg0: i32) -> (i32, i32) {
    %c0_i32 = arith.constant 0 : i32
    %c0_i32_0 = arith.constant 0 : i32
    %c0_i32_1 = arith.constant 0 : i32
    return %c0_i32, %c0_i32_0 : i32, i32
  }
  func.func @transform_4(%arg0: i32) -> (i32, i32, i32) {
    %c0_i32 = arith.constant 0 : i32
    %c0_i32_0 = arith.constant 0 : i32
    %c0_i32_1 = arith.constant 0 : i32
    %c0_i32_2 = arith.constant 0 : i32
    return %c0_i32, %c0_i32_0, %c0_i32_1 : i32, i32, i32
  }
  func.func @transform_5(%arg0: i32) -> (i32, i32) {
    %c0_i32 = arith.constant 0 : i32
    %c0_i32_0 = arith.constant 0 : i32
    %c0_i32_1 = arith.constant 0 : i32
    return %c0_i32, %c0_i32_0 : i32, i32
  }
  func.func @transform_6(%arg0: i32) -> (i32, i32, i32) {
    %c0_i32 = arith.constant 0 : i32
    %c0_i32_0 = arith.constant 0 : i32
    %c0_i32_1 = arith.constant 0 : i32
    return %arg0, %c0_i32, %c0_i32_0 : i32, i32, i32
  }
}

</mosaic_0001>

<llo_original>
// kernel: tpu_custom_call.1
$region0: #{tpu_custom_call.1}
  #allocation0 [shape = 'u32[]', space=smem, size = 0x4, offset = 0x4, fixed_abs, tag = 'smem constant byte address 0x4 - core index']
  #allocation1 [shape = 'u32[72,128]{1,0:T(1,128)}', space=vmem, size = 0x9000, scoped, tag = 'internal scratch']
  %s0 = inlined_call_operand.vmem [shape: bf16[2,16,16,4], index: 0, kind: input, shape index: {}]
  %s1 = inlined_call_operand.vmem [shape: f32[9,256,1], index: 1, kind: input, shape index: {}]
  %s2 = inlined_call_operand.vmem [shape: bf16[9,4,8], index: 2, kind: input, shape index: {}]
  %s3 = inlined_call_operand.vmem [shape: f32[1,8], index: 3, kind: input, shape index: {}]
  %s4 = inlined_call_operand.vmem [shape: bf16[9,8,8], index: 4, kind: input, shape index: {}]
  %s5 = inlined_call_operand.vmem [shape: f32[1,8], index: 5, kind: input, shape index: {}]
  %s6 = inlined_call_operand.hbm [shape: f32[2,8,64], index: 6, kind: output, shape index: {}]
  %s7 = sld [smem:[#allocation0]]
  $region57: #{tpu_custom_call.1} parent=0
    _
  %s9 = ssub.s32 1, %s7
  %s10 = scalar_select 0, %s9, %s7
  $region1: #{tpu_custom_call.1} parent=0
    #allocation2 [shape = 'u8[8192]{0}', space=vmem, size = 0x2000, scoped, tag = 'output window, operand 0']
    #allocation3 [shape = 's32[2]{0}', space=sflag, size = 0x8, scoped, tag = 'scoped memory for tpu_custom_call.1']
    %11 = vsyncpa [#allocation3], 0
    %s12 = scalar_lea.sflag [#allocation3], 1
    %13 = vsyncpa %s12, 0
    loop: start=0, step=1, limit=4
    $region2: #{tpu_custom_call.1} parent=1 // loop_pre_header
      _
    $region3: #{tpu_custom_call.1} parent=1 // loop_header
      %s15 = sphi 0, %s19
      %p16 = scmp.ge.s32.totalorder %s15, 4
      %s25 = sphi 0, %s27
      %s28 = sphi 0, %s25
      %s29 = sphi 0, %s28
      %s45 = sphi 0, %s29
      %s49 = sphi 0, %s49
      %s51 = sphi 0, %s49
      %s52 = sphi 0, %s51
      %s66 = sphi 0, %s52
      %s70 = sphi 0, %s70
      %s72 = sphi 0, %s70
      %s73 = sphi 0, %s72
      %s87 = sphi 0, %s73
      %s91 = sphi 0, %s91
      %s93 = sphi 0, %s91
      %s94 = sphi 0, %s93
      %s108 = sphi 0, %s94
      %s112 = sphi 0, %s112
      %s114 = sphi 0, %s112
      %s115 = sphi 0, %s114
      %s129 = sphi 0, %s115
      %s133 = sphi 0, %s133
      %s135 = sphi 0, %s133
      %s136 = sphi 0, %s135
      %s150 = sphi 0, %s136
      %s156 = sphi 0, %s158
      %s159 = sphi 0, %s156
      %s160 = sphi 0, %s159
      %s176 = sphi 0, %s160
    $region4: #{tpu_custom_call.1} parent=1 // loop_header_branch
      %18 = sbr.rel (%p16) target = $region8
    $region5: #{tpu_custom_call.1} parent=1 // loop_body
      %s20 = ssub.s32 %s15, 1
      %s21 = ssub.s32 %s15, 2
      %s22 = sadd.s32 %s15, 1
      %s23 = ssub.s32 %s15, %s22
      %p24 = scmp.eq.s32.totalorder %s23, 0
      %s26 = sadd.s32 %s25, 1
      %s27 = scalar_select %p24, %s25, %s26
      %p30 = pneg %p24
      %p31 = scmp.eq.s32.totalorder %s15, 1
      %p32 = por %p30, %p31
      %p33 = scmp.ne.s32.totalorder %s25, %s28
      %p34 = scmp.eq.s32.totalorder %s15, 0
      %p35 = por %p33, %p34
      %p36 = scmp.ne.s32.totalorder %s25, %s28
      %p37 = scmp.eq.s32.totalorder %s20, 1
      %p38 = por %p36, %p37
      %p39 = scmp.ne.s32.totalorder %s28, %s29
      %p40 = scmp.eq.s32.totalorder %s20, 0
      %p41 = por %p39, %p40
      %p42 = scmp.ne.s32.totalorder %s28, %s29
      %p43 = scmp.eq.s32.totalorder %s21, 1
      %p44 = por %p42, %p43
      %p46 = scmp.ne.s32.totalorder %s29, %s45
      %p47 = scmp.eq.s32.totalorder %s21, 0
      %p48 = por %p46, %p47
      %s50 = sadd.s32 %s49, 1
      %p53 = scmp.eq.s32.totalorder %s15, 1
      %p54 = scmp.ne.s32.totalorder %s49, %s51
      %p55 = scmp.eq.s32.totalorder %s15, 0
      %p56 = por %p54, %p55
      %p57 = scmp.ne.s32.totalorder %s49, %s51
      %p58 = scmp.eq.s32.totalorder %s20, 1
      %p59 = por %p57, %p58
      %p60 = scmp.ne.s32.totalorder %s51, %s52
      %p61 = scmp.eq.s32.totalorder %s20, 0
      %p62 = por %p60, %p61
      %p63 = scmp.ne.s32.totalorder %s51, %s52
      %p64 = scmp.eq.s32.totalorder %s21, 1
      %p65 = por %p63, %p64
      %p67 = scmp.ne.s32.totalorder %s52, %s66
      %p68 = scmp.eq.s32.totalorder %s21, 0
      %p69 = por %p67, %p68
      %s71 = sadd.s32 %s70, 1
      %p74 = scmp.eq.s32.totalorder %s15, 1
      %p75 = scmp.ne.s32.totalorder %s70, %s72
      %p76 = scmp.eq.s32.totalorder %s15, 0
      %p77 = por %p75, %p76
      %p78 = scmp.ne.s32.totalorder %s70, %s72
      %p79 = scmp.eq.s32.totalorder %s20, 1
      %p80 = por %p78, %p79
      %p81 = scmp.ne.s32.totalorder %s72, %s73
      %p82 = scmp.eq.s32.totalorder %s20, 0
      %p83 = por %p81, %p82
      %p84 = scmp.ne.s32.totalorder %s72, %s73
      %p85 = scmp.eq.s32.totalorder %s21, 1
      %p86 = por %p84, %p85
      %p88 = scmp.ne.s32.totalorder %s73, %s87
      %p89 = scmp.eq.s32.totalorder %s21, 0
      %p90 = por %p88, %p89
      %s92 = sadd.s32 %s91, 1
      %p95 = scmp.eq.s32.totalorder %s15, 1
      %p96 = scmp.ne.s32.totalorder %s91, %s93
      %p97 = scmp.eq.s32.totalorder %s15, 0
      %p98 = por %p96, %p97
      %p99 = scmp.ne.s32.totalorder %s91, %s93
      %p100 = scmp.eq.s32.totalorder %s20, 1
      %p101 = por %p99, %p100
      %p102 = scmp.ne.s32.totalorder %s93, %s94
      %p103 = scmp.eq.s32.totalorder %s20, 0
      %p104 = por %p102, %p103
      %p105 = scmp.ne.s32.totalorder %s93, %s94
      %p106 = scmp.eq.s32.totalorder %s21, 1
      %p107 = por %p105, %p106
      %p109 = scmp.ne.s32.totalorder %s94, %s108
      %p110 = scmp.eq.s32.totalorder %s21, 0
      %p111 = por %p109, %p110
      %s113 = sadd.s32 %s112, 1
      %p116 = scmp.eq.s32.totalorder %s15, 1
      %p117 = scmp.ne.s32.totalorder %s112, %s114
      %p118 = scmp.eq.s32.totalorder %s15, 0
      %p119 = por %p117, %p118
      %p120 = scmp.ne.s32.totalorder %s112, %s114
      %p121 = scmp.eq.s32.totalorder %s20, 1
      %p122 = por %p120, %p121
      %p123 = scmp.ne.s32.totalorder %s114, %s115
      %p124 = scmp.eq.s32.totalorder %s20, 0
      %p125 = por %p123, %p124
      %p126 = scmp.ne.s32.totalorder %s114, %s115
      %p127 = scmp.eq.s32.totalorder %s21, 1
      %p128 = por %p126, %p127
      %p130 = scmp.ne.s32.totalorder %s115, %s129
      %p131 = scmp.eq.s32.totalorder %s21, 0
      %p132 = por %p130, %p131
      %s134 = sadd.s32 %s133, 1
      %p137 = scmp.eq.s32.totalorder %s15, 1
      %p138 = scmp.ne.s32.totalorder %s133, %s135
      %p139 = scmp.eq.s32.totalorder %s15, 0
      %p140 = por %p138, %p139
      %p141 = scmp.ne.s32.totalorder %s133, %s135
      %p142 = scmp.eq.s32.totalorder %s20, 1
      %p143 = por %p141, %p142
      %p144 = scmp.ne.s32.totalorder %s135, %s136
      %p145 = scmp.eq.s32.totalorder %s20, 0
      %p146 = por %p144, %p145
      %p147 = scmp.ne.s32.totalorder %s135, %s136
      %p148 = scmp.eq.s32.totalorder %s21, 1
      %p149 = por %p147, %p148
      %p151 = scmp.ne.s32.totalorder %s136, %s150
      %p152 = scmp.eq.s32.totalorder %s21, 0
      %p153 = por %p151, %p152
      %s154 = ssub.s32 %s15, %s22
      %p155 = scmp.eq.s32.totalorder %s154, 0
      %s157 = sadd.s32 %s156, 1
      %s158 = scalar_select %p155, %s156, %s157
      %p161 = pneg %p155
      %p162 = scmp.eq.s32.totalorder %s15, 1
      %p163 = por %p161, %p162
      %p164 = scmp.ne.s32.totalorder %s156, %s159
      %p165 = scmp.eq.s32.totalorder %s15, 0
      %p166 = por %p164, %p165
      %p167 = scmp.ne.s32.totalorder %s156, %s159
      %p168 = scmp.eq.s32.totalorder %s20, 1
      %p169 = por %p167, %p168
      %p170 = scmp.ne.s32.totalorder %s159, %s160
      %p171 = scmp.eq.s32.totalorder %s20, 0
      %p172 = por %p170, %p171
      %p173 = scmp.ne.s32.totalorder %s159, %s160
      %p174 = scmp.eq.s32.totalorder %s21, 1
      %p175 = por %p173, %p174
      %p177 = scmp.ne.s32.totalorder %s160, %s176
      %p178 = scmp.eq.s32.totalorder %s21, 0
      %p179 = por %p177, %p178
      %p180 = scmp.le.s32.totalorder 1, %s15
      %p181 = scmp.lt.s32.totalorder %s15, 3
      %p182 = pnand %p180, %p181
      %p183 = pneg %p182
      // Predicated region
      $region9: #{tpu_custom_call.1} parent=5 // pred_check
        _
      $region10: #{tpu_custom_call.1} parent=5 // pred_check_branch
        %185 = sbr.rel (%p182) target = $region12
      $region11: #{tpu_custom_call.1} parent=5 // pred_region
        %s186 = ssub.s32 %s15, 1
        // Predicated region
        $region13: #{tpu_custom_call.1} parent=11 // pred_check
          %p187 = pneg %p62
        $region14: #{tpu_custom_call.1} parent=11 // pred_check_branch
          %189 = sbr.rel (%p187) target = $region16
        $region15: #{tpu_custom_call.1} parent=11 // pred_region
          _
        $region16: #{tpu_custom_call.1} parent=11 // pred_fallthru
          _
        // Predicated region
        $region17: #{tpu_custom_call.1} parent=11 // pred_check
          %p190 = pneg %p83
        $region18: #{tpu_custom_call.1} parent=11 // pred_check_branch
          %192 = sbr.rel (%p190) target = $region20
        $region19: #{tpu_custom_call.1} parent=11 // pred_region
          _
        $region20: #{tpu_custom_call.1} parent=11 // pred_fallthru
          _
        // Predicated region
        $region21: #{tpu_custom_call.1} parent=11 // pred_check
          %p193 = pneg %p104
        $region22: #{tpu_custom_call.1} parent=11 // pred_check_branch
          %195 = sbr.rel (%p193) target = $region24
        $region23: #{tpu_custom_call.1} parent=11 // pred_region
          _
        $region24: #{tpu_custom_call.1} parent=11 // pred_fallthru
          _
        // Predicated region
        $region25: #{tpu_custom_call.1} parent=11 // pred_check
          %p196 = pneg %p125
        $region26: #{tpu_custom_call.1} parent=11 // pred_check_branch
          %198 = sbr.rel (%p196) target = $region28
        $region27: #{tpu_custom_call.1} parent=11 // pred_region
          _
        $region28: #{tpu_custom_call.1} parent=11 // pred_fallthru
          _
        // Predicated region
        $region29: #{tpu_custom_call.1} parent=11 // pred_check
          %p199 = pneg %p146
        $region30: #{tpu_custom_call.1} parent=11 // pred_check_branch
          %201 = sbr.rel (%p199) target = $region32
        $region31: #{tpu_custom_call.1} parent=11 // pred_region
          _
        $region32: #{tpu_custom_call.1} parent=11 // pred_fallthru
          _
      $region12: #{tpu_custom_call.1} parent=5 // pred_fallthru
        _
      %p202 = scmp.lt.s32.totalorder %s15, 2
      // Predicated region
      $region33: #{tpu_custom_call.1} parent=5 // pred_check
        %p203 = pneg %p202
      $region34: #{tpu_custom_call.1} parent=5 // pred_check_branch
        %205 = sbr.rel (%p203) target = $region36
      $region35: #{tpu_custom_call.1} parent=5 // pred_region
        // Predicated region
        $region37: #{tpu_custom_call.1} parent=35 // pred_check
          %p206 = pneg %p35
        $region38: #{tpu_custom_call.1} parent=35 // pred_check_branch
          %208 = sbr.rel (%p206) target = $region40
        $region39: #{tpu_custom_call.1} parent=35 // pred_region
          %p209 = scmp.lt.s32.totalorder %s15, 1
          %s210 = scalar_select %p209, %s15, 1
          %s211 = smul.addr %s210, 32
          %s212 = smul.addr %s211, 4
          %s213 = scalar_lea.vmem %s0, %s212
        $region40: #{tpu_custom_call.1} parent=35 // pred_fallthru
          _
      $region36: #{tpu_custom_call.1} parent=5 // pred_fallthru
        _
      %p214 = scmp.le.s32.totalorder 1, %s15
      %p215 = scmp.lt.s32.totalorder %s15, 3
      %p216 = pnand %p214, %p215
      %p217 = pneg %p216
      // Predicated region
      $region41: #{tpu_custom_call.1} parent=5 // pred_check
        _
      $region42: #{tpu_custom_call.1} parent=5 // pred_check_branch
        %219 = sbr.rel (%p216) target = $region44
      $region43: #{tpu_custom_call.1} parent=5 // pred_region
        %s220 = ssub.s32 %s15, 1
        %p221 = scmp.lt.s32.totalorder %s20, 1
        %s222 = scalar_select %p221, %s20, 1
        %s223 = smul.addr %s222, 32
        %s224 = smul.addr %s223, 4
        %s225 = scalar_lea.vmem %s0, %s224
        %p226 = pneg %p41
        %p227 = pneg %p38
        %p228 = pneg %p62
        %p229 = pneg %p59
        %p230 = pneg %p83
        %p231 = pneg %p80
        %p232 = pneg %p104
        %p233 = pneg %p101
        %p234 = pneg %p125
        %p235 = pneg %p122
        %p236 = pneg %p146
        %p237 = pneg %p143
        %p238 = pneg %p172
        %p239 = pneg %p169
        %s240 = sand.u32 %s159, 1
        %s241 = scalar_lea.sflag [#allocation3], %s240
        %s242 = sand.u32 %s159, 1
        %s243 = smul.addr %s242, 8
        %s244 = scalar_lea.vmem [#allocation2], %s243
        %p245 = scmp.lt.s32.totalorder %s20, 1
        %s246 = scalar_select %p245, %s20, 1
        %s247 = smul.addr %s246, 32
        %s248 = smul.addr %s247, 4
        %s249 = scalar_lea.vmem %s0, %s248
        %v251 = vld [vmem:[%s249] sm:$0xf]
        %v252 = vld [vmem:[%s249 + $0x4] sm:$0xf]
        %v253 = vld [vmem:[%s249 + $0x8] sm:$0xf]
        %v254 = vld [vmem:[%s249 + $0xc] sm:$0xf]
        %v255 = vld [vmem:[%s249 + $0x10] sm:$0xf]
        %v256 = vld [vmem:[%s249 + $0x14] sm:$0xf]
        %v257 = vld [vmem:[%s249 + $0x18] sm:$0xf]
        %v258 = vld [vmem:[%s249 + $0x1c] sm:$0xf]
        %v259 = vld [vmem:[%s249 + $0x20] sm:$0xf]
        %v260 = vld [vmem:[%s249 + $0x24] sm:$0xf]
        %v261 = vld [vmem:[%s249 + $0x28] sm:$0xf]
        %v262 = vld [vmem:[%s249 + $0x2c] sm:$0xf]
        %v263 = vld [vmem:[%s249 + $0x30] sm:$0xf]
        %v264 = vld [vmem:[%s249 + $0x34] sm:$0xf]
        %v265 = vld [vmem:[%s249 + $0x38] sm:$0xf]
        %v266 = vld [vmem:[%s249 + $0x3c] sm:$0xf]
        %v267 = vld [vmem:[%s249 + $0x40] sm:$0xf]
        %v268 = vld [vmem:[%s249 + $0x44] sm:$0xf]
        %v269 = vld [vmem:[%s249 + $0x48] sm:$0xf]
        %v270 = vld [vmem:[%s249 + $0x4c] sm:$0xf]
        %v271 = vld [vmem:[%s249 + $0x50] sm:$0xf]
        %v272 = vld [vmem:[%s249 + $0x54] sm:$0xf]
        %v273 = vld [vmem:[%s249 + $0x58] sm:$0xf]
        %v274 = vld [vmem:[%s249 + $0x5c] sm:$0xf]
        %v275 = vld [vmem:[%s249 + $0x60] sm:$0xf]
        %v276 = vld [vmem:[%s249 + $0x64] sm:$0xf]
        %v277 = vld [vmem:[%s249 + $0x68] sm:$0xf]
        %v278 = vld [vmem:[%s249 + $0x6c] sm:$0xf]
        %v279 = vld [vmem:[%s249 + $0x70] sm:$0xf]
        %v280 = vld [vmem:[%s249 + $0x74] sm:$0xf]
        %v281 = vld [vmem:[%s249 + $0x78] sm:$0xf]
        %v282 = vld [vmem:[%s249 + $0x7c] sm:$0xf]
        %v283 = vunpack.c.l.bf16 %v251
        %v284 = vunpack.c.l.bf16 %v252
        %v285 = vunpack.c.l.bf16 %v253
        %v286 = vunpack.c.l.bf16 %v254
        %v287 = vunpack.c.l.bf16 %v255
        %v288 = vunpack.c.l.bf16 %v256
        %v289 = vunpack.c.l.bf16 %v257
        %v290 = vunpack.c.l.bf16 %v258
        %v291 = vunpack.c.l.bf16 %v259
        %v292 = vunpack.c.l.bf16 %v260
        %v293 = vunpack.c.l.bf16 %v261
        %v294 = vunpack.c.l.bf16 %v262
        %v295 = vunpack.c.l.bf16 %v263
        %v296 = vunpack.c.l.bf16 %v264
        %v297 = vunpack.c.l.bf16 %v265
        %v298 = vunpack.c.l.bf16 %v266
        %v299 = vunpack.c.l.bf16 %v267
        %v300 = vunpack.c.l.bf16 %v268
        %v301 = vunpack.c.l.bf16 %v269
        %v302 = vunpack.c.l.bf16 %v270
        %v303 = vunpack.c.l.bf16 %v271
        %v304 = vunpack.c.l.bf16 %v272
        %v305 = vunpack.c.l.bf16 %v273
        %v306 = vunpack.c.l.bf16 %v274
        %v307 = vunpack.c.l.bf16 %v275
        %v308 = vunpack.c.l.bf16 %v276
        %v309 = vunpack.c.l.bf16 %v277
        %v310 = vunpack.c.l.bf16 %v278
        %v311 = vunpack.c.l.bf16 %v279
        %v312 = vunpack.c.l.bf16 %v280
        %v313 = vunpack.c.l.bf16 %v281
        %v314 = vunpack.c.l.bf16 %v282
        %v315 = vrot.slane %v283, 7
        %v316 = vrot.slane %v284, 7
        %v317 = vrot.slane %v285, 7
        %v318 = vrot.slane %v286, 7
        %v319 = vrot.slane %v287, 7
        %v320 = vrot.slane %v288, 7
        %v321 = vrot.slane %v289, 7
        %v322 = vrot.slane %v290, 7
        %v323 = vrot.slane %v291, 7
        %v324 = vrot.slane %v292, 7
        %v325 = vrot.slane %v293, 7
        %v326 = vrot.slane %v294, 7
        %v327 = vrot.slane %v295, 7
        %v328 = vrot.slane %v296, 7
        %v329 = vrot.slane %v297, 7
        %v330 = vrot.slane %v298, 7
        %v331 = vrot.slane %v299, 7
        %v332 = vrot.slane %v300, 7
        %v333 = vrot.slane %v301, 7
        %v334 = vrot.slane %v302, 7
        %v335 = vrot.slane %v303, 7
        %v336 = vrot.slane %v304, 7
        %v337 = vrot.slane %v305, 7
        %v338 = vrot.slane %v306, 7
        %v339 = vrot.slane %v307, 7
        %v340 = vrot.slane %v308, 7
        %v341 = vrot.slane %v309, 7
        %v342 = vrot.slane %v310, 7
        %v343 = vrot.slane %v311, 7
        %v344 = vrot.slane %v312, 7
        %v345 = vrot.slane %v313, 7
        %v346 = vrot.slane %v314, 7
        %v347 = vlaneseq
        %v348 = vshrl.u32 %v347, 7
        %vm349 = vcmp.lt.s32.totalorder %v348, 1
        %v350 = vsel %vm349, %v345, %v346
        %v351 = vsel %vm349, %v344, %v345
        %v352 = vsel %vm349, %v343, %v344
        %v353 = vsel %vm349, %v342, %v343
        %v354 = vsel %vm349, %v341, %v342
        %v355 = vsel %vm349, %v340, %v341
        %v356 = vsel %vm349, %v339, %v340
        %v357 = vsel %vm349, %v338, %v339
        %v358 = vsel %vm349, %v337, %v338
        %v359 = vsel %vm349, %v336, %v337
        %v360 = vsel %vm349, %v335, %v336
        %v361 = vsel %vm349, %v334, %v335
        %v362 = vsel %vm349, %v333, %v334
        %v363 = vsel %vm349, %v332, %v333
        %v364 = vsel %vm349, %v331, %v332
        %v365 = vsel %vm349, %v330, %v331
        %v366 = vsel %vm349, %v329, %v330
        %v367 = vsel %vm349, %v328, %v329
        %v368 = vsel %vm349, %v327, %v328
        %v369 = vsel %vm349, %v326, %v327
        %v370 = vsel %vm349, %v325, %v326
        %v371 = vsel %vm349, %v324, %v325
        %v372 = vsel %vm349, %v323, %v324
        %v373 = vsel %vm349, %v322, %v323
        %v374 = vsel %vm349, %v321, %v322
        %v375 = vsel %vm349, %v320, %v321
        %v376 = vsel %vm349, %v319, %v320
        %v377 = vsel %vm349, %v318, %v319
        %v378 = vsel %vm349, %v317, %v318
        %v379 = vsel %vm349, %v316, %v317
        %v380 = vsel %vm349, %v315, %v316
        %v381 = vsel %vm349, %v346, %v315
        %v382 = vld [vmem:[%s1] sm:$0xff]
        %v383 = vld [vmem:[%s1 + $0x8] sm:$0xff]
        %v384 = vld [vmem:[%s1 + $0x10] sm:$0xff]
        %v385 = vld [vmem:[%s1 + $0x18] sm:$0xff]
        %v386 = vld [vmem:[%s1 + $0x20] sm:$0xff]
        %v387 = vld [vmem:[%s1 + $0x28] sm:$0xff]
        %v388 = vld [vmem:[%s1 + $0x30] sm:$0xff]
        %v389 = vld [vmem:[%s1 + $0x38] sm:$0xff]
        %v390 = vld [vmem:[%s1 + $0x40] sm:$0xff]
        %v391 = vld [vmem:[%s1 + $0x48] sm:$0xff]
        %v392 = vld [vmem:[%s1 + $0x50] sm:$0xff]
        %v393 = vld [vmem:[%s1 + $0x58] sm:$0xff]
        %v394 = vld [vmem:[%s1 + $0x60] sm:$0xff]
        %v395 = vld [vmem:[%s1 + $0x68] sm:$0xff]
        %v396 = vld [vmem:[%s1 + $0x70] sm:$0xff]
        %v397 = vld [vmem:[%s1 + $0x78] sm:$0xff]
        %v398 = vld [vmem:[%s1 + $0x80] sm:$0xff]
        %v399 = vld [vmem:[%s1 + $0x88] sm:$0xff]
        %v400 = vld [vmem:[%s1 + $0x90] sm:$0xff]
        %v401 = vld [vmem:[%s1 + $0x98] sm:$0xff]
        %v402 = vld [vmem:[%s1 + $0xa0] sm:$0xff]
        %v403 = vld [vmem:[%s1 + $0xa8] sm:$0xff]
        %v404 = vld [vmem:[%s1 + $0xb0] sm:$0xff]
        %v405 = vld [vmem:[%s1 + $0xb8] sm:$0xff]
        %v406 = vld [vmem:[%s1 + $0xc0] sm:$0xff]
        %v407 = vld [vmem:[%s1 + $0xc8] sm:$0xff]
        %v408 = vld [vmem:[%s1 + $0xd0] sm:$0xff]
        %v409 = vld [vmem:[%s1 + $0xd8] sm:$0xff]
        %v410 = vld [vmem:[%s1 + $0xe0] sm:$0xff]
        %v411 = vld [vmem:[%s1 + $0xe8] sm:$0xff]
        %v412 = vld [vmem:[%s1 + $0xf0] sm:$0xff]
        %v413 = vld [vmem:[%s1 + $0xf8] sm:$0xff]
        %415 = vset.pattern.permute.xlu0 0
        %416 = vperm.xlu0 %415, %v382
        %v417 = vpop.permute.xlu0 %416
        %420 = vset.pattern.permute.xlu0 0
        %421 = vperm.xlu0 %420, %v383
        %v422 = vpop.permute.xlu0 %421
        %425 = vset.pattern.permute.xlu0 0
        %426 = vperm.xlu0 %425, %v384
        %v427 = vpop.permute.xlu0 %426
        %430 = vset.pattern.permute.xlu0 0
        %431 = vperm.xlu0 %430, %v385
        %v432 = vpop.permute.xlu0 %431
        %435 = vset.pattern.permute.xlu0 0
        %436 = vperm.xlu0 %435, %v386
        %v437 = vpop.permute.xlu0 %436
        %440 = vset.pattern.permute.xlu0 0
        %441 = vperm.xlu0 %440, %v387
        %v442 = vpop.permute.xlu0 %441
        %445 = vset.pattern.permute.xlu0 0
        %446 = vperm.xlu0 %445, %v388
        %v447 = vpop.permute.xlu0 %446
        %450 = vset.pattern.permute.xlu0 0
        %451 = vperm.xlu0 %450, %v389
        %v452 = vpop.permute.xlu0 %451
        %455 = vset.pattern.permute.xlu0 0
        %456 = vperm.xlu0 %455, %v390
        %v457 = vpop.permute.xlu0 %456
        %460 = vset.pattern.permute.xlu0 0
        %461 = vperm.xlu0 %460, %v391
        %v462 = vpop.permute.xlu0 %461
        %465 = vset.pattern.permute.xlu0 0
        %466 = vperm.xlu0 %465, %v392
        %v467 = vpop.permute.xlu0 %466
        %470 = vset.pattern.permute.xlu0 0
        %471 = vperm.xlu0 %470, %v393
        %v472 = vpop.permute.xlu0 %471
        %475 = vset.pattern.permute.xlu0 0
        %476 = vperm.xlu0 %475, %v394
        %v477 = vpop.permute.xlu0 %476
        %480 = vset.pattern.permute.xlu0 0
        %481 = vperm.xlu0 %480, %v395
        %v482 = vpop.permute.xlu0 %481
        %485 = vset.pattern.permute.xlu0 0
        %486 = vperm.xlu0 %485, %v396
        %v487 = vpop.permute.xlu0 %486
        %490 = vset.pattern.permute.xlu0 0
        %491 = vperm.xlu0 %490, %v397
        %v492 = vpop.permute.xlu0 %491
        %495 = vset.pattern.permute.xlu0 0
        %496 = vperm.xlu0 %495, %v398
        %v497 = vpop.permute.xlu0 %496
        %500 = vset.pattern.permute.xlu0 0
        %501 = vperm.xlu0 %500, %v399
        %v502 = vpop.permute.xlu0 %501
        %505 = vset.pattern.permute.xlu0 0
        %506 = vperm.xlu0 %505, %v400
        %v507 = vpop.permute.xlu0 %506
        %510 = vset.pattern.permute.xlu0 0
        %511 = vperm.xlu0 %510, %v401
        %v512 = vpop.permute.xlu0 %511
        %515 = vset.pattern.permute.xlu0 0
        %516 = vperm.xlu0 %515, %v402
        %v517 = vpop.permute.xlu0 %516
        %520 = vset.pattern.permute.xlu0 0
        %521 = vperm.xlu0 %520, %v403
        %v522 = vpop.permute.xlu0 %521
        %525 = vset.pattern.permute.xlu0 0
        %526 = vperm.xlu0 %525, %v404
        %v527 = vpop.permute.xlu0 %526
        %530 = vset.pattern.permute.xlu0 0
        %531 = vperm.xlu0 %530, %v405
        %v532 = vpop.permute.xlu0 %531
        %535 = vset.pattern.permute.xlu0 0
        %536 = vperm.xlu0 %535, %v406
        %v537 = vpop.permute.xlu0 %536
        %540 = vset.pattern.permute.xlu0 0
        %541 = vperm.xlu0 %540, %v407
        %v542 = vpop.permute.xlu0 %541
        %545 = vset.pattern.permute.xlu0 0
        %546 = vperm.xlu0 %545, %v408
        %v547 = vpop.permute.xlu0 %546
        %550 = vset.pattern.permute.xlu0 0
        %551 = vperm.xlu0 %550, %v409
        %v552 = vpop.permute.xlu0 %551
        %555 = vset.pattern.permute.xlu0 0
        %556 = vperm.xlu0 %555, %v410
        %v557 = vpop.permute.xlu0 %556
        %560 = vset.pattern.permute.xlu0 0
        %561 = vperm.xlu0 %560, %v411
        %v562 = vpop.permute.xlu0 %561
        %565 = vset.pattern.permute.xlu0 0
        %566 = vperm.xlu0 %565, %v412
        %v567 = vpop.permute.xlu0 %566
        %570 = vset.pattern.permute.xlu0 0
        %571 = vperm.xlu0 %570, %v413
        %v572 = vpop.permute.xlu0 %571
        %v574 = vmul.f32 %v351, %v417
        %v575 = vmul.f32 %v350, %v422
        %v576 = vmul.f32 %v381, %v427
        %v577 = vmul.f32 %v380, %v432
        %v578 = vmul.f32 %v379, %v437
        %v579 = vmul.f32 %v378, %v442
        %v580 = vmul.f32 %v377, %v447
        %v581 = vmul.f32 %v376, %v452
        %v582 = vmul.f32 %v375, %v457
        %v583 = vmul.f32 %v374, %v462
        %v584 = vmul.f32 %v373, %v467
        %v585 = vmul.f32 %v372, %v472
        %v586 = vmul.f32 %v371, %v477
        %v587 = vmul.f32 %v370, %v482
        %v588 = vmul.f32 %v369, %v487
        %v589 = vmul.f32 %v368, %v492
        %v590 = vmul.f32 %v367, %v497
        %v591 = vmul.f32 %v366, %v502
        %v592 = vmul.f32 %v365, %v507
        %v593 = vmul.f32 %v364, %v512
        %v594 = vmul.f32 %v363, %v517
        %v595 = vmul.f32 %v362, %v522
        %v596 = vmul.f32 %v361, %v527
        %v597 = vmul.f32 %v360, %v532
        %v598 = vmul.f32 %v359, %v537
        %v599 = vmul.f32 %v358, %v542
        %v600 = vmul.f32 %v357, %v547
        %v601 = vmul.f32 %v356, %v552
        %v602 = vmul.f32 %v355, %v557
        %v603 = vmul.f32 %v354, %v562
        %v604 = vmul.f32 %v353, %v567
        %v605 = vmul.f32 %v352, %v572
        %v606 = vpack.c.bf16 %v575, %v574
        %v607 = vpack.c.bf16 %v577, %v576
        %v608 = vpack.c.bf16 %v579, %v578
        %v609 = vpack.c.bf16 %v581, %v580
        %v610 = vpack.c.bf16 %v583, %v582
        %v611 = vpack.c.bf16 %v585, %v584
        %v612 = vpack.c.bf16 %v587, %v586
        %v613 = vpack.c.bf16 %v589, %v588
        %v614 = vpack.c.bf16 %v591, %v590
        %v615 = vpack.c.bf16 %v593, %v592
        %v616 = vpack.c.bf16 %v595, %v594
        %v617 = vpack.c.bf16 %v597, %v596
        %v618 = vpack.c.bf16 %v599, %v598
        %v619 = vpack.c.bf16 %v601, %v600
        %v620 = vpack.c.bf16 %v603, %v602
        %v621 = vpack.c.bf16 %v605, %v604
        %v622 = vld [vmem:[%s2] sm:$0x3]
        %s623 = scalar_lea.vmem %s1, 256
        %v624 = vld [vmem:[%s623] sm:$0xff]
        %v625 = vld [vmem:[%s623 + $0x8] sm:$0xff]
        %v626 = vld [vmem:[%s623 + $0x10] sm:$0xff]
        %v627 = vld [vmem:[%s623 + $0x18] sm:$0xff]
        %v628 = vld [vmem:[%s623 + $0x20] sm:$0xff]
        %v629 = vld [vmem:[%s623 + $0x28] sm:$0xff]
        %v630 = vld [vmem:[%s623 + $0x30] sm:$0xff]
        %v631 = vld [vmem:[%s623 + $0x38] sm:$0xff]
        %v632 = vld [vmem:[%s623 + $0x40] sm:$0xff]
        %v633 = vld [vmem:[%s623 + $0x48] sm:$0xff]
        %v634 = vld [vmem:[%s623 + $0x50] sm:$0xff]
        %v635 = vld [vmem:[%s623 + $0x58] sm:$0xff]
        %v636 = vld [vmem:[%s623 + $0x60] sm:$0xff]
        %v637 = vld [vmem:[%s623 + $0x68] sm:$0xff]
        %v638 = vld [vmem:[%s623 + $0x70] sm:$0xff]
        %v639 = vld [vmem:[%s623 + $0x78] sm:$0xff]
        %v640 = vld [vmem:[%s623 + $0x80] sm:$0xff]
        %v641 = vld [vmem:[%s623 + $0x88] sm:$0xff]
        %v642 = vld [vmem:[%s623 + $0x90] sm:$0xff]
        %v643 = vld [vmem:[%s623 + $0x98] sm:$0xff]
        %v644 = vld [vmem:[%s623 + $0xa0] sm:$0xff]
        %v645 = vld [vmem:[%s623 + $0xa8] sm:$0xff]
        %v646 = vld [vmem:[%s623 + $0xb0] sm:$0xff]
        %v647 = vld [vmem:[%s623 + $0xb8] sm:$0xff]
        %v648 = vld [vmem:[%s623 + $0xc0] sm:$0xff]
        %v649 = vld [vmem:[%s623 + $0xc8] sm:$0xff]
        %v650 = vld [vmem:[%s623 + $0xd0] sm:$0xff]
        %v651 = vld [vmem:[%s623 + $0xd8] sm:$0xff]
        %v652 = vld [vmem:[%s623 + $0xe0] sm:$0xff]
        %v653 = vld [vmem:[%s623 + $0xe8] sm:$0xff]
        %v654 = vld [vmem:[%s623 + $0xf0] sm:$0xff]
        %v655 = vld [vmem:[%s623 + $0xf8] sm:$0xff]
        %657 = vset.pattern.permute.xlu0 0
        %658 = vperm.xlu0 %657, %v624
        %v659 = vpop.permute.xlu0 %658
        %662 = vset.pattern.permute.xlu0 0
        %663 = vperm.xlu0 %662, %v625
        %v664 = vpop.permute.xlu0 %663
        %667 = vset.pattern.permute.xlu0 0
        %668 = vperm.xlu0 %667, %v626
        %v669 = vpop.permute.xlu0 %668
        %672 = vset.pattern.permute.xlu0 0
        %673 = vperm.xlu0 %672, %v627
        %v674 = vpop.permute.xlu0 %673
        %677 = vset.pattern.permute.xlu0 0
        %678 = vperm.xlu0 %677, %v628
        %v679 = vpop.permute.xlu0 %678
        %682 = vset.pattern.permute.xlu0 0
        %683 = vperm.xlu0 %682, %v629
        %v684 = vpop.permute.xlu0 %683
        %687 = vset.pattern.permute.xlu0 0
        %688 = vperm.xlu0 %687, %v630
        %v689 = vpop.permute.xlu0 %688
        %692 = vset.pattern.permute.xlu0 0
        %693 = vperm.xlu0 %692, %v631
        %v694 = vpop.permute.xlu0 %693
        %697 = vset.pattern.permute.xlu0 0
        %698 = vperm.xlu0 %697, %v632
        %v699 = vpop.permute.xlu0 %698
        %702 = vset.pattern.permute.xlu0 0
        %703 = vperm.xlu0 %702, %v633
        %v704 = vpop.permute.xlu0 %703
        %707 = vset.pattern.permute.xlu0 0
        %708 = vperm.xlu0 %707, %v634
        %v709 = vpop.permute.xlu0 %708
        %712 = vset.pattern.permute.xlu0 0
        %713 = vperm.xlu0 %712, %v635
        %v714 = vpop.permute.xlu0 %713
        %717 = vset.pattern.permute.xlu0 0
        %718 = vperm.xlu0 %717, %v636
        %v719 = vpop.permute.xlu0 %718
        %722 = vset.pattern.permute.xlu0 0
        %723 = vperm.xlu0 %722, %v637
        %v724 = vpop.permute.xlu0 %723
        %727 = vset.pattern.permute.xlu0 0
        %728 = vperm.xlu0 %727, %v638
        %v729 = vpop.permute.xlu0 %728
        %732 = vset.pattern.permute.xlu0 0
        %733 = vperm.xlu0 %732, %v639
        %v734 = vpop.permute.xlu0 %733
        %737 = vset.pattern.permute.xlu0 0
        %738 = vperm.xlu0 %737, %v640
        %v739 = vpop.permute.xlu0 %738
        %742 = vset.pattern.permute.xlu0 0
        %743 = vperm.xlu0 %742, %v641
        %v744 = vpop.permute.xlu0 %743
        %747 = vset.pattern.permute.xlu0 0
        %748 = vperm.xlu0 %747, %v642
        %v749 = vpop.permute.xlu0 %748
        %752 = vset.pattern.permute.xlu0 0
        %753 = vperm.xlu0 %752, %v643
        %v754 = vpop.permute.xlu0 %753
        %757 = vset.pattern.permute.xlu0 0
        %758 = vperm.xlu0 %757, %v644
        %v759 = vpop.permute.xlu0 %758
        %762 = vset.pattern.permute.xlu0 0
        %763 = vperm.xlu0 %762, %v645
        %v764 = vpop.permute.xlu0 %763
        %767 = vset.pattern.permute.xlu0 0
        %768 = vperm.xlu0 %767, %v646
        %v769 = vpop.permute.xlu0 %768
        %772 = vset.pattern.permute.xlu0 0
        %773 = vperm.xlu0 %772, %v647
        %v774 = vpop.permute.xlu0 %773
        %777 = vset.pattern.permute.xlu0 0
        %778 = vperm.xlu0 %777, %v648
        %v779 = vpop.permute.xlu0 %778
        %782 = vset.pattern.permute.xlu0 0
        %783 = vperm.xlu0 %782, %v649
        %v784 = vpop.permute.xlu0 %783
        %787 = vset.pattern.permute.xlu0 0
        %788 = vperm.xlu0 %787, %v650
        %v789 = vpop.permute.xlu0 %788
        %792 = vset.pattern.permute.xlu0 0
        %793 = vperm.xlu0 %792, %v651
        %v794 = vpop.permute.xlu0 %793
        %797 = vset.pattern.permute.xlu0 0
        %798 = vperm.xlu0 %797, %v652
        %v799 = vpop.permute.xlu0 %798
        %802 = vset.pattern.permute.xlu0 0
        %803 = vperm.xlu0 %802, %v653
        %v804 = vpop.permute.xlu0 %803
        %807 = vset.pattern.permute.xlu0 0
        %808 = vperm.xlu0 %807, %v654
        %v809 = vpop.permute.xlu0 %808
        %812 = vset.pattern.permute.xlu0 0
        %813 = vperm.xlu0 %812, %v655
        %v814 = vpop.permute.xlu0 %813
        %v816 = vmul.f32 %v313, %v659
        %v817 = vmul.f32 %v314, %v664
        %v818 = vmul.f32 %v283, %v669
        %v819 = vmul.f32 %v284, %v674
        %v820 = vmul.f32 %v285, %v679
        %v821 = vmul.f32 %v286, %v684
        %v822 = vmul.f32 %v287, %v689
        %v823 = vmul.f32 %v288, %v694
        %v824 = vmul.f32 %v289, %v699
        %v825 = vmul.f32 %v290, %v704
        %v826 = vmul.f32 %v291, %v709
        %v827 = vmul.f32 %v292, %v714
        %v828 = vmul.f32 %v293, %v719
        %v829 = vmul.f32 %v294, %v724
        %v830 = vmul.f32 %v295, %v729
        %v831 = vmul.f32 %v296, %v734
        %v832 = vmul.f32 %v297, %v739
        %v833 = vmul.f32 %v298, %v744
        %v834 = vmul.f32 %v299, %v749
        %v835 = vmul.f32 %v300, %v754
        %v836 = vmul.f32 %v301, %v759
        %v837 = vmul.f32 %v302, %v764
        %v838 = vmul.f32 %v303, %v769
        %v839 = vmul.f32 %v304, %v774
        %v840 = vmul.f32 %v305, %v779
        %v841 = vmul.f32 %v306, %v784
        %v842 = vmul.f32 %v307, %v789
        %v843 = vmul.f32 %v308, %v794
        %v844 = vmul.f32 %v309, %v799
        %v845 = vmul.f32 %v310, %v804
        %v846 = vmul.f32 %v311, %v809
        %v847 = vmul.f32 %v312, %v814
        %v848 = vpack.c.bf16 %v817, %v816
        %v849 = vpack.c.bf16 %v819, %v818
        %v850 = vpack.c.bf16 %v821, %v820
        %v851 = vpack.c.bf16 %v823, %v822
        %v852 = vpack.c.bf16 %v825, %v824
        %v853 = vpack.c.bf16 %v827, %v826
        %v854 = vpack.c.bf16 %v829, %v828
        %v855 = vpack.c.bf16 %v831, %v830
        %v856 = vpack.c.bf16 %v833, %v832
        %v857 = vpack.c.bf16 %v835, %v834
        %v858 = vpack.c.bf16 %v837, %v836
        %v859 = vpack.c.bf16 %v839, %v838
        %v860 = vpack.c.bf16 %v841, %v840
        %v861 = vpack.c.bf16 %v843, %v842
        %v862 = vpack.c.bf16 %v845, %v844
        %v863 = vpack.c.bf16 %v847, %v846
        %s864 = scalar_lea.vmem %s2, 2
        %v865 = vld [vmem:[%s864] sm:$0x3]
        %vm866 = vcmask 31744
        %v868 = vsel %vm866, %v848, 0
        %v871 = vsel %vm866, %v849, 0
        %v874 = vsel %vm866, %v850, 0
        %v877 = vsel %vm866, %v851, 0
        %v880 = vsel %vm866, %v852, 0
        %v883 = vsel %vm866, %v853, 0
        %v886 = vsel %vm866, %v854, 0
        %v889 = vsel %vm866, %v855, 0
        %v892 = vsel %vm866, %v856, 0
        %v895 = vsel %vm866, %v857, 0
        %v898 = vsel %vm866, %v858, 0
        %v901 = vsel %vm866, %v859, 0
        %v904 = vsel %vm866, %v860, 0
        %v907 = vsel %vm866, %v861, 0
        %v910 = vsel %vm866, %v862, 0
        %v913 = vsel %vm866, %v863, 0
        %vm915 = vcmask 1041408
        %v917 = vsel %vm915, %v865, 0
        %919 = vmatpush.bf16.msra.mxu0 0
        %920 = vmatpush.bf16.msra.mxu0 0
        %921 = vmatpush.bf16.msra.mxu0 0
        %922 = vmatpush.bf16.msra.mxu0 0
        %923 = vmatpush.bf16.msra.mxu0 0
        %924 = vmatpush.bf16.msra.mxu0 0
        %925 = vmatpush.bf16.msra.mxu0 0
        %926 = vmatpush.bf16.msra.mxu0 %v917
        %927 = vmatmul.bf16.gmra.mxu0 %v868
        %v928 = vpop.f32.mrf.mxu0
        %v929 = vadd.f32 0.0, %v928
        %v930 = vpop.f32.mrf.mxu0
        %v931 = vadd.f32 0.0, %v930
        %932 = vmatmul.bf16.gmra.mxu0 %v871
        %v933 = vpop.f32.mrf.mxu0
        %v934 = vadd.f32 0.0, %v933
        %v935 = vpop.f32.mrf.mxu0
        %v936 = vadd.f32 0.0, %v935
        %937 = vmatmul.bf16.gmra.mxu0 %v874
        %v938 = vpop.f32.mrf.mxu0
        %v939 = vadd.f32 0.0, %v938
        %v940 = vpop.f32.mrf.mxu0
        %v941 = vadd.f32 0.0, %v940
        %942 = vmatmul.bf16.gmra.mxu0 %v877
        %v943 = vpop.f32.mrf.mxu0
        %v944 = vadd.f32 0.0, %v943
        %v945 = vpop.f32.mrf.mxu0
        %v946 = vadd.f32 0.0, %v945
        %947 = vmatmul.bf16.gmra.mxu0 %v880
        %v948 = vpop.f32.mrf.mxu0
        %v949 = vadd.f32 0.0, %v948
        %v950 = vpop.f32.mrf.mxu0
        %v951 = vadd.f32 0.0, %v950
        %952 = vmatmul.bf16.gmra.mxu0 %v883
        %v953 = vpop.f32.mrf.mxu0
        %v954 = vadd.f32 0.0, %v953
        %v955 = vpop.f32.mrf.mxu0
        %v956 = vadd.f32 0.0, %v955
        %957 = vmatmul.bf16.gmra.mxu0 %v886
        %v958 = vpop.f32.mrf.mxu0
        %v959 = vadd.f32 0.0, %v958
        %v960 = vpop.f32.mrf.mxu0
        %v961 = vadd.f32 0.0, %v960
        %962 = vmatmul.bf16.gmra.mxu0 %v889
        %v963 = vpop.f32.mrf.mxu0
        %v964 = vadd.f32 0.0, %v963
        %v965 = vpop.f32.mrf.mxu0
        %v966 = vadd.f32 0.0, %v965
        %967 = vmatmul.bf16.gmra.mxu0 %v892
        %v968 = vpop.f32.mrf.mxu0
        %v969 = vadd.f32 0.0, %v968
        %v970 = vpop.f32.mrf.mxu0
        %v971 = vadd.f32 0.0, %v970
        %972 = vmatmul.bf16.gmra.mxu0 %v895
        %v973 = vpop.f32.mrf.mxu0
        %v974 = vadd.f32 0.0, %v973
        %v975 = vpop.f32.mrf.mxu0
        %v976 = vadd.f32 0.0, %v975
        %977 = vmatmul.bf16.gmra.mxu0 %v898
        %v978 = vpop.f32.mrf.mxu0
        %v979 = vadd.f32 0.0, %v978
        %v980 = vpop.f32.mrf.mxu0
        %v981 = vadd.f32 0.0, %v980
        %982 = vmatmul.bf16.gmra.mxu0 %v901
        %v983 = vpop.f32.mrf.mxu0
        %v984 = vadd.f32 0.0, %v983
        %v985 = vpop.f32.mrf.mxu0
        %v986 = vadd.f32 0.0, %v985
        %987 = vmatmul.bf16.gmra.mxu0 %v904
        %v988 = vpop.f32.mrf.mxu0
        %v989 = vadd.f32 0.0, %v988
        %v990 = vpop.f32.mrf.mxu0
        %v991 = vadd.f32 0.0, %v990
        %992 = vmatmul.bf16.gmra.mxu0 %v907
        %v993 = vpop.f32.mrf.mxu0
        %v994 = vadd.f32 0.0, %v993
        %v995 = vpop.f32.mrf.mxu0
        %v996 = vadd.f32 0.0, %v995
        %997 = vmatmul.bf16.gmra.mxu0 %v910
        %v998 = vpop.f32.mrf.mxu0
        %v999 = vadd.f32 0.0, %v998
        %v1000 = vpop.f32.mrf.mxu0
        %v1001 = vadd.f32 0.0, %v1000
        %1002 = vmatmul.bf16.gmra.mxu0 %v913
        %v1003 = vpop.f32.mrf.mxu0
        %v1004 = vadd.f32 0.0, %v1003
        %v1005 = vpop.f32.mrf.mxu0
        %v1006 = vadd.f32 0.0, %v1005
        %1007 = vdwg.mxu0
        %v1009 = vsel %vm866, %v606, 0
        %v1012 = vsel %vm866, %v607, 0
        %v1015 = vsel %vm866, %v608, 0
        %v1018 = vsel %vm866, %v609, 0
        %v1021 = vsel %vm866, %v610, 0
        %v1024 = vsel %vm866, %v611, 0
        %v1027 = vsel %vm866, %v612, 0
        %v1030 = vsel %vm866, %v613, 0
        %v1033 = vsel %vm866, %v614, 0
        %v1036 = vsel %vm866, %v615, 0
        %v1039 = vsel %vm866, %v616, 0
        %v1042 = vsel %vm866, %v617, 0
        %v1045 = vsel %vm866, %v618, 0
        %v1048 = vsel %vm866, %v619, 0
        %v1051 = vsel %vm866, %v620, 0
        %v1054 = vsel %vm866, %v621, 0
        %v1057 = vsel %vm915, %v622, 0
        %1059 = vmatpush.bf16.msra.mxu0 0
        %1060 = vmatpush.bf16.msra.mxu0 0
        %1061 = vmatpush.bf16.msra.mxu0 0
        %1062 = vmatpush.bf16.msra.mxu0 0
        %1063 = vmatpush.bf16.msra.mxu0 0
        %1064 = vmatpush.bf16.msra.mxu0 0
        %1065 = vmatpush.bf16.msra.mxu0 0
        %1066 = vmatpush.bf16.msra.mxu0 %v1057
        %1067 = vmatmul.bf16.gmra.mxu0 %v1009
        %v1068 = vpop.f32.mrf.mxu0
        %v1069 = vadd.f32 %v929, %v1068
        %v1070 = vpop.f32.mrf.mxu0
        %v1071 = vadd.f32 %v931, %v1070
        %1072 = vmatmul.bf16.gmra.mxu0 %v1012
        %v1073 = vpop.f32.mrf.mxu0
        %v1074 = vadd.f32 %v934, %v1073
        %v1075 = vpop.f32.mrf.mxu0
        %v1076 = vadd.f32 %v936, %v1075
        %1077 = vmatmul.bf16.gmra.mxu0 %v1015
        %v1078 = vpop.f32.mrf.mxu0
        %v1079 = vadd.f32 %v939, %v1078
        %v1080 = vpop.f32.mrf.mxu0
        %v1081 = vadd.f32 %v941, %v1080
        %1082 = vmatmul.bf16.gmra.mxu0 %v1018
        %v1083 = vpop.f32.mrf.mxu0
        %v1084 = vadd.f32 %v944, %v1083
        %v1085 = vpop.f32.mrf.mxu0
        %v1086 = vadd.f32 %v946, %v1085
        %1087 = vmatmul.bf16.gmra.mxu0 %v1021
        %v1088 = vpop.f32.mrf.mxu0
        %v1089 = vadd.f32 %v949, %v1088
        %v1090 = vpop.f32.mrf.mxu0
        %v1091 = vadd.f32 %v951, %v1090
        %1092 = vmatmul.bf16.gmra.mxu0 %v1024
        %v1093 = vpop.f32.mrf.mxu0
        %v1094 = vadd.f32 %v954, %v1093
        %v1095 = vpop.f32.mrf.mxu0
        %v1096 = vadd.f32 %v956, %v1095
        %1097 = vmatmul.bf16.gmra.mxu0 %v1027
        %v1098 = vpop.f32.mrf.mxu0
        %v1099 = vadd.f32 %v959, %v1098
        %v1100 = vpop.f32.mrf.mxu0
        %v1101 = vadd.f32 %v961, %v1100
        %1102 = vmatmul.bf16.gmra.mxu0 %v1030
        %v1103 = vpop.f32.mrf.mxu0
        %v1104 = vadd.f32 %v964, %v1103
        %v1105 = vpop.f32.mrf.mxu0
        %v1106 = vadd.f32 %v966, %v1105
        %1107 = vmatmul.bf16.gmra.mxu0 %v1033
        %v1108 = vpop.f32.mrf.mxu0
        %v1109 = vadd.f32 %v969, %v1108
        %v1110 = vpop.f32.mrf.mxu0
        %v1111 = vadd.f32 %v971, %v1110
        %1112 = vmatmul.bf16.gmra.mxu0 %v1036
        %v1113 = vpop.f32.mrf.mxu0
        %v1114 = vadd.f32 %v974, %v1113
        %v1115 = vpop.f32.mrf.mxu0
        %v1116 = vadd.f32 %v976, %v1115
        %1117 = vmatmul.bf16.gmra.mxu0 %v1039
        %v1118 = vpop.f32.mrf.mxu0
        %v1119 = vadd.f32 %v979, %v1118
        %v1120 = vpop.f32.mrf.mxu0
        %v1121 = vadd.f32 %v981, %v1120
        %1122 = vmatmul.bf16.gmra.mxu0 %v1042
        %v1123 = vpop.f32.mrf.mxu0
        %v1124 = vadd.f32 %v984, %v1123
        %v1125 = vpop.f32.mrf.mxu0
        %v1126 = vadd.f32 %v986, %v1125
        %1127 = vmatmul.bf16.gmra.mxu0 %v1045
        %v1128 = vpop.f32.mrf.mxu0
        %v1129 = vadd.f32 %v989, %v1128
        %v1130 = vpop.f32.mrf.mxu0
        %v1131 = vadd.f32 %v991, %v1130
        %1132 = vmatmul.bf16.gmra.mxu0 %v1048
        %v1133 = vpop.f32.mrf.mxu0
        %v1134 = vadd.f32 %v994, %v1133
        %v1135 = vpop.f32.mrf.mxu0
        %v1136 = vadd.f32 %v996, %v1135
        %1137 = vmatmul.bf16.gmra.mxu0 %v1051
        %v1138 = vpop.f32.mrf.mxu0
        %v1139 = vadd.f32 %v999, %v1138
        %v1140 = vpop.f32.mrf.mxu0
        %v1141 = vadd.f32 %v1001, %v1140
        %1142 = vmatmul.bf16.gmra.mxu0 %v1054
        %v1143 = vpop.f32.mrf.mxu0
        %v1144 = vadd.f32 %v1004, %v1143
        %v1145 = vpop.f32.mrf.mxu0
        %v1146 = vadd.f32 %v1006, %v1145
        %1147 = vdwg.mxu0
        %v1148 = vrot.slane %v283, 1
        %v1149 = vrot.slane %v284, 1
        %v1150 = vrot.slane %v285, 1
        %v1151 = vrot.slane %v286, 1
        %v1152 = vrot.slane %v287, 1
        %v1153 = vrot.slane %v288, 1
        %v1154 = vrot.slane %v289, 1
        %v1155 = vrot.slane %v290, 1
        %v1156 = vrot.slane %v291, 1
        %v1157 = vrot.slane %v292, 1
        %v1158 = vrot.slane %v293, 1
        %v1159 = vrot.slane %v294, 1
        %v1160 = vrot.slane %v295, 1
        %v1161 = vrot.slane %v296, 1
        %v1162 = vrot.slane %v297, 1
        %v1163 = vrot.slane %v298, 1
        %v1164 = vrot.slane %v299, 1
        %v1165 = vrot.slane %v300, 1
        %v1166 = vrot.slane %v301, 1
        %v1167 = vrot.slane %v302, 1
        %v1168 = vrot.slane %v303, 1
        %v1169 = vrot.slane %v304, 1
        %v1170 = vrot.slane %v305, 1
        %v1171 = vrot.slane %v306, 1
        %v1172 = vrot.slane %v307, 1
        %v1173 = vrot.slane %v308, 1
        %v1174 = vrot.slane %v309, 1
        %v1175 = vrot.slane %v310, 1
        %v1176 = vrot.slane %v311, 1
        %v1177 = vrot.slane %v312, 1
        %v1178 = vrot.slane %v313, 1
        %v1179 = vrot.slane %v314, 1
        %vm1180 = vcmp.lt.s32.totalorder %v348, 7
        %v1181 = vsel %vm1180, %v1178, %v1179
        %v1182 = vsel %vm1180, %v1177, %v1178
        %v1183 = vsel %vm1180, %v1176, %v1177
        %v1184 = vsel %vm1180, %v1175, %v1176
        %v1185 = vsel %vm1180, %v1174, %v1175
        %v1186 = vsel %vm1180, %v1173, %v1174
        %v1187 = vsel %vm1180, %v1172, %v1173
        %v1188 = vsel %vm1180, %v1171, %v1172
        %v1189 = vsel %vm1180, %v1170, %v1171
        %v1190 = vsel %vm1180, %v1169, %v1170
        %v1191 = vsel %vm1180, %v1168, %v1169
        %v1192 = vsel %vm1180, %v1167, %v1168
        %v1193 = vsel %vm1180, %v1166, %v1167
        %v1194 = vsel %vm1180, %v1165, %v1166
        %v1195 = vsel %vm1180, %v1164, %v1165
        %v1196 = vsel %vm1180, %v1163, %v1164
        %v1197 = vsel %vm1180, %v1162, %v1163
        %v1198 = vsel %vm1180, %v1161, %v1162
        %v1199 = vsel %vm1180, %v1160, %v1161
        %v1200 = vsel %vm1180, %v1159, %v1160
        %v1201 = vsel %vm1180, %v1158, %v1159
        %v1202 = vsel %vm1180, %v1157, %v1158
        %v1203 = vsel %vm1180, %v1156, %v1157
        %v1204 = vsel %vm1180, %v1155, %v1156
        %v1205 = vsel %vm1180, %v1154, %v1155
        %v1206 = vsel %vm1180, %v1153, %v1154
        %v1207 = vsel %vm1180, %v1152, %v1153
        %v1208 = vsel %vm1180, %v1151, %v1152
        %v1209 = vsel %vm1180, %v1150, %v1151
        %v1210 = vsel %vm1180, %v1149, %v1150
        %v1211 = vsel %vm1180, %v1148, %v1149
        %v1212 = vsel %vm1180, %v1179, %v1148
        %s1213 = scalar_lea.vmem %s1, 512
        %v1214 = vld [vmem:[%s1213] sm:$0xff]
        %v1215 = vld [vmem:[%s1213 + $0x8] sm:$0xff]
        %v1216 = vld [vmem:[%s1213 + $0x10] sm:$0xff]
        %v1217 = vld [vmem:[%s1213 + $0x18] sm:$0xff]
        %v1218 = vld [vmem:[%s1213 + $0x20] sm:$0xff]
        %v1219 = vld [vmem:[%s1213 + $0x28] sm:$0xff]
        %v1220 = vld [vmem:[%s1213 + $0x30] sm:$0xff]
        %v1221 = vld [vmem:[%s1213 + $0x38] sm:$0xff]
        %v1222 = vld [vmem:[%s1213 + $0x40] sm:$0xff]
        %v1223 = vld [vmem:[%s1213 + $0x48] sm:$0xff]
        %v1224 = vld [vmem:[%s1213 + $0x50] sm:$0xff]
        %v1225 = vld [vmem:[%s1213 + $0x58] sm:$0xff]
        %v1226 = vld [vmem:[%s1213 + $0x60] sm:$0xff]
        %v1227 = vld [vmem:[%s1213 + $0x68] sm:$0xff]
        %v1228 = vld [vmem:[%s1213 + $0x70] sm:$0xff]
        %v1229 = vld [vmem:[%s1213 + $0x78] sm:$0xff]
        %v1230 = vld [vmem:[%s1213 + $0x80] sm:$0xff]
        %v1231 = vld [vmem:[%s1213 + $0x88] sm:$0xff]
        %v1232 = vld [vmem:[%s1213 + $0x90] sm:$0xff]
        %v1233 = vld [vmem:[%s1213 + $0x98] sm:$0xff]
        %v1234 = vld [vmem:[%s1213 + $0xa0] sm:$0xff]
        %v1235 = vld [vmem:[%s1213 + $0xa8] sm:$0xff]
        %v1236 = vld [vmem:[%s1213 + $0xb0] sm:$0xff]
        %v1237 = vld [vmem:[%s1213 + $0xb8] sm:$0xff]
        %v1238 = vld [vmem:[%s1213 + $0xc0] sm:$0xff]
        %v1239 = vld [vmem:[%s1213 + $0xc8] sm:$0xff]
        %v1240 = vld [vmem:[%s1213 + $0xd0] sm:$0xff]
        %v1241 = vld [vmem:[%s1213 + $0xd8] sm:$0xff]
        %v1242 = vld [vmem:[%s1213 + $0xe0] sm:$0xff]
        %v1243 = vld [vmem:[%s1213 + $0xe8] sm:$0xff]
        %v1244 = vld [vmem:[%s1213 + $0xf0] sm:$0xff]
        %v1245 = vld [vmem:[%s1213 + $0xf8] sm:$0xff]
        %1247 = vset.pattern.permute.xlu0 0
        %1248 = vperm.xlu0 %1247, %v1214
        %v1249 = vpop.permute.xlu0 %1248
        %1252 = vset.pattern.permute.xlu0 0
        %1253 = vperm.xlu0 %1252, %v1215
        %v1254 = vpop.permute.xlu0 %1253
        %1257 = vset.pattern.permute.xlu0 0
        %1258 = vperm.xlu0 %1257, %v1216
        %v1259 = vpop.permute.xlu0 %1258
        %1262 = vset.pattern.permute.xlu0 0
        %1263 = vperm.xlu0 %1262, %v1217
        %v1264 = vpop.permute.xlu0 %1263
        %1267 = vset.pattern.permute.xlu0 0
        %1268 = vperm.xlu0 %1267, %v1218
        %v1269 = vpop.permute.xlu0 %1268
        %1272 = vset.pattern.permute.xlu0 0
        %1273 = vperm.xlu0 %1272, %v1219
        %v1274 = vpop.permute.xlu0 %1273
        %1277 = vset.pattern.permute.xlu0 0
        %1278 = vperm.xlu0 %1277, %v1220
        %v1279 = vpop.permute.xlu0 %1278
        %1282 = vset.pattern.permute.xlu0 0
        %1283 = vperm.xlu0 %1282, %v1221
        %v1284 = vpop.permute.xlu0 %1283
        %1287 = vset.pattern.permute.xlu0 0
        %1288 = vperm.xlu0 %1287, %v1222
        %v1289 = vpop.permute.xlu0 %1288
        %1292 = vset.pattern.permute.xlu0 0
        %1293 = vperm.xlu0 %1292, %v1223
        %v1294 = vpop.permute.xlu0 %1293
        %1297 = vset.pattern.permute.xlu0 0
        %1298 = vperm.xlu0 %1297, %v1224
        %v1299 = vpop.permute.xlu0 %1298
        %1302 = vset.pattern.permute.xlu0 0
        %1303 = vperm.xlu0 %1302, %v1225
        %v1304 = vpop.permute.xlu0 %1303
        %1307 = vset.pattern.permute.xlu0 0
        %1308 = vperm.xlu0 %1307, %v1226
        %v1309 = vpop.permute.xlu0 %1308
        %1312 = vset.pattern.permute.xlu0 0
        %1313 = vperm.xlu0 %1312, %v1227
        %v1314 = vpop.permute.xlu0 %1313
        %1317 = vset.pattern.permute.xlu0 0
        %1318 = vperm.xlu0 %1317, %v1228
        %v1319 = vpop.permute.xlu0 %1318
        %1322 = vset.pattern.permute.xlu0 0
        %1323 = vperm.xlu0 %1322, %v1229
        %v1324 = vpop.permute.xlu0 %1323
        %1327 = vset.pattern.permute.xlu0 0
        %1328 = vperm.xlu0 %1327, %v1230
        %v1329 = vpop.permute.xlu0 %1328
        %1332 = vset.pattern.permute.xlu0 0
        %1333 = vperm.xlu0 %1332, %v1231
        %v1334 = vpop.permute.xlu0 %1333
        %1337 = vset.pattern.permute.xlu0 0
        %1338 = vperm.xlu0 %1337, %v1232
        %v1339 = vpop.permute.xlu0 %1338
        %1342 = vset.pattern.permute.xlu0 0
        %1343 = vperm.xlu0 %1342, %v1233
        %v1344 = vpop.permute.xlu0 %1343
        %1347 = vset.pattern.permute.xlu0 0
        %1348 = vperm.xlu0 %1347, %v1234
        %v1349 = vpop.permute.xlu0 %1348
        %1352 = vset.pattern.permute.xlu0 0
        %1353 = vperm.xlu0 %1352, %v1235
        %v1354 = vpop.permute.xlu0 %1353
        %1357 = vset.pattern.permute.xlu0 0
        %1358 = vperm.xlu0 %1357, %v1236
        %v1359 = vpop.permute.xlu0 %1358
        %1362 = vset.pattern.permute.xlu0 0
        %1363 = vperm.xlu0 %1362, %v1237
        %v1364 = vpop.permute.xlu0 %1363
        %1367 = vset.pattern.permute.xlu0 0
        %1368 = vperm.xlu0 %1367, %v1238
        %v1369 = vpop.permute.xlu0 %1368
        %1372 = vset.pattern.permute.xlu0 0
        %1373 = vperm.xlu0 %1372, %v1239
        %v1374 = vpop.permute.xlu0 %1373
        %1377 = vset.pattern.permute.xlu0 0
        %1378 = vperm.xlu0 %1377, %v1240
        %v1379 = vpop.permute.xlu0 %1378
        %1382 = vset.pattern.permute.xlu0 0
        %1383 = vperm.xlu0 %1382, %v1241
        %v1384 = vpop.permute.xlu0 %1383
        %1387 = vset.pattern.permute.xlu0 0
        %1388 = vperm.xlu0 %1387, %v1242
        %v1389 = vpop.permute.xlu0 %1388
        %1392 = vset.pattern.permute.xlu0 0
        %1393 = vperm.xlu0 %1392, %v1243
        %v1394 = vpop.permute.xlu0 %1393
        %1397 = vset.pattern.permute.xlu0 0
        %1398 = vperm.xlu0 %1397, %v1244
        %v1399 = vpop.permute.xlu0 %1398
        %1402 = vset.pattern.permute.xlu0 0
        %1403 = vperm.xlu0 %1402, %v1245
        %v1404 = vpop.permute.xlu0 %1403
        %v1406 = vmul.f32 %v1181, %v1249
        %v1407 = vmul.f32 %v1212, %v1254
        %v1408 = vmul.f32 %v1211, %v1259
        %v1409 = vmul.f32 %v1210, %v1264
        %v1410 = vmul.f32 %v1209, %v1269
        %v1411 = vmul.f32 %v1208, %v1274
        %v1412 = vmul.f32 %v1207, %v1279
        %v1413 = vmul.f32 %v1206, %v1284
        %v1414 = vmul.f32 %v1205, %v1289
        %v1415 = vmul.f32 %v1204, %v1294
        %v1416 = vmul.f32 %v1203, %v1299
        %v1417 = vmul.f32 %v1202, %v1304
        %v1418 = vmul.f32 %v1201, %v1309
        %v1419 = vmul.f32 %v1200, %v1314
        %v1420 = vmul.f32 %v1199, %v1319
        %v1421 = vmul.f32 %v1198, %v1324
        %v1422 = vmul.f32 %v1197, %v1329
        %v1423 = vmul.f32 %v1196, %v1334
        %v1424 = vmul.f32 %v1195, %v1339
        %v1425 = vmul.f32 %v1194, %v1344
        %v1426 = vmul.f32 %v1193, %v1349
        %v1427 = vmul.f32 %v1192, %v1354
        %v1428 = vmul.f32 %v1191, %v1359
        %v1429 = vmul.f32 %v1190, %v1364
        %v1430 = vmul.f32 %v1189, %v1369
        %v1431 = vmul.f32 %v1188, %v1374
        %v1432 = vmul.f32 %v1187, %v1379
        %v1433 = vmul.f32 %v1186, %v1384
        %v1434 = vmul.f32 %v1185, %v1389
        %v1435 = vmul.f32 %v1184, %v1394
        %v1436 = vmul.f32 %v1183, %v1399
        %v1437 = vmul.f32 %v1182, %v1404
        %v1438 = vpack.c.bf16 %v1407, %v1406
        %v1439 = vpack.c.bf16 %v1409, %v1408
        %v1440 = vpack.c.bf16 %v1411, %v1410
        %v1441 = vpack.c.bf16 %v1413, %v1412
        %v1442 = vpack.c.bf16 %v1415, %v1414
        %v1443 = vpack.c.bf16 %v1417, %v1416
        %v1444 = vpack.c.bf16 %v1419, %v1418
        %v1445 = vpack.c.bf16 %v1421, %v1420
        %v1446 = vpack.c.bf16 %v1423, %v1422
        %v1447 = vpack.c.bf16 %v1425, %v1424
        %v1448 = vpack.c.bf16 %v1427, %v1426
        %v1449 = vpack.c.bf16 %v1429, %v1428
        %v1450 = vpack.c.bf16 %v1431, %v1430
        %v1451 = vpack.c.bf16 %v1433, %v1432
        %v1452 = vpack.c.bf16 %v1435, %v1434
        %v1453 = vpack.c.bf16 %v1437, %v1436
        %s1454 = scalar_lea.vmem %s2, 4
        %v1455 = vld [vmem:[%s1454] sm:$0x3]
        %v1457 = vsel %vm866, %v1438, 0
        %v1460 = vsel %vm866, %v1439, 0
        %v1463 = vsel %vm866, %v1440, 0
        %v1466 = vsel %vm866, %v1441, 0
        %v1469 = vsel %vm866, %v1442, 0
        %v1472 = vsel %vm866, %v1443, 0
        %v1475 = vsel %vm866, %v1444, 0
        %v1478 = vsel %vm866, %v1445, 0
        %v1481 = vsel %vm866, %v1446, 0
        %v1484 = vsel %vm866, %v1447, 0
        %v1487 = vsel %vm866, %v1448, 0
        %v1490 = vsel %vm866, %v1449, 0
        %v1493 = vsel %vm866, %v1450, 0
        %v1496 = vsel %vm866, %v1451, 0
        %v1499 = vsel %vm866, %v1452, 0
        %v1502 = vsel %vm866, %v1453, 0
        %v1505 = vsel %vm915, %v1455, 0
        %1507 = vmatpush.bf16.msra.mxu0 0
        %1508 = vmatpush.bf16.msra.mxu0 0
        %1509 = vmatpush.bf16.msra.mxu0 0
        %1510 = vmatpush.bf16.msra.mxu0 0
        %1511 = vmatpush.bf16.msra.mxu0 0
        %1512 = vmatpush.bf16.msra.mxu0 0
        %1513 = vmatpush.bf16.msra.mxu0 0
        %1514 = vmatpush.bf16.msra.mxu0 %v1505
        %1515 = vmatmul.bf16.gmra.mxu0 %v1457
        %v1516 = vpop.f32.mrf.mxu0
        %v1517 = vadd.f32 0.0, %v1516
        %v1518 = vpop.f32.mrf.mxu0
        %v1519 = vadd.f32 0.0, %v1518
        %1520 = vmatmul.bf16.gmra.mxu0 %v1460
        %v1521 = vpop.f32.mrf.mxu0
        %v1522 = vadd.f32 0.0, %v1521
        %v1523 = vpop.f32.mrf.mxu0
        %v1524 = vadd.f32 0.0, %v1523
        %1525 = vmatmul.bf16.gmra.mxu0 %v1463
        %v1526 = vpop.f32.mrf.mxu0
        %v1527 = vadd.f32 0.0, %v1526
        %v1528 = vpop.f32.mrf.mxu0
        %v1529 = vadd.f32 0.0, %v1528
        %1530 = vmatmul.bf16.gmra.mxu0 %v1466
        %v1531 = vpop.f32.mrf.mxu0
        %v1532 = vadd.f32 0.0, %v1531
        %v1533 = vpop.f32.mrf.mxu0
        %v1534 = vadd.f32 0.0, %v1533
        %1535 = vmatmul.bf16.gmra.mxu0 %v1469
        %v1536 = vpop.f32.mrf.mxu0
        %v1537 = vadd.f32 0.0, %v1536
        %v1538 = vpop.f32.mrf.mxu0
        %v1539 = vadd.f32 0.0, %v1538
        %1540 = vmatmul.bf16.gmra.mxu0 %v1472
        %v1541 = vpop.f32.mrf.mxu0
        %v1542 = vadd.f32 0.0, %v1541
        %v1543 = vpop.f32.mrf.mxu0
        %v1544 = vadd.f32 0.0, %v1543
        %1545 = vmatmul.bf16.gmra.mxu0 %v1475
        %v1546 = vpop.f32.mrf.mxu0
        %v1547 = vadd.f32 0.0, %v1546
        %v1548 = vpop.f32.mrf.mxu0
        %v1549 = vadd.f32 0.0, %v1548
        %1550 = vmatmul.bf16.gmra.mxu0 %v1478
        %v1551 = vpop.f32.mrf.mxu0
        %v1552 = vadd.f32 0.0, %v1551
        %v1553 = vpop.f32.mrf.mxu0
        %v1554 = vadd.f32 0.0, %v1553
        %1555 = vmatmul.bf16.gmra.mxu0 %v1481
        %v1556 = vpop.f32.mrf.mxu0
        %v1557 = vadd.f32 0.0, %v1556
        %v1558 = vpop.f32.mrf.mxu0
        %v1559 = vadd.f32 0.0, %v1558
        %1560 = vmatmul.bf16.gmra.mxu0 %v1484
        %v1561 = vpop.f32.mrf.mxu0
        %v1562 = vadd.f32 0.0, %v1561
        %v1563 = vpop.f32.mrf.mxu0
        %v1564 = vadd.f32 0.0, %v1563
        %1565 = vmatmul.bf16.gmra.mxu0 %v1487
        %v1566 = vpop.f32.mrf.mxu0
        %v1567 = vadd.f32 0.0, %v1566
        %v1568 = vpop.f32.mrf.mxu0
        %v1569 = vadd.f32 0.0, %v1568
        %1570 = vmatmul.bf16.gmra.mxu0 %v1490
        %v1571 = vpop.f32.mrf.mxu0
        %v1572 = vadd.f32 0.0, %v1571
        %v1573 = vpop.f32.mrf.mxu0
        %v1574 = vadd.f32 0.0, %v1573
        %1575 = vmatmul.bf16.gmra.mxu0 %v1493
        %v1576 = vpop.f32.mrf.mxu0
        %v1577 = vadd.f32 0.0, %v1576
        %v1578 = vpop.f32.mrf.mxu0
        %v1579 = vadd.f32 0.0, %v1578
        %1580 = vmatmul.bf16.gmra.mxu0 %v1496
        %v1581 = vpop.f32.mrf.mxu0
        %v1582 = vadd.f32 0.0, %v1581
        %v1583 = vpop.f32.mrf.mxu0
        %v1584 = vadd.f32 0.0, %v1583
        %1585 = vmatmul.bf16.gmra.mxu0 %v1499
        %v1586 = vpop.f32.mrf.mxu0
        %v1587 = vadd.f32 0.0, %v1586
        %v1588 = vpop.f32.mrf.mxu0
        %v1589 = vadd.f32 0.0, %v1588
        %1590 = vmatmul.bf16.gmra.mxu0 %v1502
        %v1591 = vpop.f32.mrf.mxu0
        %v1592 = vadd.f32 0.0, %v1591
        %v1593 = vpop.f32.mrf.mxu0
        %v1594 = vadd.f32 0.0, %v1593
        %1595 = vdwg.mxu0
        %v1596 = vadd.f32 %v1069, %v1517
        %v1597 = vadd.f32 %v1071, %v1519
        %v1598 = vadd.f32 %v1074, %v1522
        %v1599 = vadd.f32 %v1076, %v1524
        %v1600 = vadd.f32 %v1079, %v1527
        %v1601 = vadd.f32 %v1081, %v1529
        %v1602 = vadd.f32 %v1084, %v1532
        %v1603 = vadd.f32 %v1086, %v1534
        %v1604 = vadd.f32 %v1089, %v1537
        %v1605 = vadd.f32 %v1091, %v1539
        %v1606 = vadd.f32 %v1094, %v1542
        %v1607 = vadd.f32 %v1096, %v1544
        %v1608 = vadd.f32 %v1099, %v1547
        %v1609 = vadd.f32 %v1101, %v1549
        %v1610 = vadd.f32 %v1104, %v1552
        %v1611 = vadd.f32 %v1106, %v1554
        %v1612 = vadd.f32 %v1109, %v1557
        %v1613 = vadd.f32 %v1111, %v1559
        %v1614 = vadd.f32 %v1114, %v1562
        %v1615 = vadd.f32 %v1116, %v1564
        %v1616 = vadd.f32 %v1119, %v1567
        %v1617 = vadd.f32 %v1121, %v1569
        %v1618 = vadd.f32 %v1124, %v1572
        %v1619 = vadd.f32 %v1126, %v1574
        %v1620 = vadd.f32 %v1129, %v1577
        %v1621 = vadd.f32 %v1131, %v1579
        %v1622 = vadd.f32 %v1134, %v1582
        %v1623 = vadd.f32 %v1136, %v1584
        %v1624 = vadd.f32 %v1139, %v1587
        %v1625 = vadd.f32 %v1141, %v1589
        %v1626 = vadd.f32 %v1144, %v1592
        %v1627 = vadd.f32 %v1146, %v1594
        %s1628 = scalar_lea.vmem %s1, 768
        %v1629 = vld [vmem:[%s1628] sm:$0xff]
        %v1630 = vld [vmem:[%s1628 + $0x8] sm:$0xff]
        %v1631 = vld [vmem:[%s1628 + $0x10] sm:$0xff]
        %v1632 = vld [vmem:[%s1628 + $0x18] sm:$0xff]
        %v1633 = vld [vmem:[%s1628 + $0x20] sm:$0xff]
        %v1634 = vld [vmem:[%s1628 + $0x28] sm:$0xff]
        %v1635 = vld [vmem:[%s1628 + $0x30] sm:$0xff]
        %v1636 = vld [vmem:[%s1628 + $0x38] sm:$0xff]
        %v1637 = vld [vmem:[%s1628 + $0x40] sm:$0xff]
        %v1638 = vld [vmem:[%s1628 + $0x48] sm:$0xff]
        %v1639 = vld [vmem:[%s1628 + $0x50] sm:$0xff]
        %v1640 = vld [vmem:[%s1628 + $0x58] sm:$0xff]
        %v1641 = vld [vmem:[%s1628 + $0x60] sm:$0xff]
        %v1642 = vld [vmem:[%s1628 + $0x68] sm:$0xff]
        %v1643 = vld [vmem:[%s1628 + $0x70] sm:$0xff]
        %v1644 = vld [vmem:[%s1628 + $0x78] sm:$0xff]
        %v1645 = vld [vmem:[%s1628 + $0x80] sm:$0xff]
        %v1646 = vld [vmem:[%s1628 + $0x88] sm:$0xff]
        %v1647 = vld [vmem:[%s1628 + $0x90] sm:$0xff]
        %v1648 = vld [vmem:[%s1628 + $0x98] sm:$0xff]
        %v1649 = vld [vmem:[%s1628 + $0xa0] sm:$0xff]
        %v1650 = vld [vmem:[%s1628 + $0xa8] sm:$0xff]
        %v1651 = vld [vmem:[%s1628 + $0xb0] sm:$0xff]
        %v1652 = vld [vmem:[%s1628 + $0xb8] sm:$0xff]
        %v1653 = vld [vmem:[%s1628 + $0xc0] sm:$0xff]
        %v1654 = vld [vmem:[%s1628 + $0xc8] sm:$0xff]
        %v1655 = vld [vmem:[%s1628 + $0xd0] sm:$0xff]
        %v1656 = vld [vmem:[%s1628 + $0xd8] sm:$0xff]
        %v1657 = vld [vmem:[%s1628 + $0xe0] sm:$0xff]
        %v1658 = vld [vmem:[%s1628 + $0xe8] sm:$0xff]
        %v1659 = vld [vmem:[%s1628 + $0xf0] sm:$0xff]
        %v1660 = vld [vmem:[%s1628 + $0xf8] sm:$0xff]
        %1662 = vset.pattern.permute.xlu0 0
        %1663 = vperm.xlu0 %1662, %v1629
        %v1664 = vpop.permute.xlu0 %1663
        %1667 = vset.pattern.permute.xlu0 0
        %1668 = vperm.xlu0 %1667, %v1630
        %v1669 = vpop.permute.xlu0 %1668
        %1672 = vset.pattern.permute.xlu0 0
        %1673 = vperm.xlu0 %1672, %v1631
        %v1674 = vpop.permute.xlu0 %1673
        %1677 = vset.pattern.permute.xlu0 0
        %1678 = vperm.xlu0 %1677, %v1632
        %v1679 = vpop.permute.xlu0 %1678
        %1682 = vset.pattern.permute.xlu0 0
        %1683 = vperm.xlu0 %1682, %v1633
        %v1684 = vpop.permute.xlu0 %1683
        %1687 = vset.pattern.permute.xlu0 0
        %1688 = vperm.xlu0 %1687, %v1634
        %v1689 = vpop.permute.xlu0 %1688
        %1692 = vset.pattern.permute.xlu0 0
        %1693 = vperm.xlu0 %1692, %v1635
        %v1694 = vpop.permute.xlu0 %1693
        %1697 = vset.pattern.permute.xlu0 0
        %1698 = vperm.xlu0 %1697, %v1636
        %v1699 = vpop.permute.xlu0 %1698
        %1702 = vset.pattern.permute.xlu0 0
        %1703 = vperm.xlu0 %1702, %v1637
        %v1704 = vpop.permute.xlu0 %1703
        %1707 = vset.pattern.permute.xlu0 0
        %1708 = vperm.xlu0 %1707, %v1638
        %v1709 = vpop.permute.xlu0 %1708
        %1712 = vset.pattern.permute.xlu0 0
        %1713 = vperm.xlu0 %1712, %v1639
        %v1714 = vpop.permute.xlu0 %1713
        %1717 = vset.pattern.permute.xlu0 0
        %1718 = vperm.xlu0 %1717, %v1640
        %v1719 = vpop.permute.xlu0 %1718
        %1722 = vset.pattern.permute.xlu0 0
        %1723 = vperm.xlu0 %1722, %v1641
        %v1724 = vpop.permute.xlu0 %1723
        %1727 = vset.pattern.permute.xlu0 0
        %1728 = vperm.xlu0 %1727, %v1642
        %v1729 = vpop.permute.xlu0 %1728
        %1732 = vset.pattern.permute.xlu0 0
        %1733 = vperm.xlu0 %1732, %v1643
        %v1734 = vpop.permute.xlu0 %1733
        %1737 = vset.pattern.permute.xlu0 0
        %1738 = vperm.xlu0 %1737, %v1644
        %v1739 = vpop.permute.xlu0 %1738
        %1742 = vset.pattern.permute.xlu0 0
        %1743 = vperm.xlu0 %1742, %v1645
        %v1744 = vpop.permute.xlu0 %1743
        %1747 = vset.pattern.permute.xlu0 0
        %1748 = vperm.xlu0 %1747, %v1646
        %v1749 = vpop.permute.xlu0 %1748
        %1752 = vset.pattern.permute.xlu0 0
        %1753 = vperm.xlu0 %1752, %v1647
        %v1754 = vpop.permute.xlu0 %1753
        %1757 = vset.pattern.permute.xlu0 0
        %1758 = vperm.xlu0 %1757, %v1648
        %v1759 = vpop.permute.xlu0 %1758
        %1762 = vset.pattern.permute.xlu0 0
        %1763 = vperm.xlu0 %1762, %v1649
        %v1764 = vpop.permute.xlu0 %1763
        %1767 = vset.pattern.permute.xlu0 0
        %1768 = vperm.xlu0 %1767, %v1650
        %v1769 = vpop.permute.xlu0 %1768
        %1772 = vset.pattern.permute.xlu0 0
        %1773 = vperm.xlu0 %1772, %v1651
        %v1774 = vpop.permute.xlu0 %1773
        %1777 = vset.pattern.permute.xlu0 0
        %1778 = vperm.xlu0 %1777, %v1652
        %v1779 = vpop.permute.xlu0 %1778
        %1782 = vset.pattern.permute.xlu0 0
        %1783 = vperm.xlu0 %1782, %v1653
        %v1784 = vpop.permute.xlu0 %1783
        %1787 = vset.pattern.permute.xlu0 0
        %1788 = vperm.xlu0 %1787, %v1654
        %v1789 = vpop.permute.xlu0 %1788
        %1792 = vset.pattern.permute.xlu0 0
        %1793 = vperm.xlu0 %1792, %v1655
        %v1794 = vpop.permute.xlu0 %1793
        %1797 = vset.pattern.permute.xlu0 0
        %1798 = vperm.xlu0 %1797, %v1656
        %v1799 = vpop.permute.xlu0 %1798
        %1802 = vset.pattern.permute.xlu0 0
        %1803 = vperm.xlu0 %1802, %v1657
        %v1804 = vpop.permute.xlu0 %1803
        %1807 = vset.pattern.permute.xlu0 0
        %1808 = vperm.xlu0 %1807, %v1658
        %v1809 = vpop.permute.xlu0 %1808
        %1812 = vset.pattern.permute.xlu0 0
        %1813 = vperm.xlu0 %1812, %v1659
        %v1814 = vpop.permute.xlu0 %1813
        %1817 = vset.pattern.permute.xlu0 0
        %1818 = vperm.xlu0 %1817, %v1660
        %v1819 = vpop.permute.xlu0 %1818
        %v1821 = vmul.f32 %v381, %v1664
        %v1822 = vmul.f32 %v380, %v1669
        %v1823 = vmul.f32 %v379, %v1674
        %v1824 = vmul.f32 %v378, %v1679
        %v1825 = vmul.f32 %v377, %v1684
        %v1826 = vmul.f32 %v376, %v1689
        %v1827 = vmul.f32 %v375, %v1694
        %v1828 = vmul.f32 %v374, %v1699
        %v1829 = vmul.f32 %v373, %v1704
        %v1830 = vmul.f32 %v372, %v1709
        %v1831 = vmul.f32 %v371, %v1714
        %v1832 = vmul.f32 %v370, %v1719
        %v1833 = vmul.f32 %v369, %v1724
        %v1834 = vmul.f32 %v368, %v1729
        %v1835 = vmul.f32 %v367, %v1734
        %v1836 = vmul.f32 %v366, %v1739
        %v1837 = vmul.f32 %v365, %v1744
        %v1838 = vmul.f32 %v364, %v1749
        %v1839 = vmul.f32 %v363, %v1754
        %v1840 = vmul.f32 %v362, %v1759
        %v1841 = vmul.f32 %v361, %v1764
        %v1842 = vmul.f32 %v360, %v1769
        %v1843 = vmul.f32 %v359, %v1774
        %v1844 = vmul.f32 %v358, %v1779
        %v1845 = vmul.f32 %v357, %v1784
        %v1846 = vmul.f32 %v356, %v1789
        %v1847 = vmul.f32 %v355, %v1794
        %v1848 = vmul.f32 %v354, %v1799
        %v1849 = vmul.f32 %v353, %v1804
        %v1850 = vmul.f32 %v352, %v1809
        %v1851 = vmul.f32 %v351, %v1814
        %v1852 = vmul.f32 %v350, %v1819
        %v1853 = vpack.c.bf16 %v1822, %v1821
        %v1854 = vpack.c.bf16 %v1824, %v1823
        %v1855 = vpack.c.bf16 %v1826, %v1825
        %v1856 = vpack.c.bf16 %v1828, %v1827
        %v1857 = vpack.c.bf16 %v1830, %v1829
        %v1858 = vpack.c.bf16 %v1832, %v1831
        %v1859 = vpack.c.bf16 %v1834, %v1833
        %v1860 = vpack.c.bf16 %v1836, %v1835
        %v1861 = vpack.c.bf16 %v1838, %v1837
        %v1862 = vpack.c.bf16 %v1840, %v1839
        %v1863 = vpack.c.bf16 %v1842, %v1841
        %v1864 = vpack.c.bf16 %v1844, %v1843
        %v1865 = vpack.c.bf16 %v1846, %v1845
        %v1866 = vpack.c.bf16 %v1848, %v1847
        %v1867 = vpack.c.bf16 %v1850, %v1849
        %v1868 = vpack.c.bf16 %v1852, %v1851
        %s1869 = scalar_lea.vmem %s2, 6
        %v1870 = vld [vmem:[%s1869] sm:$0x3]
        %v1872 = vsel %vm866, %v1853, 0
        %v1875 = vsel %vm866, %v1854, 0
        %v1878 = vsel %vm866, %v1855, 0
        %v1881 = vsel %vm866, %v1856, 0
        %v1884 = vsel %vm866, %v1857, 0
        %v1887 = vsel %vm866, %v1858, 0
        %v1890 = vsel %vm866, %v1859, 0
        %v1893 = vsel %vm866, %v1860, 0
        %v1896 = vsel %vm866, %v1861, 0
        %v1899 = vsel %vm866, %v1862, 0
        %v1902 = vsel %vm866, %v1863, 0
        %v1905 = vsel %vm866, %v1864, 0
        %v1908 = vsel %vm866, %v1865, 0
        %v1911 = vsel %vm866, %v1866, 0
        %v1914 = vsel %vm866, %v1867, 0
        %v1917 = vsel %vm866, %v1868, 0
        %v1920 = vsel %vm915, %v1870, 0
        %1922 = vmatpush.bf16.msra.mxu0 0
        %1923 = vmatpush.bf16.msra.mxu0 0
        %1924 = vmatpush.bf16.msra.mxu0 0
        %1925 = vmatpush.bf16.msra.mxu0 0
        %1926 = vmatpush.bf16.msra.mxu0 0
        %1927 = vmatpush.bf16.msra.mxu0 0
        %1928 = vmatpush.bf16.msra.mxu0 0
        %1929 = vmatpush.bf16.msra.mxu0 %v1920
        %1930 = vmatmul.bf16.gmra.mxu0 %v1872
        %v1931 = vpop.f32.mrf.mxu0
        %v1932 = vadd.f32 0.0, %v1931
        %v1933 = vpop.f32.mrf.mxu0
        %v1934 = vadd.f32 0.0, %v1933
        %1935 = vmatmul.bf16.gmra.mxu0 %v1875
        %v1936 = vpop.f32.mrf.mxu0
        %v1937 = vadd.f32 0.0, %v1936
        %v1938 = vpop.f32.mrf.mxu0
        %v1939 = vadd.f32 0.0, %v1938
        %1940 = vmatmul.bf16.gmra.mxu0 %v1878
        %v1941 = vpop.f32.mrf.mxu0
        %v1942 = vadd.f32 0.0, %v1941
        %v1943 = vpop.f32.mrf.mxu0
        %v1944 = vadd.f32 0.0, %v1943
        %1945 = vmatmul.bf16.gmra.mxu0 %v1881
        %v1946 = vpop.f32.mrf.mxu0
        %v1947 = vadd.f32 0.0, %v1946
        %v1948 = vpop.f32.mrf.mxu0
        %v1949 = vadd.f32 0.0, %v1948
        %1950 = vmatmul.bf16.gmra.mxu0 %v1884
        %v1951 = vpop.f32.mrf.mxu0
        %v1952 = vadd.f32 0.0, %v1951
        %v1953 = vpop.f32.mrf.mxu0
        %v1954 = vadd.f32 0.0, %v1953
        %1955 = vmatmul.bf16.gmra.mxu0 %v1887
        %v1956 = vpop.f32.mrf.mxu0
        %v1957 = vadd.f32 0.0, %v1956
        %v1958 = vpop.f32.mrf.mxu0
        %v1959 = vadd.f32 0.0, %v1958
        %1960 = vmatmul.bf16.gmra.mxu0 %v1890
        %v1961 = vpop.f32.mrf.mxu0
        %v1962 = vadd.f32 0.0, %v1961
        %v1963 = vpop.f32.mrf.mxu0
        %v1964 = vadd.f32 0.0, %v1963
        %1965 = vmatmul.bf16.gmra.mxu0 %v1893
        %v1966 = vpop.f32.mrf.mxu0
        %v1967 = vadd.f32 0.0, %v1966
        %v1968 = vpop.f32.mrf.mxu0
        %v1969 = vadd.f32 0.0, %v1968
        %1970 = vmatmul.bf16.gmra.mxu0 %v1896
        %v1971 = vpop.f32.mrf.mxu0
        %v1972 = vadd.f32 0.0, %v1971
        %v1973 = vpop.f32.mrf.mxu0
        %v1974 = vadd.f32 0.0, %v1973
        %1975 = vmatmul.bf16.gmra.mxu0 %v1899
        %v1976 = vpop.f32.mrf.mxu0
        %v1977 = vadd.f32 0.0, %v1976
        %v1978 = vpop.f32.mrf.mxu0
        %v1979 = vadd.f32 0.0, %v1978
        %1980 = vmatmul.bf16.gmra.mxu0 %v1902
        %v1981 = vpop.f32.mrf.mxu0
        %v1982 = vadd.f32 0.0, %v1981
        %v1983 = vpop.f32.mrf.mxu0
        %v1984 = vadd.f32 0.0, %v1983
        %1985 = vmatmul.bf16.gmra.mxu0 %v1905
        %v1986 = vpop.f32.mrf.mxu0
        %v1987 = vadd.f32 0.0, %v1986
        %v1988 = vpop.f32.mrf.mxu0
        %v1989 = vadd.f32 0.0, %v1988
        %1990 = vmatmul.bf16.gmra.mxu0 %v1908
        %v1991 = vpop.f32.mrf.mxu0
        %v1992 = vadd.f32 0.0, %v1991
        %v1993 = vpop.f32.mrf.mxu0
        %v1994 = vadd.f32 0.0, %v1993
        %1995 = vmatmul.bf16.gmra.mxu0 %v1911
        %v1996 = vpop.f32.mrf.mxu0
        %v1997 = vadd.f32 0.0, %v1996
        %v1998 = vpop.f32.mrf.mxu0
        %v1999 = vadd.f32 0.0, %v1998
        %2000 = vmatmul.bf16.gmra.mxu0 %v1914
        %v2001 = vpop.f32.mrf.mxu0
        %v2002 = vadd.f32 0.0, %v2001
        %v2003 = vpop.f32.mrf.mxu0
        %v2004 = vadd.f32 0.0, %v2003
        %2005 = vmatmul.bf16.gmra.mxu0 %v1917
        %v2006 = vpop.f32.mrf.mxu0
        %v2007 = vadd.f32 0.0, %v2006
        %v2008 = vpop.f32.mrf.mxu0
        %v2009 = vadd.f32 0.0, %v2008
        %2010 = vdwg.mxu0
        %v2011 = vadd.f32 %v1596, %v1932
        %v2012 = vadd.f32 %v1597, %v1934
        %v2013 = vadd.f32 %v1598, %v1937
        %v2014 = vadd.f32 %v1599, %v1939
        %v2015 = vadd.f32 %v1600, %v1942
        %v2016 = vadd.f32 %v1601, %v1944
        %v2017 = vadd.f32 %v1602, %v1947
        %v2018 = vadd.f32 %v1603, %v1949
        %v2019 = vadd.f32 %v1604, %v1952
        %v2020 = vadd.f32 %v1605, %v1954
        %v2021 = vadd.f32 %v1606, %v1957
        %v2022 = vadd.f32 %v1607, %v1959
        %v2023 = vadd.f32 %v1608, %v1962
        %v2024 = vadd.f32 %v1609, %v1964
        %v2025 = vadd.f32 %v1610, %v1967
        %v2026 = vadd.f32 %v1611, %v1969
        %v2027 = vadd.f32 %v1612, %v1972
        %v2028 = vadd.f32 %v1613, %v1974
        %v2029 = vadd.f32 %v1614, %v1977
        %v2030 = vadd.f32 %v1615, %v1979
        %v2031 = vadd.f32 %v1616, %v1982
        %v2032 = vadd.f32 %v1617, %v1984
        %v2033 = vadd.f32 %v1618, %v1987
        %v2034 = vadd.f32 %v1619, %v1989
        %v2035 = vadd.f32 %v1620, %v1992
        %v2036 = vadd.f32 %v1621, %v1994
        %v2037 = vadd.f32 %v1622, %v1997
        %v2038 = vadd.f32 %v1623, %v1999
        %v2039 = vadd.f32 %v1624, %v2002
        %v2040 = vadd.f32 %v1625, %v2004
        %v2041 = vadd.f32 %v1626, %v2007
        %v2042 = vadd.f32 %v1627, %v2009
        %v2043 = vpack.c.bf16 %v284, %v283
        %v2044 = vpack.c.bf16 %v286, %v285
        %v2045 = vpack.c.bf16 %v288, %v287
        %v2046 = vpack.c.bf16 %v290, %v289
        %v2047 = vpack.c.bf16 %v292, %v291
        %v2048 = vpack.c.bf16 %v294, %v293
        %v2049 = vpack.c.bf16 %v296, %v295
        %v2050 = vpack.c.bf16 %v298, %v297
        %v2051 = vpack.c.bf16 %v300, %v299
        %v2052 = vpack.c.bf16 %v302, %v301
        %v2053 = vpack.c.bf16 %v304, %v303
        %v2054 = vpack.c.bf16 %v306, %v305
        %v2055 = vpack.c.bf16 %v308, %v307
        %v2056 = vpack.c.bf16 %v310, %v309
        %v2057 = vpack.c.bf16 %v312, %v311
        %v2058 = vpack.c.bf16 %v314, %v313
        %s2059 = scalar_lea.vmem %s2, 8
        %v2060 = vld [vmem:[%s2059] sm:$0x3]
        %v2062 = vsel %vm866, %v2043, 0
        %v2065 = vsel %vm866, %v2044, 0
        %v2068 = vsel %vm866, %v2045, 0
        %v2071 = vsel %vm866, %v2046, 0
        %v2074 = vsel %vm866, %v2047, 0
        %v2077 = vsel %vm866, %v2048, 0
        %v2080 = vsel %vm866, %v2049, 0
        %v2083 = vsel %vm866, %v2050, 0
        %v2086 = vsel %vm866, %v2051, 0
        %v2089 = vsel %vm866, %v2052, 0
        %v2092 = vsel %vm866, %v2053, 0
        %v2095 = vsel %vm866, %v2054, 0
        %v2098 = vsel %vm866, %v2055, 0
        %v2101 = vsel %vm866, %v2056, 0
        %v2104 = vsel %vm866, %v2057, 0
        %v2107 = vsel %vm866, %v2058, 0
        %v2110 = vsel %vm915, %v2060, 0
        %2112 = vmatpush.bf16.msra.mxu0 0
        %2113 = vmatpush.bf16.msra.mxu0 0
        %2114 = vmatpush.bf16.msra.mxu0 0
        %2115 = vmatpush.bf16.msra.mxu0 0
        %2116 = vmatpush.bf16.msra.mxu0 0
        %2117 = vmatpush.bf16.msra.mxu0 0
        %2118 = vmatpush.bf16.msra.mxu0 0
        %2119 = vmatpush.bf16.msra.mxu0 %v2110
        %2120 = vmatmul.bf16.gmra.mxu0 %v2062
        %v2121 = vpop.f32.mrf.mxu0
        %v2122 = vadd.f32 0.0, %v2121
        %v2123 = vpop.f32.mrf.mxu0
        %v2124 = vadd.f32 0.0, %v2123
        %2125 = vmatmul.bf16.gmra.mxu0 %v2065
        %v2126 = vpop.f32.mrf.mxu0
        %v2127 = vadd.f32 0.0, %v2126
        %v2128 = vpop.f32.mrf.mxu0
        %v2129 = vadd.f32 0.0, %v2128
        %2130 = vmatmul.bf16.gmra.mxu0 %v2068
        %v2131 = vpop.f32.mrf.mxu0
        %v2132 = vadd.f32 0.0, %v2131
        %v2133 = vpop.f32.mrf.mxu0
        %v2134 = vadd.f32 0.0, %v2133
        %2135 = vmatmul.bf16.gmra.mxu0 %v2071
        %v2136 = vpop.f32.mrf.mxu0
        %v2137 = vadd.f32 0.0, %v2136
        %v2138 = vpop.f32.mrf.mxu0
        %v2139 = vadd.f32 0.0, %v2138
        %2140 = vmatmul.bf16.gmra.mxu0 %v2074
        %v2141 = vpop.f32.mrf.mxu0
        %v2142 = vadd.f32 0.0, %v2141
        %v2143 = vpop.f32.mrf.mxu0
        %v2144 = vadd.f32 0.0, %v2143
        %2145 = vmatmul.bf16.gmra.mxu0 %v2077
        %v2146 = vpop.f32.mrf.mxu0
        %v2147 = vadd.f32 0.0, %v2146
        %v2148 = vpop.f32.mrf.mxu0
        %v2149 = vadd.f32 0.0, %v2148
        %2150 = vmatmul.bf16.gmra.mxu0 %v2080
        %v2151 = vpop.f32.mrf.mxu0
        %v2152 = vadd.f32 0.0, %v2151
        %v2153 = vpop.f32.mrf.mxu0
        %v2154 = vadd.f32 0.0, %v2153
        %2155 = vmatmul.bf16.gmra.mxu0 %v2083
        %v2156 = vpop.f32.mrf.mxu0
        %v2157 = vadd.f32 0.0, %v2156
        %v2158 = vpop.f32.mrf.mxu0
        %v2159 = vadd.f32 0.0, %v2158
        %2160 = vmatmul.bf16.gmra.mxu0 %v2086
        %v2161 = vpop.f32.mrf.mxu0
        %v2162 = vadd.f32 0.0, %v2161
        %v2163 = vpop.f32.mrf.mxu0
        %v2164 = vadd.f32 0.0, %v2163
        %2165 = vmatmul.bf16.gmra.mxu0 %v2089
        %v2166 = vpop.f32.mrf.mxu0
        %v2167 = vadd.f32 0.0, %v2166
        %v2168 = vpop.f32.mrf.mxu0
        %v2169 = vadd.f32 0.0, %v2168
        %2170 = vmatmul.bf16.gmra.mxu0 %v2092
        %v2171 = vpop.f32.mrf.mxu0
        %v2172 = vadd.f32 0.0, %v2171
        %v2173 = vpop.f32.mrf.mxu0
        %v2174 = vadd.f32 0.0, %v2173
        %2175 = vmatmul.bf16.gmra.mxu0 %v2095
        %v2176 = vpop.f32.mrf.mxu0
        %v2177 = vadd.f32 0.0, %v2176
        %v2178 = vpop.f32.mrf.mxu0
        %v2179 = vadd.f32 0.0, %v2178
        %2180 = vmatmul.bf16.gmra.mxu0 %v2098
        %v2181 = vpop.f32.mrf.mxu0
        %v2182 = vadd.f32 0.0, %v2181
        %v2183 = vpop.f32.mrf.mxu0
        %v2184 = vadd.f32 0.0, %v2183
        %2185 = vmatmul.bf16.gmra.mxu0 %v2101
        %v2186 = vpop.f32.mrf.mxu0
        %v2187 = vadd.f32 0.0, %v2186
        %v2188 = vpop.f32.mrf.mxu0
        %v2189 = vadd.f32 0.0, %v2188
        %2190 = vmatmul.bf16.gmra.mxu0 %v2104
        %v2191 = vpop.f32.mrf.mxu0
        %v2192 = vadd.f32 0.0, %v2191
        %v2193 = vpop.f32.mrf.mxu0
        %v2194 = vadd.f32 0.0, %v2193
        %2195 = vmatmul.bf16.gmra.mxu0 %v2107
        %v2196 = vpop.f32.mrf.mxu0
        %v2197 = vadd.f32 0.0, %v2196
        %v2198 = vpop.f32.mrf.mxu0
        %v2199 = vadd.f32 0.0, %v2198
        %2200 = vdwg.mxu0
        %v2201 = vadd.f32 %v2011, %v2122
        %v2202 = vadd.f32 %v2012, %v2124
        %v2203 = vadd.f32 %v2013, %v2127
        %v2204 = vadd.f32 %v2014, %v2129
        %v2205 = vadd.f32 %v2015, %v2132
        %v2206 = vadd.f32 %v2016, %v2134
        %v2207 = vadd.f32 %v2017, %v2137
        %v2208 = vadd.f32 %v2018, %v2139
        %v2209 = vadd.f32 %v2019, %v2142
        %v2210 = vadd.f32 %v2020, %v2144
        %v2211 = vadd.f32 %v2021, %v2147
        %v2212 = vadd.f32 %v2022, %v2149
        %v2213 = vadd.f32 %v2023, %v2152
        %v2214 = vadd.f32 %v2024, %v2154
        %v2215 = vadd.f32 %v2025, %v2157
        %v2216 = vadd.f32 %v2026, %v2159
        %v2217 = vadd.f32 %v2027, %v2162
        %v2218 = vadd.f32 %v2028, %v2164
        %v2219 = vadd.f32 %v2029, %v2167
        %v2220 = vadd.f32 %v2030, %v2169
        %v2221 = vadd.f32 %v2031, %v2172
        %v2222 = vadd.f32 %v2032, %v2174
        %v2223 = vadd.f32 %v2033, %v2177
        %v2224 = vadd.f32 %v2034, %v2179
        %v2225 = vadd.f32 %v2035, %v2182
        %v2226 = vadd.f32 %v2036, %v2184
        %v2227 = vadd.f32 %v2037, %v2187
        %v2228 = vadd.f32 %v2038, %v2189
        %v2229 = vadd.f32 %v2039, %v2192
        %v2230 = vadd.f32 %v2040, %v2194
        %v2231 = vadd.f32 %v2041, %v2197
        %v2232 = vadd.f32 %v2042, %v2199
        %s2233 = scalar_lea.vmem %s1, 1280
        %v2234 = vld [vmem:[%s2233] sm:$0xff]
        %v2235 = vld [vmem:[%s2233 + $0x8] sm:$0xff]
        %v2236 = vld [vmem:[%s2233 + $0x10] sm:$0xff]
        %v2237 = vld [vmem:[%s2233 + $0x18] sm:$0xff]
        %v2238 = vld [vmem:[%s2233 + $0x20] sm:$0xff]
        %v2239 = vld [vmem:[%s2233 + $0x28] sm:$0xff]
        %v2240 = vld [vmem:[%s2233 + $0x30] sm:$0xff]
        %v2241 = vld [vmem:[%s2233 + $0x38] sm:$0xff]
        %v2242 = vld [vmem:[%s2233 + $0x40] sm:$0xff]
        %v2243 = vld [vmem:[%s2233 + $0x48] sm:$0xff]
        %v2244 = vld [vmem:[%s2233 + $0x50] sm:$0xff]
        %v2245 = vld [vmem:[%s2233 + $0x58] sm:$0xff]
        %v2246 = vld [vmem:[%s2233 + $0x60] sm:$0xff]
        %v2247 = vld [vmem:[%s2233 + $0x68] sm:$0xff]
        %v2248 = vld [vmem:[%s2233 + $0x70] sm:$0xff]
        %v2249 = vld [vmem:[%s2233 + $0x78] sm:$0xff]
        %v2250 = vld [vmem:[%s2233 + $0x80] sm:$0xff]
        %v2251 = vld [vmem:[%s2233 + $0x88] sm:$0xff]
        %v2252 = vld [vmem:[%s2233 + $0x90] sm:$0xff]
        %v2253 = vld [vmem:[%s2233 + $0x98] sm:$0xff]
        %v2254 = vld [vmem:[%s2233 + $0xa0] sm:$0xff]
        %v2255 = vld [vmem:[%s2233 + $0xa8] sm:$0xff]
        %v2256 = vld [vmem:[%s2233 + $0xb0] sm:$0xff]
        %v2257 = vld [vmem:[%s2233 + $0xb8] sm:$0xff]
        %v2258 = vld [vmem:[%s2233 + $0xc0] sm:$0xff]
        %v2259 = vld [vmem:[%s2233 + $0xc8] sm:$0xff]
        %v2260 = vld [vmem:[%s2233 + $0xd0] sm:$0xff]
        %v2261 = vld [vmem:[%s2233 + $0xd8] sm:$0xff]
        %v2262 = vld [vmem:[%s2233 + $0xe0] sm:$0xff]
        %v2263 = vld [vmem:[%s2233 + $0xe8] sm:$0xff]
        %v2264 = vld [vmem:[%s2233 + $0xf0] sm:$0xff]
        %v2265 = vld [vmem:[%s2233 + $0xf8] sm:$0xff]
        %2267 = vset.pattern.permute.xlu0 0
        %2268 = vperm.xlu0 %2267, %v2234
        %v2269 = vpop.permute.xlu0 %2268
        %2272 = vset.pattern.permute.xlu0 0
        %2273 = vperm.xlu0 %2272, %v2235
        %v2274 = vpop.permute.xlu0 %2273
        %2277 = vset.pattern.permute.xlu0 0
        %2278 = vperm.xlu0 %2277, %v2236
        %v2279 = vpop.permute.xlu0 %2278
        %2282 = vset.pattern.permute.xlu0 0
        %2283 = vperm.xlu0 %2282, %v2237
        %v2284 = vpop.permute.xlu0 %2283
        %2287 = vset.pattern.permute.xlu0 0
        %2288 = vperm.xlu0 %2287, %v2238
        %v2289 = vpop.permute.xlu0 %2288
        %2292 = vset.pattern.permute.xlu0 0
        %2293 = vperm.xlu0 %2292, %v2239
        %v2294 = vpop.permute.xlu0 %2293
        %2297 = vset.pattern.permute.xlu0 0
        %2298 = vperm.xlu0 %2297, %v2240
        %v2299 = vpop.permute.xlu0 %2298
        %2302 = vset.pattern.permute.xlu0 0
        %2303 = vperm.xlu0 %2302, %v2241
        %v2304 = vpop.permute.xlu0 %2303
        %2307 = vset.pattern.permute.xlu0 0
        %2308 = vperm.xlu0 %2307, %v2242
        %v2309 = vpop.permute.xlu0 %2308
        %2312 = vset.pattern.permute.xlu0 0
        %2313 = vperm.xlu0 %2312, %v2243
        %v2314 = vpop.permute.xlu0 %2313
        %2317 = vset.pattern.permute.xlu0 0
        %2318 = vperm.xlu0 %2317, %v2244
        %v2319 = vpop.permute.xlu0 %2318
        %2322 = vset.pattern.permute.xlu0 0
        %2323 = vperm.xlu0 %2322, %v2245
        %v2324 = vpop.permute.xlu0 %2323
        %2327 = vset.pattern.permute.xlu0 0
        %2328 = vperm.xlu0 %2327, %v2246
        %v2329 = vpop.permute.xlu0 %2328
        %2332 = vset.pattern.permute.xlu0 0
        %2333 = vperm.xlu0 %2332, %v2247
        %v2334 = vpop.permute.xlu0 %2333
        %2337 = vset.pattern.permute.xlu0 0
        %2338 = vperm.xlu0 %2337, %v2248
        %v2339 = vpop.permute.xlu0 %2338
        %2342 = vset.pattern.permute.xlu0 0
        %2343 = vperm.xlu0 %2342, %v2249
        %v2344 = vpop.permute.xlu0 %2343
        %2347 = vset.pattern.permute.xlu0 0
        %2348 = vperm.xlu0 %2347, %v2250
        %v2349 = vpop.permute.xlu0 %2348
        %2352 = vset.pattern.permute.xlu0 0
        %2353 = vperm.xlu0 %2352, %v2251
        %v2354 = vpop.permute.xlu0 %2353
        %2357 = vset.pattern.permute.xlu0 0
        %2358 = vperm.xlu0 %2357, %v2252
        %v2359 = vpop.permute.xlu0 %2358
        %2362 = vset.pattern.permute.xlu0 0
        %2363 = vperm.xlu0 %2362, %v2253
        %v2364 = vpop.permute.xlu0 %2363
        %2367 = vset.pattern.permute.xlu0 0
        %2368 = vperm.xlu0 %2367, %v2254
        %v2369 = vpop.permute.xlu0 %2368
        %2372 = vset.pattern.permute.xlu0 0
        %2373 = vperm.xlu0 %2372, %v2255
        %v2374 = vpop.permute.xlu0 %2373
        %2377 = vset.pattern.permute.xlu0 0
        %2378 = vperm.xlu0 %2377, %v2256
        %v2379 = vpop.permute.xlu0 %2378
        %2382 = vset.pattern.permute.xlu0 0
        %2383 = vperm.xlu0 %2382, %v2257
        %v2384 = vpop.permute.xlu0 %2383
        %2387 = vset.pattern.permute.xlu0 0
        %2388 = vperm.xlu0 %2387, %v2258
        %v2389 = vpop.permute.xlu0 %2388
        %2392 = vset.pattern.permute.xlu0 0
        %2393 = vperm.xlu0 %2392, %v2259
        %v2394 = vpop.permute.xlu0 %2393
        %2397 = vset.pattern.permute.xlu0 0
        %2398 = vperm.xlu0 %2397, %v2260
        %v2399 = vpop.permute.xlu0 %2398
        %2402 = vset.pattern.permute.xlu0 0
        %2403 = vperm.xlu0 %2402, %v2261
        %v2404 = vpop.permute.xlu0 %2403
        %2407 = vset.pattern.permute.xlu0 0
        %2408 = vperm.xlu0 %2407, %v2262
        %v2409 = vpop.permute.xlu0 %2408
        %2412 = vset.pattern.permute.xlu0 0
        %2413 = vperm.xlu0 %2412, %v2263
        %v2414 = vpop.permute.xlu0 %2413
        %2417 = vset.pattern.permute.xlu0 0
        %2418 = vperm.xlu0 %2417, %v2264
        %v2419 = vpop.permute.xlu0 %2418
        %2422 = vset.pattern.permute.xlu0 0
        %2423 = vperm.xlu0 %2422, %v2265
        %v2424 = vpop.permute.xlu0 %2423
        %v2426 = vmul.f32 %v1211, %v2269
        %v2427 = vmul.f32 %v1210, %v2274
        %v2428 = vmul.f32 %v1209, %v2279
        %v2429 = vmul.f32 %v1208, %v2284
        %v2430 = vmul.f32 %v1207, %v2289
        %v2431 = vmul.f32 %v1206, %v2294
        %v2432 = vmul.f32 %v1205, %v2299
        %v2433 = vmul.f32 %v1204, %v2304
        %v2434 = vmul.f32 %v1203, %v2309
        %v2435 = vmul.f32 %v1202, %v2314
        %v2436 = vmul.f32 %v1201, %v2319
        %v2437 = vmul.f32 %v1200, %v2324
        %v2438 = vmul.f32 %v1199, %v2329
        %v2439 = vmul.f32 %v1198, %v2334
        %v2440 = vmul.f32 %v1197, %v2339
        %v2441 = vmul.f32 %v1196, %v2344
        %v2442 = vmul.f32 %v1195, %v2349
        %v2443 = vmul.f32 %v1194, %v2354
        %v2444 = vmul.f32 %v1193, %v2359
        %v2445 = vmul.f32 %v1192, %v2364
        %v2446 = vmul.f32 %v1191, %v2369
        %v2447 = vmul.f32 %v1190, %v2374
        %v2448 = vmul.f32 %v1189, %v2379
        %v2449 = vmul.f32 %v1188, %v2384
        %v2450 = vmul.f32 %v1187, %v2389
        %v2451 = vmul.f32 %v1186, %v2394
        %v2452 = vmul.f32 %v1185, %v2399
        %v2453 = vmul.f32 %v1184, %v2404
        %v2454 = vmul.f32 %v1183, %v2409
        %v2455 = vmul.f32 %v1182, %v2414
        %v2456 = vmul.f32 %v1181, %v2419
        %v2457 = vmul.f32 %v1212, %v2424
        %v2458 = vpack.c.bf16 %v2427, %v2426
        %v2459 = vpack.c.bf16 %v2429, %v2428
        %v2460 = vpack.c.bf16 %v2431, %v2430
        %v2461 = vpack.c.bf16 %v2433, %v2432
        %v2462 = vpack.c.bf16 %v2435, %v2434
        %v2463 = vpack.c.bf16 %v2437, %v2436
        %v2464 = vpack.c.bf16 %v2439, %v2438
        %v2465 = vpack.c.bf16 %v2441, %v2440
        %v2466 = vpack.c.bf16 %v2443, %v2442
        %v2467 = vpack.c.bf16 %v2445, %v2444
        %v2468 = vpack.c.bf16 %v2447, %v2446
        %v2469 = vpack.c.bf16 %v2449, %v2448
        %v2470 = vpack.c.bf16 %v2451, %v2450
        %v2471 = vpack.c.bf16 %v2453, %v2452
        %v2472 = vpack.c.bf16 %v2455, %v2454
        %v2473 = vpack.c.bf16 %v2457, %v2456
        %s2474 = scalar_lea.vmem %s2, 10
        %v2475 = vld [vmem:[%s2474] sm:$0x3]
        %v2477 = vsel %vm866, %v2458, 0
        %v2480 = vsel %vm866, %v2459, 0
        %v2483 = vsel %vm866, %v2460, 0
        %v2486 = vsel %vm866, %v2461, 0
        %v2489 = vsel %vm866, %v2462, 0
        %v2492 = vsel %vm866, %v2463, 0
        %v2495 = vsel %vm866, %v2464, 0
        %v2498 = vsel %vm866, %v2465, 0
        %v2501 = vsel %vm866, %v2466, 0
        %v2504 = vsel %vm866, %v2467, 0
        %v2507 = vsel %vm866, %v2468, 0
        %v2510 = vsel %vm866, %v2469, 0
        %v2513 = vsel %vm866, %v2470, 0
        %v2516 = vsel %vm866, %v2471, 0
        %v2519 = vsel %vm866, %v2472, 0
        %v2522 = vsel %vm866, %v2473, 0
        %v2525 = vsel %vm915, %v2475, 0
        %2527 = vmatpush.bf16.msra.mxu0 0
        %2528 = vmatpush.bf16.msra.mxu0 0
        %2529 = vmatpush.bf16.msra.mxu0 0
        %2530 = vmatpush.bf16.msra.mxu0 0
        %2531 = vmatpush.bf16.msra.mxu0 0
        %2532 = vmatpush.bf16.msra.mxu0 0
        %2533 = vmatpush.bf16.msra.mxu0 0
        %2534 = vmatpush.bf16.msra.mxu0 %v2525
        %2535 = vmatmul.bf16.gmra.mxu0 %v2477
        %v2536 = vpop.f32.mrf.mxu0
        %v2537 = vadd.f32 0.0, %v2536
        %v2538 = vpop.f32.mrf.mxu0
        %v2539 = vadd.f32 0.0, %v2538
        %2540 = vmatmul.bf16.gmra.mxu0 %v2480
        %v2541 = vpop.f32.mrf.mxu0
        %v2542 = vadd.f32 0.0, %v2541
        %v2543 = vpop.f32.mrf.mxu0
        %v2544 = vadd.f32 0.0, %v2543
        %2545 = vmatmul.bf16.gmra.mxu0 %v2483
        %v2546 = vpop.f32.mrf.mxu0
        %v2547 = vadd.f32 0.0, %v2546
        %v2548 = vpop.f32.mrf.mxu0
        %v2549 = vadd.f32 0.0, %v2548
        %2550 = vmatmul.bf16.gmra.mxu0 %v2486
        %v2551 = vpop.f32.mrf.mxu0
        %v2552 = vadd.f32 0.0, %v2551
        %v2553 = vpop.f32.mrf.mxu0
        %v2554 = vadd.f32 0.0, %v2553
        %2555 = vmatmul.bf16.gmra.mxu0 %v2489
        %v2556 = vpop.f32.mrf.mxu0
        %v2557 = vadd.f32 0.0, %v2556
        %v2558 = vpop.f32.mrf.mxu0
        %v2559 = vadd.f32 0.0, %v2558
        %2560 = vmatmul.bf16.gmra.mxu0 %v2492
        %v2561 = vpop.f32.mrf.mxu0
        %v2562 = vadd.f32 0.0, %v2561
        %v2563 = vpop.f32.mrf.mxu0
        %v2564 = vadd.f32 0.0, %v2563
        %2565 = vmatmul.bf16.gmra.mxu0 %v2495
        %v2566 = vpop.f32.mrf.mxu0
        %v2567 = vadd.f32 0.0, %v2566
        %v2568 = vpop.f32.mrf.mxu0
        %v2569 = vadd.f32 0.0, %v2568
        %2570 = vmatmul.bf16.gmra.mxu0 %v2498
        %v2571 = vpop.f32.mrf.mxu0
        %v2572 = vadd.f32 0.0, %v2571
        %v2573 = vpop.f32.mrf.mxu0
        %v2574 = vadd.f32 0.0, %v2573
        %2575 = vmatmul.bf16.gmra.mxu0 %v2501
        %v2576 = vpop.f32.mrf.mxu0
        %v2577 = vadd.f32 0.0, %v2576
        %v2578 = vpop.f32.mrf.mxu0
        %v2579 = vadd.f32 0.0, %v2578
        %2580 = vmatmul.bf16.gmra.mxu0 %v2504
        %v2581 = vpop.f32.mrf.mxu0
        %v2582 = vadd.f32 0.0, %v2581
        %v2583 = vpop.f32.mrf.mxu0
        %v2584 = vadd.f32 0.0, %v2583
        %2585 = vmatmul.bf16.gmra.mxu0 %v2507
        %v2586 = vpop.f32.mrf.mxu0
        %v2587 = vadd.f32 0.0, %v2586
        %v2588 = vpop.f32.mrf.mxu0
        %v2589 = vadd.f32 0.0, %v2588
        %2590 = vmatmul.bf16.gmra.mxu0 %v2510
        %v2591 = vpop.f32.mrf.mxu0
        %v2592 = vadd.f32 0.0, %v2591
        %v2593 = vpop.f32.mrf.mxu0
        %v2594 = vadd.f32 0.0, %v2593
        %2595 = vmatmul.bf16.gmra.mxu0 %v2513
        %v2596 = vpop.f32.mrf.mxu0
        %v2597 = vadd.f32 0.0, %v2596
        %v2598 = vpop.f32.mrf.mxu0
        %v2599 = vadd.f32 0.0, %v2598
        %2600 = vmatmul.bf16.gmra.mxu0 %v2516
        %v2601 = vpop.f32.mrf.mxu0
        %v2602 = vadd.f32 0.0, %v2601
        %v2603 = vpop.f32.mrf.mxu0
        %v2604 = vadd.f32 0.0, %v2603
        %2605 = vmatmul.bf16.gmra.mxu0 %v2519
        %v2606 = vpop.f32.mrf.mxu0
        %v2607 = vadd.f32 0.0, %v2606
        %v2608 = vpop.f32.mrf.mxu0
        %v2609 = vadd.f32 0.0, %v2608
        %2610 = vmatmul.bf16.gmra.mxu0 %v2522
        %v2611 = vpop.f32.mrf.mxu0
        %v2612 = vadd.f32 0.0, %v2611
        %v2613 = vpop.f32.mrf.mxu0
        %v2614 = vadd.f32 0.0, %v2613
        %2615 = vdwg.mxu0
        %v2616 = vadd.f32 %v2201, %v2537
        %v2617 = vadd.f32 %v2202, %v2539
        %v2618 = vadd.f32 %v2203, %v2542
        %v2619 = vadd.f32 %v2204, %v2544
        %v2620 = vadd.f32 %v2205, %v2547
        %v2621 = vadd.f32 %v2206, %v2549
        %v2622 = vadd.f32 %v2207, %v2552
        %v2623 = vadd.f32 %v2208, %v2554
        %v2624 = vadd.f32 %v2209, %v2557
        %v2625 = vadd.f32 %v2210, %v2559
        %v2626 = vadd.f32 %v2211, %v2562
        %v2627 = vadd.f32 %v2212, %v2564
        %v2628 = vadd.f32 %v2213, %v2567
        %v2629 = vadd.f32 %v2214, %v2569
        %v2630 = vadd.f32 %v2215, %v2572
        %v2631 = vadd.f32 %v2216, %v2574
        %v2632 = vadd.f32 %v2217, %v2577
        %v2633 = vadd.f32 %v2218, %v2579
        %v2634 = vadd.f32 %v2219, %v2582
        %v2635 = vadd.f32 %v2220, %v2584
        %v2636 = vadd.f32 %v2221, %v2587
        %v2637 = vadd.f32 %v2222, %v2589
        %v2638 = vadd.f32 %v2223, %v2592
        %v2639 = vadd.f32 %v2224, %v2594
        %v2640 = vadd.f32 %v2225, %v2597
        %v2641 = vadd.f32 %v2226, %v2599
        %v2642 = vadd.f32 %v2227, %v2602
        %v2643 = vadd.f32 %v2228, %v2604
        %v2644 = vadd.f32 %v2229, %v2607
        %v2645 = vadd.f32 %v2230, %v2609
        %v2646 = vadd.f32 %v2231, %v2612
        %v2647 = vadd.f32 %v2232, %v2614
        %s2648 = scalar_lea.vmem %s1, 1536
        %v2649 = vld [vmem:[%s2648] sm:$0xff]
        %v2650 = vld [vmem:[%s2648 + $0x8] sm:$0xff]
        %v2651 = vld [vmem:[%s2648 + $0x10] sm:$0xff]
        %v2652 = vld [vmem:[%s2648 + $0x18] sm:$0xff]
        %v2653 = vld [vmem:[%s2648 + $0x20] sm:$0xff]
        %v2654 = vld [vmem:[%s2648 + $0x28] sm:$0xff]
        %v2655 = vld [vmem:[%s2648 + $0x30] sm:$0xff]
        %v2656 = vld [vmem:[%s2648 + $0x38] sm:$0xff]
        %v2657 = vld [vmem:[%s2648 + $0x40] sm:$0xff]
        %v2658 = vld [vmem:[%s2648 + $0x48] sm:$0xff]
        %v2659 = vld [vmem:[%s2648 + $0x50] sm:$0xff]
        %v2660 = vld [vmem:[%s2648 + $0x58] sm:$0xff]
        %v2661 = vld [vmem:[%s2648 + $0x60] sm:$0xff]
        %v2662 = vld [vmem:[%s2648 + $0x68] sm:$0xff]
        %v2663 = vld [vmem:[%s2648 + $0x70] sm:$0xff]
        %v2664 = vld [vmem:[%s2648 + $0x78] sm:$0xff]
        %v2665 = vld [vmem:[%s2648 + $0x80] sm:$0xff]
        %v2666 = vld [vmem:[%s2648 + $0x88] sm:$0xff]
        %v2667 = vld [vmem:[%s2648 + $0x90] sm:$0xff]
        %v2668 = vld [vmem:[%s2648 + $0x98] sm:$0xff]
        %v2669 = vld [vmem:[%s2648 + $0xa0] sm:$0xff]
        %v2670 = vld [vmem:[%s2648 + $0xa8] sm:$0xff]
        %v2671 = vld [vmem:[%s2648 + $0xb0] sm:$0xff]
        %v2672 = vld [vmem:[%s2648 + $0xb8] sm:$0xff]
        %v2673 = vld [vmem:[%s2648 + $0xc0] sm:$0xff]
        %v2674 = vld [vmem:[%s2648 + $0xc8] sm:$0xff]
        %v2675 = vld [vmem:[%s2648 + $0xd0] sm:$0xff]
        %v2676 = vld [vmem:[%s2648 + $0xd8] sm:$0xff]
        %v2677 = vld [vmem:[%s2648 + $0xe0] sm:$0xff]
        %v2678 = vld [vmem:[%s2648 + $0xe8] sm:$0xff]
        %v2679 = vld [vmem:[%s2648 + $0xf0] sm:$0xff]
        %v2680 = vld [vmem:[%s2648 + $0xf8] sm:$0xff]
        %2682 = vset.pattern.permute.xlu0 0
        %2683 = vperm.xlu0 %2682, %v2649
        %v2684 = vpop.permute.xlu0 %2683
        %2687 = vset.pattern.permute.xlu0 0
        %2688 = vperm.xlu0 %2687, %v2650
        %v2689 = vpop.permute.xlu0 %2688
        %2692 = vset.pattern.permute.xlu0 0
        %2693 = vperm.xlu0 %2692, %v2651
        %v2694 = vpop.permute.xlu0 %2693
        %2697 = vset.pattern.permute.xlu0 0
        %2698 = vperm.xlu0 %2697, %v2652
        %v2699 = vpop.permute.xlu0 %2698
        %2702 = vset.pattern.permute.xlu0 0
        %2703 = vperm.xlu0 %2702, %v2653
        %v2704 = vpop.permute.xlu0 %2703
        %2707 = vset.pattern.permute.xlu0 0
        %2708 = vperm.xlu0 %2707, %v2654
        %v2709 = vpop.permute.xlu0 %2708
        %2712 = vset.pattern.permute.xlu0 0
        %2713 = vperm.xlu0 %2712, %v2655
        %v2714 = vpop.permute.xlu0 %2713
        %2717 = vset.pattern.permute.xlu0 0
        %2718 = vperm.xlu0 %2717, %v2656
        %v2719 = vpop.permute.xlu0 %2718
        %2722 = vset.pattern.permute.xlu0 0
        %2723 = vperm.xlu0 %2722, %v2657
        %v2724 = vpop.permute.xlu0 %2723
        %2727 = vset.pattern.permute.xlu0 0
        %2728 = vperm.xlu0 %2727, %v2658
        %v2729 = vpop.permute.xlu0 %2728
        %2732 = vset.pattern.permute.xlu0 0
        %2733 = vperm.xlu0 %2732, %v2659
        %v2734 = vpop.permute.xlu0 %2733
        %2737 = vset.pattern.permute.xlu0 0
        %2738 = vperm.xlu0 %2737, %v2660
        %v2739 = vpop.permute.xlu0 %2738
        %2742 = vset.pattern.permute.xlu0 0
        %2743 = vperm.xlu0 %2742, %v2661
        %v2744 = vpop.permute.xlu0 %2743
        %2747 = vset.pattern.permute.xlu0 0
        %2748 = vperm.xlu0 %2747, %v2662
        %v2749 = vpop.permute.xlu0 %2748
        %2752 = vset.pattern.permute.xlu0 0
        %2753 = vperm.xlu0 %2752, %v2663
        %v2754 = vpop.permute.xlu0 %2753
        %2757 = vset.pattern.permute.xlu0 0
        %2758 = vperm.xlu0 %2757, %v2664
        %v2759 = vpop.permute.xlu0 %2758
        %2762 = vset.pattern.permute.xlu0 0
        %2763 = vperm.xlu0 %2762, %v2665
        %v2764 = vpop.permute.xlu0 %2763
        %2767 = vset.pattern.permute.xlu0 0
        %2768 = vperm.xlu0 %2767, %v2666
        %v2769 = vpop.permute.xlu0 %2768
        %2772 = vset.pattern.permute.xlu0 0
        %2773 = vperm.xlu0 %2772, %v2667
        %v2774 = vpop.permute.xlu0 %2773
        %2777 = vset.pattern.permute.xlu0 0
        %2778 = vperm.xlu0 %2777, %v2668
        %v2779 = vpop.permute.xlu0 %2778
        %2782 = vset.pattern.permute.xlu0 0
        %2783 = vperm.xlu0 %2782, %v2669
        %v2784 = vpop.permute.xlu0 %2783
        %2787 = vset.pattern.permute.xlu0 0
        %2788 = vperm.xlu0 %2787, %v2670
        %v2789 = vpop.permute.xlu0 %2788
        %2792 = vset.pattern.permute.xlu0 0
        %2793 = vperm.xlu0 %2792, %v2671
        %v2794 = vpop.permute.xlu0 %2793
        %2797 = vset.pattern.permute.xlu0 0
        %2798 = vperm.xlu0 %2797, %v2672
        %v2799 = vpop.permute.xlu0 %2798
        %2802 = vset.pattern.permute.xlu0 0
        %2803 = vperm.xlu0 %2802, %v2673
        %v2804 = vpop.permute.xlu0 %2803
        %2807 = vset.pattern.permute.xlu0 0
        %2808 = vperm.xlu0 %2807, %v2674
        %v2809 = vpop.permute.xlu0 %2808
        %2812 = vset.pattern.permute.xlu0 0
        %2813 = vperm.xlu0 %2812, %v2675
        %v2814 = vpop.permute.xlu0 %2813
        %2817 = vset.pattern.permute.xlu0 0
        %2818 = vperm.xlu0 %2817, %v2676
        %v2819 = vpop.permute.xlu0 %2818
        %2822 = vset.pattern.permute.xlu0 0
        %2823 = vperm.xlu0 %2822, %v2677
        %v2824 = vpop.permute.xlu0 %2823
        %2827 = vset.pattern.permute.xlu0 0
        %2828 = vperm.xlu0 %2827, %v2678
        %v2829 = vpop.permute.xlu0 %2828
        %2832 = vset.pattern.permute.xlu0 0
        %2833 = vperm.xlu0 %2832, %v2679
        %v2834 = vpop.permute.xlu0 %2833
        %2837 = vset.pattern.permute.xlu0 0
        %2838 = vperm.xlu0 %2837, %v2680
        %v2839 = vpop.permute.xlu0 %2838
        %v2841 = vmul.f32 %v379, %v2684
        %v2842 = vmul.f32 %v378, %v2689
        %v2843 = vmul.f32 %v377, %v2694
        %v2844 = vmul.f32 %v376, %v2699
        %v2845 = vmul.f32 %v375, %v2704
        %v2846 = vmul.f32 %v374, %v2709
        %v2847 = vmul.f32 %v373, %v2714
        %v2848 = vmul.f32 %v372, %v2719
        %v2849 = vmul.f32 %v371, %v2724
        %v2850 = vmul.f32 %v370, %v2729
        %v2851 = vmul.f32 %v369, %v2734
        %v2852 = vmul.f32 %v368, %v2739
        %v2853 = vmul.f32 %v367, %v2744
        %v2854 = vmul.f32 %v366, %v2749
        %v2855 = vmul.f32 %v365, %v2754
        %v2856 = vmul.f32 %v364, %v2759
        %v2857 = vmul.f32 %v363, %v2764
        %v2858 = vmul.f32 %v362, %v2769
        %v2859 = vmul.f32 %v361, %v2774
        %v2860 = vmul.f32 %v360, %v2779
        %v2861 = vmul.f32 %v359, %v2784
        %v2862 = vmul.f32 %v358, %v2789
        %v2863 = vmul.f32 %v357, %v2794
        %v2864 = vmul.f32 %v356, %v2799
        %v2865 = vmul.f32 %v355, %v2804
        %v2866 = vmul.f32 %v354, %v2809
        %v2867 = vmul.f32 %v353, %v2814
        %v2868 = vmul.f32 %v352, %v2819
        %v2869 = vmul.f32 %v351, %v2824
        %v2870 = vmul.f32 %v350, %v2829
        %v2871 = vmul.f32 %v381, %v2834
        %v2872 = vmul.f32 %v380, %v2839
        %v2873 = vpack.c.bf16 %v2842, %v2841
        %v2874 = vpack.c.bf16 %v2844, %v2843
        %v2875 = vpack.c.bf16 %v2846, %v2845
        %v2876 = vpack.c.bf16 %v2848, %v2847
        %v2877 = vpack.c.bf16 %v2850, %v2849
        %v2878 = vpack.c.bf16 %v2852, %v2851
        %v2879 = vpack.c.bf16 %v2854, %v2853
        %v2880 = vpack.c.bf16 %v2856, %v2855
        %v2881 = vpack.c.bf16 %v2858, %v2857
        %v2882 = vpack.c.bf16 %v2860, %v2859
        %v2883 = vpack.c.bf16 %v2862, %v2861
        %v2884 = vpack.c.bf16 %v2864, %v2863
        %v2885 = vpack.c.bf16 %v2866, %v2865
        %v2886 = vpack.c.bf16 %v2868, %v2867
        %v2887 = vpack.c.bf16 %v2870, %v2869
        %v2888 = vpack.c.bf16 %v2872, %v2871
        %s2889 = scalar_lea.vmem %s2, 12
        %v2890 = vld [vmem:[%s2889] sm:$0x3]
        %v2892 = vsel %vm866, %v2873, 0
        %v2895 = vsel %vm866, %v2874, 0
        %v2898 = vsel %vm866, %v2875, 0
        %v2901 = vsel %vm866, %v2876, 0
        %v2904 = vsel %vm866, %v2877, 0
        %v2907 = vsel %vm866, %v2878, 0
        %v2910 = vsel %vm866, %v2879, 0
        %v2913 = vsel %vm866, %v2880, 0
        %v2916 = vsel %vm866, %v2881, 0
        %v2919 = vsel %vm866, %v2882, 0
        %v2922 = vsel %vm866, %v2883, 0
        %v2925 = vsel %vm866, %v2884, 0
        %v2928 = vsel %vm866, %v2885, 0
        %v2931 = vsel %vm866, %v2886, 0
        %v2934 = vsel %vm866, %v2887, 0
        %v2937 = vsel %vm866, %v2888, 0
        %v2940 = vsel %vm915, %v2890, 0
        %2942 = vmatpush.bf16.msra.mxu0 0
        %2943 = vmatpush.bf16.msra.mxu0 0
        %2944 = vmatpush.bf16.msra.mxu0 0
        %2945 = vmatpush.bf16.msra.mxu0 0
        %2946 = vmatpush.bf16.msra.mxu0 0
        %2947 = vmatpush.bf16.msra.mxu0 0
        %2948 = vmatpush.bf16.msra.mxu0 0
        %2949 = vmatpush.bf16.msra.mxu0 %v2940
        %2950 = vmatmul.bf16.gmra.mxu0 %v2892
        %v2951 = vpop.f32.mrf.mxu0
        %v2952 = vadd.f32 0.0, %v2951
        %v2953 = vpop.f32.mrf.mxu0
        %v2954 = vadd.f32 0.0, %v2953
        %2955 = vmatmul.bf16.gmra.mxu0 %v2895
        %v2956 = vpop.f32.mrf.mxu0
        %v2957 = vadd.f32 0.0, %v2956
        %v2958 = vpop.f32.mrf.mxu0
        %v2959 = vadd.f32 0.0, %v2958
        %2960 = vmatmul.bf16.gmra.mxu0 %v2898
        %v2961 = vpop.f32.mrf.mxu0
        %v2962 = vadd.f32 0.0, %v2961
        %v2963 = vpop.f32.mrf.mxu0
        %v2964 = vadd.f32 0.0, %v2963
        %2965 = vmatmul.bf16.gmra.mxu0 %v2901
        %v2966 = vpop.f32.mrf.mxu0
        %v2967 = vadd.f32 0.0, %v2966
        %v2968 = vpop.f32.mrf.mxu0
        %v2969 = vadd.f32 0.0, %v2968
        %2970 = vmatmul.bf16.gmra.mxu0 %v2904
        %v2971 = vpop.f32.mrf.mxu0
        %v2972 = vadd.f32 0.0, %v2971
        %v2973 = vpop.f32.mrf.mxu0
        %v2974 = vadd.f32 0.0, %v2973
        %2975 = vmatmul.bf16.gmra.mxu0 %v2907
        %v2976 = vpop.f32.mrf.mxu0
        %v2977 = vadd.f32 0.0, %v2976
        %v2978 = vpop.f32.mrf.mxu0
        %v2979 = vadd.f32 0.0, %v2978
        %2980 = vmatmul.bf16.gmra.mxu0 %v2910
        %v2981 = vpop.f32.mrf.mxu0
        %v2982 = vadd.f32 0.0, %v2981
        %v2983 = vpop.f32.mrf.mxu0
        %v2984 = vadd.f32 0.0, %v2983
        %2985 = vmatmul.bf16.gmra.mxu0 %v2913
        %v2986 = vpop.f32.mrf.mxu0
        %v2987 = vadd.f32 0.0, %v2986
        %v2988 = vpop.f32.mrf.mxu0
        %v2989 = vadd.f32 0.0, %v2988
        %2990 = vmatmul.bf16.gmra.mxu0 %v2916
        %v2991 = vpop.f32.mrf.mxu0
        %v2992 = vadd.f32 0.0, %v2991
        %v2993 = vpop.f32.mrf.mxu0
        %v2994 = vadd.f32 0.0, %v2993
        %2995 = vmatmul.bf16.gmra.mxu0 %v2919
        %v2996 = vpop.f32.mrf.mxu0
        %v2997 = vadd.f32 0.0, %v2996
        %v2998 = vpop.f32.mrf.mxu0
        %v2999 = vadd.f32 0.0, %v2998
        %3000 = vmatmul.bf16.gmra.mxu0 %v2922
        %v3001 = vpop.f32.mrf.mxu0
        %v3002 = vadd.f32 0.0, %v3001
        %v3003 = vpop.f32.mrf.mxu0
        %v3004 = vadd.f32 0.0, %v3003
        %3005 = vmatmul.bf16.gmra.mxu0 %v2925
        %v3006 = vpop.f32.mrf.mxu0
        %v3007 = vadd.f32 0.0, %v3006
        %v3008 = vpop.f32.mrf.mxu0
        %v3009 = vadd.f32 0.0, %v3008
        %3010 = vmatmul.bf16.gmra.mxu0 %v2928
        %v3011 = vpop.f32.mrf.mxu0
        %v3012 = vadd.f32 0.0, %v3011
        %v3013 = vpop.f32.mrf.mxu0
        %v3014 = vadd.f32 0.0, %v3013
        %3015 = vmatmul.bf16.gmra.mxu0 %v2931
        %v3016 = vpop.f32.mrf.mxu0
        %v3017 = vadd.f32 0.0, %v3016
        %v3018 = vpop.f32.mrf.mxu0
        %v3019 = vadd.f32 0.0, %v3018
        %3020 = vmatmul.bf16.gmra.mxu0 %v2934
        %v3021 = vpop.f32.mrf.mxu0
        %v3022 = vadd.f32 0.0, %v3021
        %v3023 = vpop.f32.mrf.mxu0
        %v3024 = vadd.f32 0.0, %v3023
        %3025 = vmatmul.bf16.gmra.mxu0 %v2937
        %v3026 = vpop.f32.mrf.mxu0
        %v3027 = vadd.f32 0.0, %v3026
        %v3028 = vpop.f32.mrf.mxu0
        %v3029 = vadd.f32 0.0, %v3028
        %3030 = vdwg.mxu0
        %v3031 = vadd.f32 %v2616, %v2952
        %v3032 = vadd.f32 %v2617, %v2954
        %v3033 = vadd.f32 %v2618, %v2957
        %v3034 = vadd.f32 %v2619, %v2959
        %v3035 = vadd.f32 %v2620, %v2962
        %v3036 = vadd.f32 %v2621, %v2964
        %v3037 = vadd.f32 %v2622, %v2967
        %v3038 = vadd.f32 %v2623, %v2969
        %v3039 = vadd.f32 %v2624, %v2972
        %v3040 = vadd.f32 %v2625, %v2974
        %v3041 = vadd.f32 %v2626, %v2977
        %v3042 = vadd.f32 %v2627, %v2979
        %v3043 = vadd.f32 %v2628, %v2982
        %v3044 = vadd.f32 %v2629, %v2984
        %v3045 = vadd.f32 %v2630, %v2987
        %v3046 = vadd.f32 %v2631, %v2989
        %v3047 = vadd.f32 %v2632, %v2992
        %v3048 = vadd.f32 %v2633, %v2994
        %v3049 = vadd.f32 %v2634, %v2997
        %v3050 = vadd.f32 %v2635, %v2999
        %v3051 = vadd.f32 %v2636, %v3002
        %v3052 = vadd.f32 %v2637, %v3004
        %v3053 = vadd.f32 %v2638, %v3007
        %v3054 = vadd.f32 %v2639, %v3009
        %v3055 = vadd.f32 %v2640, %v3012
        %v3056 = vadd.f32 %v2641, %v3014
        %v3057 = vadd.f32 %v2642, %v3017
        %v3058 = vadd.f32 %v2643, %v3019
        %v3059 = vadd.f32 %v2644, %v3022
        %v3060 = vadd.f32 %v2645, %v3024
        %v3061 = vadd.f32 %v2646, %v3027
        %v3062 = vadd.f32 %v2647, %v3029
        %s3063 = scalar_lea.vmem %s1, 1792
        %v3064 = vld [vmem:[%s3063] sm:$0xff]
        %v3065 = vld [vmem:[%s3063 + $0x8] sm:$0xff]
        %v3066 = vld [vmem:[%s3063 + $0x10] sm:$0xff]
        %v3067 = vld [vmem:[%s3063 + $0x18] sm:$0xff]
        %v3068 = vld [vmem:[%s3063 + $0x20] sm:$0xff]
        %v3069 = vld [vmem:[%s3063 + $0x28] sm:$0xff]
        %v3070 = vld [vmem:[%s3063 + $0x30] sm:$0xff]
        %v3071 = vld [vmem:[%s3063 + $0x38] sm:$0xff]
        %v3072 = vld [vmem:[%s3063 + $0x40] sm:$0xff]
        %v3073 = vld [vmem:[%s3063 + $0x48] sm:$0xff]
        %v3074 = vld [vmem:[%s3063 + $0x50] sm:$0xff]
        %v3075 = vld [vmem:[%s3063 + $0x58] sm:$0xff]
        %v3076 = vld [vmem:[%s3063 + $0x60] sm:$0xff]
        %v3077 = vld [vmem:[%s3063 + $0x68] sm:$0xff]
        %v3078 = vld [vmem:[%s3063 + $0x70] sm:$0xff]
        %v3079 = vld [vmem:[%s3063 + $0x78] sm:$0xff]
        %v3080 = vld [vmem:[%s3063 + $0x80] sm:$0xff]
        %v3081 = vld [vmem:[%s3063 + $0x88] sm:$0xff]
        %v3082 = vld [vmem:[%s3063 + $0x90] sm:$0xff]
        %v3083 = vld [vmem:[%s3063 + $0x98] sm:$0xff]
        %v3084 = vld [vmem:[%s3063 + $0xa0] sm:$0xff]
        %v3085 = vld [vmem:[%s3063 + $0xa8] sm:$0xff]
        %v3086 = vld [vmem:[%s3063 + $0xb0] sm:$0xff]
        %v3087 = vld [vmem:[%s3063 + $0xb8] sm:$0xff]
        %v3088 = vld [vmem:[%s3063 + $0xc0] sm:$0xff]
        %v3089 = vld [vmem:[%s3063 + $0xc8] sm:$0xff]
        %v3090 = vld [vmem:[%s3063 + $0xd0] sm:$0xff]
        %v3091 = vld [vmem:[%s3063 + $0xd8] sm:$0xff]
        %v3092 = vld [vmem:[%s3063 + $0xe0] sm:$0xff]
        %v3093 = vld [vmem:[%s3063 + $0xe8] sm:$0xff]
        %v3094 = vld [vmem:[%s3063 + $0xf0] sm:$0xff]
        %v3095 = vld [vmem:[%s3063 + $0xf8] sm:$0xff]
        %3097 = vset.pattern.permute.xlu0 0
        %3098 = vperm.xlu0 %3097, %v3064
        %v3099 = vpop.permute.xlu0 %3098
        %3102 = vset.pattern.permute.xlu0 0
        %3103 = vperm.xlu0 %3102, %v3065
        %v3104 = vpop.permute.xlu0 %3103
        %3107 = vset.pattern.permute.xlu0 0
        %3108 = vperm.xlu0 %3107, %v3066
        %v3109 = vpop.permute.xlu0 %3108
        %3112 = vset.pattern.permute.xlu0 0
        %3113 = vperm.xlu0 %3112, %v3067
        %v3114 = vpop.permute.xlu0 %3113
        %3117 = vset.pattern.permute.xlu0 0
        %3118 = vperm.xlu0 %3117, %v3068
        %v3119 = vpop.permute.xlu0 %3118
        %3122 = vset.pattern.permute.xlu0 0
        %3123 = vperm.xlu0 %3122, %v3069
        %v3124 = vpop.permute.xlu0 %3123
        %3127 = vset.pattern.permute.xlu0 0
        %3128 = vperm.xlu0 %3127, %v3070
        %v3129 = vpop.permute.xlu0 %3128
        %3132 = vset.pattern.permute.xlu0 0
        %3133 = vperm.xlu0 %3132, %v3071
        %v3134 = vpop.permute.xlu0 %3133
        %3137 = vset.pattern.permute.xlu0 0
        %3138 = vperm.xlu0 %3137, %v3072
        %v3139 = vpop.permute.xlu0 %3138
        %3142 = vset.pattern.permute.xlu0 0
        %3143 = vperm.xlu0 %3142, %v3073
        %v3144 = vpop.permute.xlu0 %3143
        %3147 = vset.pattern.permute.xlu0 0
        %3148 = vperm.xlu0 %3147, %v3074
        %v3149 = vpop.permute.xlu0 %3148
        %3152 = vset.pattern.permute.xlu0 0
        %3153 = vperm.xlu0 %3152, %v3075
        %v3154 = vpop.permute.xlu0 %3153
        %3157 = vset.pattern.permute.xlu0 0
        %3158 = vperm.xlu0 %3157, %v3076
        %v3159 = vpop.permute.xlu0 %3158
        %3162 = vset.pattern.permute.xlu0 0
        %3163 = vperm.xlu0 %3162, %v3077
        %v3164 = vpop.permute.xlu0 %3163
        %3167 = vset.pattern.permute.xlu0 0
        %3168 = vperm.xlu0 %3167, %v3078
        %v3169 = vpop.permute.xlu0 %3168
        %3172 = vset.pattern.permute.xlu0 0
        %3173 = vperm.xlu0 %3172, %v3079
        %v3174 = vpop.permute.xlu0 %3173
        %3177 = vset.pattern.permute.xlu0 0
        %3178 = vperm.xlu0 %3177, %v3080
        %v3179 = vpop.permute.xlu0 %3178
        %3182 = vset.pattern.permute.xlu0 0
        %3183 = vperm.xlu0 %3182, %v3081
        %v3184 = vpop.permute.xlu0 %3183
        %3187 = vset.pattern.permute.xlu0 0
        %3188 = vperm.xlu0 %3187, %v3082
        %v3189 = vpop.permute.xlu0 %3188
        %3192 = vset.pattern.permute.xlu0 0
        %3193 = vperm.xlu0 %3192, %v3083
        %v3194 = vpop.permute.xlu0 %3193
        %3197 = vset.pattern.permute.xlu0 0
        %3198 = vperm.xlu0 %3197, %v3084
        %v3199 = vpop.permute.xlu0 %3198
        %3202 = vset.pattern.permute.xlu0 0
        %3203 = vperm.xlu0 %3202, %v3085
        %v3204 = vpop.permute.xlu0 %3203
        %3207 = vset.pattern.permute.xlu0 0
        %3208 = vperm.xlu0 %3207, %v3086
        %v3209 = vpop.permute.xlu0 %3208
        %3212 = vset.pattern.permute.xlu0 0
        %3213 = vperm.xlu0 %3212, %v3087
        %v3214 = vpop.permute.xlu0 %3213
        %3217 = vset.pattern.permute.xlu0 0
        %3218 = vperm.xlu0 %3217, %v3088
        %v3219 = vpop.permute.xlu0 %3218
        %3222 = vset.pattern.permute.xlu0 0
        %3223 = vperm.xlu0 %3222, %v3089
        %v3224 = vpop.permute.xlu0 %3223
        %3227 = vset.pattern.permute.xlu0 0
        %3228 = vperm.xlu0 %3227, %v3090
        %v3229 = vpop.permute.xlu0 %3228
        %3232 = vset.pattern.permute.xlu0 0
        %3233 = vperm.xlu0 %3232, %v3091
        %v3234 = vpop.permute.xlu0 %3233
        %3237 = vset.pattern.permute.xlu0 0
        %3238 = vperm.xlu0 %3237, %v3092
        %v3239 = vpop.permute.xlu0 %3238
        %3242 = vset.pattern.permute.xlu0 0
        %3243 = vperm.xlu0 %3242, %v3093
        %v3244 = vpop.permute.xlu0 %3243
        %3247 = vset.pattern.permute.xlu0 0
        %3248 = vperm.xlu0 %3247, %v3094
        %v3249 = vpop.permute.xlu0 %3248
        %3252 = vset.pattern.permute.xlu0 0
        %3253 = vperm.xlu0 %3252, %v3095
        %v3254 = vpop.permute.xlu0 %3253
        %v3256 = vmul.f32 %v285, %v3099
        %v3257 = vmul.f32 %v286, %v3104
        %v3258 = vmul.f32 %v287, %v3109
        %v3259 = vmul.f32 %v288, %v3114
        %v3260 = vmul.f32 %v289, %v3119
        %v3261 = vmul.f32 %v290, %v3124
        %v3262 = vmul.f32 %v291, %v3129
        %v3263 = vmul.f32 %v292, %v3134
        %v3264 = vmul.f32 %v293, %v3139
        %v3265 = vmul.f32 %v294, %v3144
        %v3266 = vmul.f32 %v295, %v3149
        %v3267 = vmul.f32 %v296, %v3154
        %v3268 = vmul.f32 %v297, %v3159
        %v3269 = vmul.f32 %v298, %v3164
        %v3270 = vmul.f32 %v299, %v3169
        %v3271 = vmul.f32 %v300, %v3174
        %v3272 = vmul.f32 %v301, %v3179
        %v3273 = vmul.f32 %v302, %v3184
        %v3274 = vmul.f32 %v303, %v3189
        %v3275 = vmul.f32 %v304, %v3194
        %v3276 = vmul.f32 %v305, %v3199
        %v3277 = vmul.f32 %v306, %v3204
        %v3278 = vmul.f32 %v307, %v3209
        %v3279 = vmul.f32 %v308, %v3214
        %v3280 = vmul.f32 %v309, %v3219
        %v3281 = vmul.f32 %v310, %v3224
        %v3282 = vmul.f32 %v311, %v3229
        %v3283 = vmul.f32 %v312, %v3234
        %v3284 = vmul.f32 %v313, %v3239
        %v3285 = vmul.f32 %v314, %v3244
        %v3286 = vmul.f32 %v283, %v3249
        %v3287 = vmul.f32 %v284, %v3254
        %v3288 = vpack.c.bf16 %v3257, %v3256
        %v3289 = vpack.c.bf16 %v3259, %v3258
        %v3290 = vpack.c.bf16 %v3261, %v3260
        %v3291 = vpack.c.bf16 %v3263, %v3262
        %v3292 = vpack.c.bf16 %v3265, %v3264
        %v3293 = vpack.c.bf16 %v3267, %v3266
        %v3294 = vpack.c.bf16 %v3269, %v3268
        %v3295 = vpack.c.bf16 %v3271, %v3270
        %v3296 = vpack.c.bf16 %v3273, %v3272
        %v3297 = vpack.c.bf16 %v3275, %v3274
        %v3298 = vpack.c.bf16 %v3277, %v3276
        %v3299 = vpack.c.bf16 %v3279, %v3278
        %v3300 = vpack.c.bf16 %v3281, %v3280
        %v3301 = vpack.c.bf16 %v3283, %v3282
        %v3302 = vpack.c.bf16 %v3285, %v3284
        %v3303 = vpack.c.bf16 %v3287, %v3286
        %s3304 = scalar_lea.vmem %s2, 14
        %v3305 = vld [vmem:[%s3304] sm:$0x3]
        %v3307 = vsel %vm866, %v3288, 0
        %v3310 = vsel %vm866, %v3289, 0
        %v3313 = vsel %vm866, %v3290, 0
        %v3316 = vsel %vm866, %v3291, 0
        %v3319 = vsel %vm866, %v3292, 0
        %v3322 = vsel %vm866, %v3293, 0
        %v3325 = vsel %vm866, %v3294, 0
        %v3328 = vsel %vm866, %v3295, 0
        %v3331 = vsel %vm866, %v3296, 0
        %v3334 = vsel %vm866, %v3297, 0
        %v3337 = vsel %vm866, %v3298, 0
        %v3340 = vsel %vm866, %v3299, 0
        %v3343 = vsel %vm866, %v3300, 0
        %v3346 = vsel %vm866, %v3301, 0
        %v3349 = vsel %vm866, %v3302, 0
        %v3352 = vsel %vm866, %v3303, 0
        %v3355 = vsel %vm915, %v3305, 0
        %3357 = vmatpush.bf16.msra.mxu0 0
        %3358 = vmatpush.bf16.msra.mxu0 0
        %3359 = vmatpush.bf16.msra.mxu0 0
        %3360 = vmatpush.bf16.msra.mxu0 0
        %3361 = vmatpush.bf16.msra.mxu0 0
        %3362 = vmatpush.bf16.msra.mxu0 0
        %3363 = vmatpush.bf16.msra.mxu0 0
        %3364 = vmatpush.bf16.msra.mxu0 %v3355
        %3365 = vmatmul.bf16.gmra.mxu0 %v3307
        %v3366 = vpop.f32.mrf.mxu0
        %v3367 = vadd.f32 0.0, %v3366
        %v3368 = vpop.f32.mrf.mxu0
        %v3369 = vadd.f32 0.0, %v3368
        %3370 = vmatmul.bf16.gmra.mxu0 %v3310
        %v3371 = vpop.f32.mrf.mxu0
        %v3372 = vadd.f32 0.0, %v3371
        %v3373 = vpop.f32.mrf.mxu0
        %v3374 = vadd.f32 0.0, %v3373
        %3375 = vmatmul.bf16.gmra.mxu0 %v3313
        %v3376 = vpop.f32.mrf.mxu0
        %v3377 = vadd.f32 0.0, %v3376
        %v3378 = vpop.f32.mrf.mxu0
        %v3379 = vadd.f32 0.0, %v3378
        %3380 = vmatmul.bf16.gmra.mxu0 %v3316
        %v3381 = vpop.f32.mrf.mxu0
        %v3382 = vadd.f32 0.0, %v3381
        %v3383 = vpop.f32.mrf.mxu0
        %v3384 = vadd.f32 0.0, %v3383
        %3385 = vmatmul.bf16.gmra.mxu0 %v3319
        %v3386 = vpop.f32.mrf.mxu0
        %v3387 = vadd.f32 0.0, %v3386
        %v3388 = vpop.f32.mrf.mxu0
        %v3389 = vadd.f32 0.0, %v3388
        %3390 = vmatmul.bf16.gmra.mxu0 %v3322
        %v3391 = vpop.f32.mrf.mxu0
        %v3392 = vadd.f32 0.0, %v3391
        %v3393 = vpop.f32.mrf.mxu0
        %v3394 = vadd.f32 0.0, %v3393
        %3395 = vmatmul.bf16.gmra.mxu0 %v3325
        %v3396 = vpop.f32.mrf.mxu0
        %v3397 = vadd.f32 0.0, %v3396
        %v3398 = vpop.f32.mrf.mxu0
        %v3399 = vadd.f32 0.0, %v3398
        %3400 = vmatmul.bf16.gmra.mxu0 %v3328
        %v3401 = vpop.f32.mrf.mxu0
        %v3402 = vadd.f32 0.0, %v3401
        %v3403 = vpop.f32.mrf.mxu0
        %v3404 = vadd.f32 0.0, %v3403
        %3405 = vmatmul.bf16.gmra.mxu0 %v3331
        %v3406 = vpop.f32.mrf.mxu0
        %v3407 = vadd.f32 0.0, %v3406
        %v3408 = vpop.f32.mrf.mxu0
        %v3409 = vadd.f32 0.0, %v3408
        %3410 = vmatmul.bf16.gmra.mxu0 %v3334
        %v3411 = vpop.f32.mrf.mxu0
        %v3412 = vadd.f32 0.0, %v3411
        %v3413 = vpop.f32.mrf.mxu0
        %v3414 = vadd.f32 0.0, %v3413
        %3415 = vmatmul.bf16.gmra.mxu0 %v3337
        %v3416 = vpop.f32.mrf.mxu0
        %v3417 = vadd.f32 0.0, %v3416
        %v3418 = vpop.f32.mrf.mxu0
        %v3419 = vadd.f32 0.0, %v3418
        %3420 = vmatmul.bf16.gmra.mxu0 %v3340
        %v3421 = vpop.f32.mrf.mxu0
        %v3422 = vadd.f32 0.0, %v3421
        %v3423 = vpop.f32.mrf.mxu0
        %v3424 = vadd.f32 0.0, %v3423
        %3425 = vmatmul.bf16.gmra.mxu0 %v3343
        %v3426 = vpop.f32.mrf.mxu0
        %v3427 = vadd.f32 0.0, %v3426
        %v3428 = vpop.f32.mrf.mxu0
        %v3429 = vadd.f32 0.0, %v3428
        %3430 = vmatmul.bf16.gmra.mxu0 %v3346
        %v3431 = vpop.f32.mrf.mxu0
        %v3432 = vadd.f32 0.0, %v3431
        %v3433 = vpop.f32.mrf.mxu0
        %v3434 = vadd.f32 0.0, %v3433
        %3435 = vmatmul.bf16.gmra.mxu0 %v3349
        %v3436 = vpop.f32.mrf.mxu0
        %v3437 = vadd.f32 0.0, %v3436
        %v3438 = vpop.f32.mrf.mxu0
        %v3439 = vadd.f32 0.0, %v3438
        %3440 = vmatmul.bf16.gmra.mxu0 %v3352
        %v3441 = vpop.f32.mrf.mxu0
        %v3442 = vadd.f32 0.0, %v3441
        %v3443 = vpop.f32.mrf.mxu0
        %v3444 = vadd.f32 0.0, %v3443
        %3445 = vdwg.mxu0
        %v3446 = vadd.f32 %v3031, %v3367
        %v3447 = vadd.f32 %v3032, %v3369
        %v3448 = vadd.f32 %v3033, %v3372
        %v3449 = vadd.f32 %v3034, %v3374
        %v3450 = vadd.f32 %v3035, %v3377
        %v3451 = vadd.f32 %v3036, %v3379
        %v3452 = vadd.f32 %v3037, %v3382
        %v3453 = vadd.f32 %v3038, %v3384
        %v3454 = vadd.f32 %v3039, %v3387
        %v3455 = vadd.f32 %v3040, %v3389
        %v3456 = vadd.f32 %v3041, %v3392
        %v3457 = vadd.f32 %v3042, %v3394
        %v3458 = vadd.f32 %v3043, %v3397
        %v3459 = vadd.f32 %v3044, %v3399
        %v3460 = vadd.f32 %v3045, %v3402
        %v3461 = vadd.f32 %v3046, %v3404
        %v3462 = vadd.f32 %v3047, %v3407
        %v3463 = vadd.f32 %v3048, %v3409
        %v3464 = vadd.f32 %v3049, %v3412
        %v3465 = vadd.f32 %v3050, %v3414
        %v3466 = vadd.f32 %v3051, %v3417
        %v3467 = vadd.f32 %v3052, %v3419
        %v3468 = vadd.f32 %v3053, %v3422
        %v3469 = vadd.f32 %v3054, %v3424
        %v3470 = vadd.f32 %v3055, %v3427
        %v3471 = vadd.f32 %v3056, %v3429
        %v3472 = vadd.f32 %v3057, %v3432
        %v3473 = vadd.f32 %v3058, %v3434
        %v3474 = vadd.f32 %v3059, %v3437
        %v3475 = vadd.f32 %v3060, %v3439
        %v3476 = vadd.f32 %v3061, %v3442
        %v3477 = vadd.f32 %v3062, %v3444
        %s3478 = scalar_lea.vmem %s1, 2048
        %v3479 = vld [vmem:[%s3478] sm:$0xff]
        %v3480 = vld [vmem:[%s3478 + $0x8] sm:$0xff]
        %v3481 = vld [vmem:[%s3478 + $0x10] sm:$0xff]
        %v3482 = vld [vmem:[%s3478 + $0x18] sm:$0xff]
        %v3483 = vld [vmem:[%s3478 + $0x20] sm:$0xff]
        %v3484 = vld [vmem:[%s3478 + $0x28] sm:$0xff]
        %v3485 = vld [vmem:[%s3478 + $0x30] sm:$0xff]
        %v3486 = vld [vmem:[%s3478 + $0x38] sm:$0xff]
        %v3487 = vld [vmem:[%s3478 + $0x40] sm:$0xff]
        %v3488 = vld [vmem:[%s3478 + $0x48] sm:$0xff]
        %v3489 = vld [vmem:[%s3478 + $0x50] sm:$0xff]
        %v3490 = vld [vmem:[%s3478 + $0x58] sm:$0xff]
        %v3491 = vld [vmem:[%s3478 + $0x60] sm:$0xff]
        %v3492 = vld [vmem:[%s3478 + $0x68] sm:$0xff]
        %v3493 = vld [vmem:[%s3478 + $0x70] sm:$0xff]
        %v3494 = vld [vmem:[%s3478 + $0x78] sm:$0xff]
        %v3495 = vld [vmem:[%s3478 + $0x80] sm:$0xff]
        %v3496 = vld [vmem:[%s3478 + $0x88] sm:$0xff]
        %v3497 = vld [vmem:[%s3478 + $0x90] sm:$0xff]
        %v3498 = vld [vmem:[%s3478 + $0x98] sm:$0xff]
        %v3499 = vld [vmem:[%s3478 + $0xa0] sm:$0xff]
        %v3500 = vld [vmem:[%s3478 + $0xa8] sm:$0xff]
        %v3501 = vld [vmem:[%s3478 + $0xb0] sm:$0xff]
        %v3502 = vld [vmem:[%s3478 + $0xb8] sm:$0xff]
        %v3503 = vld [vmem:[%s3478 + $0xc0] sm:$0xff]
        %v3504 = vld [vmem:[%s3478 + $0xc8] sm:$0xff]
        %v3505 = vld [vmem:[%s3478 + $0xd0] sm:$0xff]
        %v3506 = vld [vmem:[%s3478 + $0xd8] sm:$0xff]
        %v3507 = vld [vmem:[%s3478 + $0xe0] sm:$0xff]
        %v3508 = vld [vmem:[%s3478 + $0xe8] sm:$0xff]
        %v3509 = vld [vmem:[%s3478 + $0xf0] sm:$0xff]
        %v3510 = vld [vmem:[%s3478 + $0xf8] sm:$0xff]
        %3512 = vset.pattern.permute.xlu0 0
        %3513 = vperm.xlu0 %3512, %v3479
        %v3514 = vpop.permute.xlu0 %3513
        %3517 = vset.pattern.permute.xlu0 0
        %3518 = vperm.xlu0 %3517, %v3480
        %v3519 = vpop.permute.xlu0 %3518
        %3522 = vset.pattern.permute.xlu0 0
        %3523 = vperm.xlu0 %3522, %v3481
        %v3524 = vpop.permute.xlu0 %3523
        %3527 = vset.pattern.permute.xlu0 0
        %3528 = vperm.xlu0 %3527, %v3482
        %v3529 = vpop.permute.xlu0 %3528
        %3532 = vset.pattern.permute.xlu0 0
        %3533 = vperm.xlu0 %3532, %v3483
        %v3534 = vpop.permute.xlu0 %3533
        %3537 = vset.pattern.permute.xlu0 0
        %3538 = vperm.xlu0 %3537, %v3484
        %v3539 = vpop.permute.xlu0 %3538
        %3542 = vset.pattern.permute.xlu0 0
        %3543 = vperm.xlu0 %3542, %v3485
        %v3544 = vpop.permute.xlu0 %3543
        %3547 = vset.pattern.permute.xlu0 0
        %3548 = vperm.xlu0 %3547, %v3486
        %v3549 = vpop.permute.xlu0 %3548
        %3552 = vset.pattern.permute.xlu0 0
        %3553 = vperm.xlu0 %3552, %v3487
        %v3554 = vpop.permute.xlu0 %3553
        %3557 = vset.pattern.permute.xlu0 0
        %3558 = vperm.xlu0 %3557, %v3488
        %v3559 = vpop.permute.xlu0 %3558
        %3562 = vset.pattern.permute.xlu0 0
        %3563 = vperm.xlu0 %3562, %v3489
        %v3564 = vpop.permute.xlu0 %3563
        %3567 = vset.pattern.permute.xlu0 0
        %3568 = vperm.xlu0 %3567, %v3490
        %v3569 = vpop.permute.xlu0 %3568
        %3572 = vset.pattern.permute.xlu0 0
        %3573 = vperm.xlu0 %3572, %v3491
        %v3574 = vpop.permute.xlu0 %3573
        %3577 = vset.pattern.permute.xlu0 0
        %3578 = vperm.xlu0 %3577, %v3492
        %v3579 = vpop.permute.xlu0 %3578
        %3582 = vset.pattern.permute.xlu0 0
        %3583 = vperm.xlu0 %3582, %v3493
        %v3584 = vpop.permute.xlu0 %3583
        %3587 = vset.pattern.permute.xlu0 0
        %3588 = vperm.xlu0 %3587, %v3494
        %v3589 = vpop.permute.xlu0 %3588
        %3592 = vset.pattern.permute.xlu0 0
        %3593 = vperm.xlu0 %3592, %v3495
        %v3594 = vpop.permute.xlu0 %3593
        %3597 = vset.pattern.permute.xlu0 0
        %3598 = vperm.xlu0 %3597, %v3496
        %v3599 = vpop.permute.xlu0 %3598
        %3602 = vset.pattern.permute.xlu0 0
        %3603 = vperm.xlu0 %3602, %v3497
        %v3604 = vpop.permute.xlu0 %3603
        %3607 = vset.pattern.permute.xlu0 0
        %3608 = vperm.xlu0 %3607, %v3498
        %v3609 = vpop.permute.xlu0 %3608
        %3612 = vset.pattern.permute.xlu0 0
        %3613 = vperm.xlu0 %3612, %v3499
        %v3614 = vpop.permute.xlu0 %3613
        %3617 = vset.pattern.permute.xlu0 0
        %3618 = vperm.xlu0 %3617, %v3500
        %v3619 = vpop.permute.xlu0 %3618
        %3622 = vset.pattern.permute.xlu0 0
        %3623 = vperm.xlu0 %3622, %v3501
        %v3624 = vpop.permute.xlu0 %3623
        %3627 = vset.pattern.permute.xlu0 0
        %3628 = vperm.xlu0 %3627, %v3502
        %v3629 = vpop.permute.xlu0 %3628
        %3632 = vset.pattern.permute.xlu0 0
        %3633 = vperm.xlu0 %3632, %v3503
        %v3634 = vpop.permute.xlu0 %3633
        %3637 = vset.pattern.permute.xlu0 0
        %3638 = vperm.xlu0 %3637, %v3504
        %v3639 = vpop.permute.xlu0 %3638
        %3642 = vset.pattern.permute.xlu0 0
        %3643 = vperm.xlu0 %3642, %v3505
        %v3644 = vpop.permute.xlu0 %3643
        %3647 = vset.pattern.permute.xlu0 0
        %3648 = vperm.xlu0 %3647, %v3506
        %v3649 = vpop.permute.xlu0 %3648
        %3652 = vset.pattern.permute.xlu0 0
        %3653 = vperm.xlu0 %3652, %v3507
        %v3654 = vpop.permute.xlu0 %3653
        %3657 = vset.pattern.permute.xlu0 0
        %3658 = vperm.xlu0 %3657, %v3508
        %v3659 = vpop.permute.xlu0 %3658
        %3662 = vset.pattern.permute.xlu0 0
        %3663 = vperm.xlu0 %3662, %v3509
        %v3664 = vpop.permute.xlu0 %3663
        %3667 = vset.pattern.permute.xlu0 0
        %3668 = vperm.xlu0 %3667, %v3510
        %v3669 = vpop.permute.xlu0 %3668
        %v3671 = vmul.f32 %v1209, %v3514
        %v3672 = vmul.f32 %v1208, %v3519
        %v3673 = vmul.f32 %v1207, %v3524
        %v3674 = vmul.f32 %v1206, %v3529
        %v3675 = vmul.f32 %v1205, %v3534
        %v3676 = vmul.f32 %v1204, %v3539
        %v3677 = vmul.f32 %v1203, %v3544
        %v3678 = vmul.f32 %v1202, %v3549
        %v3679 = vmul.f32 %v1201, %v3554
        %v3680 = vmul.f32 %v1200, %v3559
        %v3681 = vmul.f32 %v1199, %v3564
        %v3682 = vmul.f32 %v1198, %v3569
        %v3683 = vmul.f32 %v1197, %v3574
        %v3684 = vmul.f32 %v1196, %v3579
        %v3685 = vmul.f32 %v1195, %v3584
        %v3686 = vmul.f32 %v1194, %v3589
        %v3687 = vmul.f32 %v1193, %v3594
        %v3688 = vmul.f32 %v1192, %v3599
        %v3689 = vmul.f32 %v1191, %v3604
        %v3690 = vmul.f32 %v1190, %v3609
        %v3691 = vmul.f32 %v1189, %v3614
        %v3692 = vmul.f32 %v1188, %v3619
        %v3693 = vmul.f32 %v1187, %v3624
        %v3694 = vmul.f32 %v1186, %v3629
        %v3695 = vmul.f32 %v1185, %v3634
        %v3696 = vmul.f32 %v1184, %v3639
        %v3697 = vmul.f32 %v1183, %v3644
        %v3698 = vmul.f32 %v1182, %v3649
        %v3699 = vmul.f32 %v1181, %v3654
        %v3700 = vmul.f32 %v1212, %v3659
        %v3701 = vmul.f32 %v1211, %v3664
        %v3702 = vmul.f32 %v1210, %v3669
        %v3703 = vpack.c.bf16 %v3672, %v3671
        %v3704 = vpack.c.bf16 %v3674, %v3673
        %v3705 = vpack.c.bf16 %v3676, %v3675
        %v3706 = vpack.c.bf16 %v3678, %v3677
        %v3707 = vpack.c.bf16 %v3680, %v3679
        %v3708 = vpack.c.bf16 %v3682, %v3681
        %v3709 = vpack.c.bf16 %v3684, %v3683
        %v3710 = vpack.c.bf16 %v3686, %v3685
        %v3711 = vpack.c.bf16 %v3688, %v3687
        %v3712 = vpack.c.bf16 %v3690, %v3689
        %v3713 = vpack.c.bf16 %v3692, %v3691
        %v3714 = vpack.c.bf16 %v3694, %v3693
        %v3715 = vpack.c.bf16 %v3696, %v3695
        %v3716 = vpack.c.bf16 %v3698, %v3697
        %v3717 = vpack.c.bf16 %v3700, %v3699
        %v3718 = vpack.c.bf16 %v3702, %v3701
        %s3719 = scalar_lea.vmem %s2, 16
        %v3720 = vld [vmem:[%s3719] sm:$0x3]
        %v3722 = vsel %vm866, %v3703, 0
        %v3725 = vsel %vm866, %v3704, 0
        %v3728 = vsel %vm866, %v3705, 0
        %v3731 = vsel %vm866, %v3706, 0
        %v3734 = vsel %vm866, %v3707, 0
        %v3737 = vsel %vm866, %v3708, 0
        %v3740 = vsel %vm866, %v3709, 0
        %v3743 = vsel %vm866, %v3710, 0
        %v3746 = vsel %vm866, %v3711, 0
        %v3749 = vsel %vm866, %v3712, 0
        %v3752 = vsel %vm866, %v3713, 0
        %v3755 = vsel %vm866, %v3714, 0
        %v3758 = vsel %vm866, %v3715, 0
        %v3761 = vsel %vm866, %v3716, 0
        %v3764 = vsel %vm866, %v3717, 0
        %v3767 = vsel %vm866, %v3718, 0
        %v3770 = vsel %vm915, %v3720, 0
        %3772 = vmatpush.bf16.msra.mxu0 0
        %3773 = vmatpush.bf16.msra.mxu0 0
        %3774 = vmatpush.bf16.msra.mxu0 0
        %3775 = vmatpush.bf16.msra.mxu0 0
        %3776 = vmatpush.bf16.msra.mxu0 0
        %3777 = vmatpush.bf16.msra.mxu0 0
        %3778 = vmatpush.bf16.msra.mxu0 0
        %3779 = vmatpush.bf16.msra.mxu0 %v3770
        %3780 = vmatmul.bf16.gmra.mxu0 %v3722
        %v3781 = vpop.f32.mrf.mxu0
        %v3782 = vadd.f32 0.0, %v3781
        %v3783 = vpop.f32.mrf.mxu0
        %v3784 = vadd.f32 0.0, %v3783
        %3785 = vmatmul.bf16.gmra.mxu0 %v3725
        %v3786 = vpop.f32.mrf.mxu0
        %v3787 = vadd.f32 0.0, %v3786
        %v3788 = vpop.f32.mrf.mxu0
        %v3789 = vadd.f32 0.0, %v3788
        %3790 = vmatmul.bf16.gmra.mxu0 %v3728
        %v3791 = vpop.f32.mrf.mxu0
        %v3792 = vadd.f32 0.0, %v3791
        %v3793 = vpop.f32.mrf.mxu0
        %v3794 = vadd.f32 0.0, %v3793
        %3795 = vmatmul.bf16.gmra.mxu0 %v3731
        %v3796 = vpop.f32.mrf.mxu0
        %v3797 = vadd.f32 0.0, %v3796
        %v3798 = vpop.f32.mrf.mxu0
        %v3799 = vadd.f32 0.0, %v3798
        %3800 = vmatmul.bf16.gmra.mxu0 %v3734
        %v3801 = vpop.f32.mrf.mxu0
        %v3802 = vadd.f32 0.0, %v3801
        %v3803 = vpop.f32.mrf.mxu0
        %v3804 = vadd.f32 0.0, %v3803
        %3805 = vmatmul.bf16.gmra.mxu0 %v3737
        %v3806 = vpop.f32.mrf.mxu0
        %v3807 = vadd.f32 0.0, %v3806
        %v3808 = vpop.f32.mrf.mxu0
        %v3809 = vadd.f32 0.0, %v3808
        %3810 = vmatmul.bf16.gmra.mxu0 %v3740
        %v3811 = vpop.f32.mrf.mxu0
        %v3812 = vadd.f32 0.0, %v3811
        %v3813 = vpop.f32.mrf.mxu0
        %v3814 = vadd.f32 0.0, %v3813
        %3815 = vmatmul.bf16.gmra.mxu0 %v3743
        %v3816 = vpop.f32.mrf.mxu0
        %v3817 = vadd.f32 0.0, %v3816
        %v3818 = vpop.f32.mrf.mxu0
        %v3819 = vadd.f32 0.0, %v3818
        %3820 = vmatmul.bf16.gmra.mxu0 %v3746
        %v3821 = vpop.f32.mrf.mxu0
        %v3822 = vadd.f32 0.0, %v3821
        %v3823 = vpop.f32.mrf.mxu0
        %v3824 = vadd.f32 0.0, %v3823
        %3825 = vmatmul.bf16.gmra.mxu0 %v3749
        %v3826 = vpop.f32.mrf.mxu0
        %v3827 = vadd.f32 0.0, %v3826
        %v3828 = vpop.f32.mrf.mxu0
        %v3829 = vadd.f32 0.0, %v3828
        %3830 = vmatmul.bf16.gmra.mxu0 %v3752
        %v3831 = vpop.f32.mrf.mxu0
        %v3832 = vadd.f32 0.0, %v3831
        %v3833 = vpop.f32.mrf.mxu0
        %v3834 = vadd.f32 0.0, %v3833
        %3835 = vmatmul.bf16.gmra.mxu0 %v3755
        %v3836 = vpop.f32.mrf.mxu0
        %v3837 = vadd.f32 0.0, %v3836
        %v3838 = vpop.f32.mrf.mxu0
        %v3839 = vadd.f32 0.0, %v3838
        %3840 = vmatmul.bf16.gmra.mxu0 %v3758
        %v3841 = vpop.f32.mrf.mxu0
        %v3842 = vadd.f32 0.0, %v3841
        %v3843 = vpop.f32.mrf.mxu0
        %v3844 = vadd.f32 0.0, %v3843
        %3845 = vmatmul.bf16.gmra.mxu0 %v3761
        %v3846 = vpop.f32.mrf.mxu0
        %v3847 = vadd.f32 0.0, %v3846
        %v3848 = vpop.f32.mrf.mxu0
        %v3849 = vadd.f32 0.0, %v3848
        %3850 = vmatmul.bf16.gmra.mxu0 %v3764
        %v3851 = vpop.f32.mrf.mxu0
        %v3852 = vadd.f32 0.0, %v3851
        %v3853 = vpop.f32.mrf.mxu0
        %v3854 = vadd.f32 0.0, %v3853
        %3855 = vmatmul.bf16.gmra.mxu0 %v3767
        %v3856 = vpop.f32.mrf.mxu0
        %v3857 = vadd.f32 0.0, %v3856
        %v3858 = vpop.f32.mrf.mxu0
        %v3859 = vadd.f32 0.0, %v3858
        %3860 = vdwg.mxu0
        %v3861 = vadd.f32 %v3446, %v3782
        %v3862 = vadd.f32 %v3447, %v3784
        %v3863 = vadd.f32 %v3448, %v3787
        %v3864 = vadd.f32 %v3449, %v3789
        %v3865 = vadd.f32 %v3450, %v3792
        %v3866 = vadd.f32 %v3451, %v3794
        %v3867 = vadd.f32 %v3452, %v3797
        %v3868 = vadd.f32 %v3453, %v3799
        %v3869 = vadd.f32 %v3454, %v3802
        %v3870 = vadd.f32 %v3455, %v3804
        %v3871 = vadd.f32 %v3456, %v3807
        %v3872 = vadd.f32 %v3457, %v3809
        %v3873 = vadd.f32 %v3458, %v3812
        %v3874 = vadd.f32 %v3459, %v3814
        %v3875 = vadd.f32 %v3460, %v3817
        %v3876 = vadd.f32 %v3461, %v3819
        %v3877 = vadd.f32 %v3462, %v3822
        %v3878 = vadd.f32 %v3463, %v3824
        %v3879 = vadd.f32 %v3464, %v3827
        %v3880 = vadd.f32 %v3465, %v3829
        %v3881 = vadd.f32 %v3466, %v3832
        %v3882 = vadd.f32 %v3467, %v3834
        %v3883 = vadd.f32 %v3468, %v3837
        %v3884 = vadd.f32 %v3469, %v3839
        %v3885 = vadd.f32 %v3470, %v3842
        %v3886 = vadd.f32 %v3471, %v3844
        %v3887 = vadd.f32 %v3472, %v3847
        %v3888 = vadd.f32 %v3473, %v3849
        %v3889 = vadd.f32 %v3474, %v3852
        %v3890 = vadd.f32 %v3475, %v3854
        %v3891 = vadd.f32 %v3476, %v3857
        %v3892 = vadd.f32 %v3477, %v3859
        %v3893 = vld [vmem:[%s3] sm:$0x1]
        %v3895 = vperm.slane %v3893, 0
        %v3897 = vadd.f32 %v3861, %v3895
        %v3898 = vadd.f32 %v3862, %v3895
        %v3899 = vadd.f32 %v3863, %v3895
        %v3900 = vadd.f32 %v3864, %v3895
        %v3901 = vadd.f32 %v3865, %v3895
        %v3902 = vadd.f32 %v3866, %v3895
        %v3903 = vadd.f32 %v3867, %v3895
        %v3904 = vadd.f32 %v3868, %v3895
        %v3905 = vadd.f32 %v3869, %v3895
        %v3906 = vadd.f32 %v3870, %v3895
        %v3907 = vadd.f32 %v3871, %v3895
        %v3908 = vadd.f32 %v3872, %v3895
        %v3909 = vadd.f32 %v3873, %v3895
        %v3910 = vadd.f32 %v3874, %v3895
        %v3911 = vadd.f32 %v3875, %v3895
        %v3912 = vadd.f32 %v3876, %v3895
        %v3913 = vadd.f32 %v3877, %v3895
        %v3914 = vadd.f32 %v3878, %v3895
        %v3915 = vadd.f32 %v3879, %v3895
        %v3916 = vadd.f32 %v3880, %v3895
        %v3917 = vadd.f32 %v3881, %v3895
        %v3918 = vadd.f32 %v3882, %v3895
        %v3919 = vadd.f32 %v3883, %v3895
        %v3920 = vadd.f32 %v3884, %v3895
        %v3921 = vadd.f32 %v3885, %v3895
        %v3922 = vadd.f32 %v3886, %v3895
        %v3923 = vadd.f32 %v3887, %v3895
        %v3924 = vadd.f32 %v3888, %v3895
        %v3925 = vadd.f32 %v3889, %v3895
        %v3926 = vadd.f32 %v3890, %v3895
        %v3927 = vadd.f32 %v3891, %v3895
        %v3928 = vadd.f32 %v3892, %v3895
        %v3929 = vmax.f32 %v3897, 0.0
        %v3930 = vmax.f32 %v3898, 0.0
        %v3931 = vmax.f32 %v3899, 0.0
        %v3932 = vmax.f32 %v3900, 0.0
        %v3933 = vmax.f32 %v3901, 0.0
        %v3934 = vmax.f32 %v3902, 0.0
        %v3935 = vmax.f32 %v3903, 0.0
        %v3936 = vmax.f32 %v3904, 0.0
        %v3937 = vmax.f32 %v3905, 0.0
        %v3938 = vmax.f32 %v3906, 0.0
        %v3939 = vmax.f32 %v3907, 0.0
        %v3940 = vmax.f32 %v3908, 0.0
        %v3941 = vmax.f32 %v3909, 0.0
        %v3942 = vmax.f32 %v3910, 0.0
        %v3943 = vmax.f32 %v3911, 0.0
        %v3944 = vmax.f32 %v3912, 0.0
        %v3945 = vmax.f32 %v3913, 0.0
        %v3946 = vmax.f32 %v3914, 0.0
        %v3947 = vmax.f32 %v3915, 0.0
        %v3948 = vmax.f32 %v3916, 0.0
        %v3949 = vmax.f32 %v3917, 0.0
        %v3950 = vmax.f32 %v3918, 0.0
        %v3951 = vmax.f32 %v3919, 0.0
        %v3952 = vmax.f32 %v3920, 0.0
        %v3953 = vmax.f32 %v3921, 0.0
        %v3954 = vmax.f32 %v3922, 0.0
        %v3955 = vmax.f32 %v3923, 0.0
        %v3956 = vmax.f32 %v3924, 0.0
        %v3957 = vmax.f32 %v3925, 0.0
        %v3958 = vmax.f32 %v3926, 0.0
        %v3959 = vmax.f32 %v3927, 0.0
        %v3960 = vmax.f32 %v3928, 0.0
        %v3961 = vrot.slane %v3929, 7
        %v3962 = vrot.slane %v3930, 7
        %v3963 = vrot.slane %v3931, 7
        %v3964 = vrot.slane %v3932, 7
        %v3965 = vrot.slane %v3933, 7
        %v3966 = vrot.slane %v3934, 7
        %v3967 = vrot.slane %v3935, 7
        %v3968 = vrot.slane %v3936, 7
        %v3969 = vrot.slane %v3937, 7
        %v3970 = vrot.slane %v3938, 7
        %v3971 = vrot.slane %v3939, 7
        %v3972 = vrot.slane %v3940, 7
        %v3973 = vrot.slane %v3941, 7
        %v3974 = vrot.slane %v3942, 7
        %v3975 = vrot.slane %v3943, 7
        %v3976 = vrot.slane %v3944, 7
        %v3977 = vrot.slane %v3945, 7
        %v3978 = vrot.slane %v3946, 7
        %v3979 = vrot.slane %v3947, 7
        %v3980 = vrot.slane %v3948, 7
        %v3981 = vrot.slane %v3949, 7
        %v3982 = vrot.slane %v3950, 7
        %v3983 = vrot.slane %v3951, 7
        %v3984 = vrot.slane %v3952, 7
        %v3985 = vrot.slane %v3953, 7
        %v3986 = vrot.slane %v3954, 7
        %v3987 = vrot.slane %v3955, 7
        %v3988 = vrot.slane %v3956, 7
        %v3989 = vrot.slane %v3957, 7
        %v3990 = vrot.slane %v3958, 7
        %v3991 = vrot.slane %v3959, 7
        %v3992 = vrot.slane %v3960, 7
        %v3993 = vsel %vm349, %v3991, %v3992
        %v3994 = vsel %vm349, %v3990, %v3991
        %v3995 = vsel %vm349, %v3989, %v3990
        %v3996 = vsel %vm349, %v3988, %v3989
        %v3997 = vsel %vm349, %v3987, %v3988
        %v3998 = vsel %vm349, %v3986, %v3987
        %v3999 = vsel %vm349, %v3985, %v3986
        %v4000 = vsel %vm349, %v3984, %v3985
        %v4001 = vsel %vm349, %v3983, %v3984
        %v4002 = vsel %vm349, %v3982, %v3983
        %v4003 = vsel %vm349, %v3981, %v3982
        %v4004 = vsel %vm349, %v3980, %v3981
        %v4005 = vsel %vm349, %v3979, %v3980
        %v4006 = vsel %vm349, %v3978, %v3979
        %v4007 = vsel %vm349, %v3977, %v3978
        %v4008 = vsel %vm349, %v3976, %v3977
        %v4009 = vsel %vm349, %v3975, %v3976
        %v4010 = vsel %vm349, %v3974, %v3975
        %v4011 = vsel %vm349, %v3973, %v3974
        %v4012 = vsel %vm349, %v3972, %v3973
        %v4013 = vsel %vm349, %v3971, %v3972
        %v4014 = vsel %vm349, %v3970, %v3971
        %v4015 = vsel %vm349, %v3969, %v3970
        %v4016 = vsel %vm349, %v3968, %v3969
        %v4017 = vsel %vm349, %v3967, %v3968
        %v4018 = vsel %vm349, %v3966, %v3967
        %v4019 = vsel %vm349, %v3965, %v3966
        %v4020 = vsel %vm349, %v3964, %v3965
        %v4021 = vsel %vm349, %v3963, %v3964
        %v4022 = vsel %vm349, %v3962, %v3963
        %v4023 = vsel %vm349, %v3961, %v3962
        %v4024 = vsel %vm349, %v3992, %v3961
        %v4025 = vmul.f32 %v3994, %v417
        %v4026 = vmul.f32 %v3993, %v422
        %v4027 = vmul.f32 %v4024, %v427
        %v4028 = vmul.f32 %v4023, %v432
        %v4029 = vmul.f32 %v4022, %v437
        %v4030 = vmul.f32 %v4021, %v442
        %v4031 = vmul.f32 %v4020, %v447
        %v4032 = vmul.f32 %v4019, %v452
        %v4033 = vmul.f32 %v4018, %v457
        %v4034 = vmul.f32 %v4017, %v462
        %v4035 = vmul.f32 %v4016, %v467
        %v4036 = vmul.f32 %v4015, %v472
        %v4037 = vmul.f32 %v4014, %v477
        %v4038 = vmul.f32 %v4013, %v482
        %v4039 = vmul.f32 %v4012, %v487
        %v4040 = vmul.f32 %v4011, %v492
        %v4041 = vmul.f32 %v4010, %v497
        %v4042 = vmul.f32 %v4009, %v502
        %v4043 = vmul.f32 %v4008, %v507
        %v4044 = vmul.f32 %v4007, %v512
        %v4045 = vmul.f32 %v4006, %v517
        %v4046 = vmul.f32 %v4005, %v522
        %v4047 = vmul.f32 %v4004, %v527
        %v4048 = vmul.f32 %v4003, %v532
        %v4049 = vmul.f32 %v4002, %v537
        %v4050 = vmul.f32 %v4001, %v542
        %v4051 = vmul.f32 %v4000, %v547
        %v4052 = vmul.f32 %v3999, %v552
        %v4053 = vmul.f32 %v3998, %v557
        %v4054 = vmul.f32 %v3997, %v562
        %v4055 = vmul.f32 %v3996, %v567
        %v4056 = vmul.f32 %v3995, %v572
        %v4057 = vpack.c.bf16 %v4026, %v4025
        %v4058 = vpack.c.bf16 %v4028, %v4027
        %v4059 = vpack.c.bf16 %v4030, %v4029
        %v4060 = vpack.c.bf16 %v4032, %v4031
        %v4061 = vpack.c.bf16 %v4034, %v4033
        %v4062 = vpack.c.bf16 %v4036, %v4035
        %v4063 = vpack.c.bf16 %v4038, %v4037
        %v4064 = vpack.c.bf16 %v4040, %v4039
        %v4065 = vpack.c.bf16 %v4042, %v4041
        %v4066 = vpack.c.bf16 %v4044, %v4043
        %v4067 = vpack.c.bf16 %v4046, %v4045
        %v4068 = vpack.c.bf16 %v4048, %v4047
        %v4069 = vpack.c.bf16 %v4050, %v4049
        %v4070 = vpack.c.bf16 %v4052, %v4051
        %v4071 = vpack.c.bf16 %v4054, %v4053
        %v4072 = vpack.c.bf16 %v4056, %v4055
        %v4073 = vld [vmem:[%s4] sm:$0xf]
        %v4074 = vmul.f32 %v3959, %v659
        %v4075 = vmul.f32 %v3960, %v664
        %v4076 = vmul.f32 %v3929, %v669
        %v4077 = vmul.f32 %v3930, %v674
        %v4078 = vmul.f32 %v3931, %v679
        %v4079 = vmul.f32 %v3932, %v684
        %v4080 = vmul.f32 %v3933, %v689
        %v4081 = vmul.f32 %v3934, %v694
        %v4082 = vmul.f32 %v3935, %v699
        %v4083 = vmul.f32 %v3936, %v704
        %v4084 = vmul.f32 %v3937, %v709
        %v4085 = vmul.f32 %v3938, %v714
        %v4086 = vmul.f32 %v3939, %v719
        %v4087 = vmul.f32 %v3940, %v724
        %v4088 = vmul.f32 %v3941, %v729
        %v4089 = vmul.f32 %v3942, %v734
        %v4090 = vmul.f32 %v3943, %v739
        %v4091 = vmul.f32 %v3944, %v744
        %v4092 = vmul.f32 %v3945, %v749
        %v4093 = vmul.f32 %v3946, %v754
        %v4094 = vmul.f32 %v3947, %v759
        %v4095 = vmul.f32 %v3948, %v764
        %v4096 = vmul.f32 %v3949, %v769
        %v4097 = vmul.f32 %v3950, %v774
        %v4098 = vmul.f32 %v3951, %v779
        %v4099 = vmul.f32 %v3952, %v784
        %v4100 = vmul.f32 %v3953, %v789
        %v4101 = vmul.f32 %v3954, %v794
        %v4102 = vmul.f32 %v3955, %v799
        %v4103 = vmul.f32 %v3956, %v804
        %v4104 = vmul.f32 %v3957, %v809
        %v4105 = vmul.f32 %v3958, %v814
        %v4106 = vpack.c.bf16 %v4075, %v4074
        %v4107 = vpack.c.bf16 %v4077, %v4076
        %v4108 = vpack.c.bf16 %v4079, %v4078
        %v4109 = vpack.c.bf16 %v4081, %v4080
        %v4110 = vpack.c.bf16 %v4083, %v4082
        %v4111 = vpack.c.bf16 %v4085, %v4084
        %v4112 = vpack.c.bf16 %v4087, %v4086
        %v4113 = vpack.c.bf16 %v4089, %v4088
        %v4114 = vpack.c.bf16 %v4091, %v4090
        %v4115 = vpack.c.bf16 %v4093, %v4092
        %v4116 = vpack.c.bf16 %v4095, %v4094
        %v4117 = vpack.c.bf16 %v4097, %v4096
        %v4118 = vpack.c.bf16 %v4099, %v4098
        %v4119 = vpack.c.bf16 %v4101, %v4100
        %v4120 = vpack.c.bf16 %v4103, %v4102
        %v4121 = vpack.c.bf16 %v4105, %v4104
        %s4122 = scalar_lea.vmem %s4, 4
        %v4123 = vld [vmem:[%s4122] sm:$0xf]
        %vm4124 = vcmask 64512
        %v4126 = vsel %vm4124, %v4106, 0
        %v4129 = vsel %vm4124, %v4107, 0
        %v4132 = vsel %vm4124, %v4108, 0
        %v4135 = vsel %vm4124, %v4109, 0
        %v4138 = vsel %vm4124, %v4110, 0
        %v4141 = vsel %vm4124, %v4111, 0
        %v4144 = vsel %vm4124, %v4112, 0
        %v4147 = vsel %vm4124, %v4113, 0
        %v4150 = vsel %vm4124, %v4114, 0
        %v4153 = vsel %vm4124, %v4115, 0
        %v4156 = vsel %vm4124, %v4116, 0
        %v4159 = vsel %vm4124, %v4117, 0
        %v4162 = vsel %vm4124, %v4118, 0
        %v4165 = vsel %vm4124, %v4119, 0
        %v4168 = vsel %vm4124, %v4120, 0
        %v4171 = vsel %vm4124, %v4121, 0
        %vm4173 = vcmask 1043456
        %v4175 = vsel %vm4173, %v4123, 0
        %4177 = vmatpush.bf16.msra.mxu0 0
        %4178 = vmatpush.bf16.msra.mxu0 0
        %4179 = vmatpush.bf16.msra.mxu0 0
        %4180 = vmatpush.bf16.msra.mxu0 0
        %4181 = vmatpush.bf16.msra.mxu0 0
        %4182 = vmatpush.bf16.msra.mxu0 0
        %4183 = vmatpush.bf16.msra.mxu0 0
        %4184 = vmatpush.bf16.msra.mxu0 %v4175
        %4185 = vmatmul.bf16.gmra.mxu0 %v4126
        %v4186 = vpop.f32.mrf.mxu0
        %v4187 = vadd.f32 0.0, %v4186
        %v4188 = vpop.f32.mrf.mxu0
        %v4189 = vadd.f32 0.0, %v4188
        %4190 = vmatmul.bf16.gmra.mxu0 %v4129
        %v4191 = vpop.f32.mrf.mxu0
        %v4192 = vadd.f32 0.0, %v4191
        %v4193 = vpop.f32.mrf.mxu0
        %v4194 = vadd.f32 0.0, %v4193
        %4195 = vmatmul.bf16.gmra.mxu0 %v4132
        %v4196 = vpop.f32.mrf.mxu0
        %v4197 = vadd.f32 0.0, %v4196
        %v4198 = vpop.f32.mrf.mxu0
        %v4199 = vadd.f32 0.0, %v4198
        %4200 = vmatmul.bf16.gmra.mxu0 %v4135
        %v4201 = vpop.f32.mrf.mxu0
        %v4202 = vadd.f32 0.0, %v4201
        %v4203 = vpop.f32.mrf.mxu0
        %v4204 = vadd.f32 0.0, %v4203
        %4205 = vmatmul.bf16.gmra.mxu0 %v4138
        %v4206 = vpop.f32.mrf.mxu0
        %v4207 = vadd.f32 0.0, %v4206
        %v4208 = vpop.f32.mrf.mxu0
        %v4209 = vadd.f32 0.0, %v4208
        %4210 = vmatmul.bf16.gmra.mxu0 %v4141
        %v4211 = vpop.f32.mrf.mxu0
        %v4212 = vadd.f32 0.0, %v4211
        %v4213 = vpop.f32.mrf.mxu0
        %v4214 = vadd.f32 0.0, %v4213
        %4215 = vmatmul.bf16.gmra.mxu0 %v4144
        %v4216 = vpop.f32.mrf.mxu0
        %v4217 = vadd.f32 0.0, %v4216
        %v4218 = vpop.f32.mrf.mxu0
        %v4219 = vadd.f32 0.0, %v4218
        %4220 = vmatmul.bf16.gmra.mxu0 %v4147
        %v4221 = vpop.f32.mrf.mxu0
        %v4222 = vadd.f32 0.0, %v4221
        %v4223 = vpop.f32.mrf.mxu0
        %v4224 = vadd.f32 0.0, %v4223
        %4225 = vmatmul.bf16.gmra.mxu0 %v4150
        %v4226 = vpop.f32.mrf.mxu0
        %v4227 = vadd.f32 0.0, %v4226
        %v4228 = vpop.f32.mrf.mxu0
        %v4229 = vadd.f32 0.0, %v4228
        %4230 = vmatmul.bf16.gmra.mxu0 %v4153
        %v4231 = vpop.f32.mrf.mxu0
        %v4232 = vadd.f32 0.0, %v4231
        %v4233 = vpop.f32.mrf.mxu0
        %v4234 = vadd.f32 0.0, %v4233
        %4235 = vmatmul.bf16.gmra.mxu0 %v4156
        %v4236 = vpop.f32.mrf.mxu0
        %v4237 = vadd.f32 0.0, %v4236
        %v4238 = vpop.f32.mrf.mxu0
        %v4239 = vadd.f32 0.0, %v4238
        %4240 = vmatmul.bf16.gmra.mxu0 %v4159
        %v4241 = vpop.f32.mrf.mxu0
        %v4242 = vadd.f32 0.0, %v4241
        %v4243 = vpop.f32.mrf.mxu0
        %v4244 = vadd.f32 0.0, %v4243
        %4245 = vmatmul.bf16.gmra.mxu0 %v4162
        %v4246 = vpop.f32.mrf.mxu0
        %v4247 = vadd.f32 0.0, %v4246
        %v4248 = vpop.f32.mrf.mxu0
        %v4249 = vadd.f32 0.0, %v4248
        %4250 = vmatmul.bf16.gmra.mxu0 %v4165
        %v4251 = vpop.f32.mrf.mxu0
        %v4252 = vadd.f32 0.0, %v4251
        %v4253 = vpop.f32.mrf.mxu0
        %v4254 = vadd.f32 0.0, %v4253
        %4255 = vmatmul.bf16.gmra.mxu0 %v4168
        %v4256 = vpop.f32.mrf.mxu0
        %v4257 = vadd.f32 0.0, %v4256
        %v4258 = vpop.f32.mrf.mxu0
        %v4259 = vadd.f32 0.0, %v4258
        %4260 = vmatmul.bf16.gmra.mxu0 %v4171
        %v4261 = vpop.f32.mrf.mxu0
        %v4262 = vadd.f32 0.0, %v4261
        %v4263 = vpop.f32.mrf.mxu0
        %v4264 = vadd.f32 0.0, %v4263
        %4265 = vdwg.mxu0
        %v4267 = vsel %vm4124, %v4057, 0
        %v4270 = vsel %vm4124, %v4058, 0
        %v4273 = vsel %vm4124, %v4059, 0
        %v4276 = vsel %vm4124, %v4060, 0
        %v4279 = vsel %vm4124, %v4061, 0
        %v4282 = vsel %vm4124, %v4062, 0
        %v4285 = vsel %vm4124, %v4063, 0
        %v4288 = vsel %vm4124, %v4064, 0
        %v4291 = vsel %vm4124, %v4065, 0
        %v4294 = vsel %vm4124, %v4066, 0
        %v4297 = vsel %vm4124, %v4067, 0
        %v4300 = vsel %vm4124, %v4068, 0
        %v4303 = vsel %vm4124, %v4069, 0
        %v4306 = vsel %vm4124, %v4070, 0
        %v4309 = vsel %vm4124, %v4071, 0
        %v4312 = vsel %vm4124, %v4072, 0
        %v4315 = vsel %vm4173, %v4073, 0
        %4317 = vmatpush.bf16.msra.mxu0 0
        %4318 = vmatpush.bf16.msra.mxu0 0
        %4319 = vmatpush.bf16.msra.mxu0 0
        %4320 = vmatpush.bf16.msra.mxu0 0
        %4321 = vmatpush.bf16.msra.mxu0 0
        %4322 = vmatpush.bf16.msra.mxu0 0
        %4323 = vmatpush.bf16.msra.mxu0 0
        %4324 = vmatpush.bf16.msra.mxu0 %v4315
        %4325 = vmatmul.bf16.gmra.mxu0 %v4267
        %v4326 = vpop.f32.mrf.mxu0
        %v4327 = vadd.f32 %v4187, %v4326
        %v4328 = vpop.f32.mrf.mxu0
        %v4329 = vadd.f32 %v4189, %v4328
        %4330 = vmatmul.bf16.gmra.mxu0 %v4270
        %v4331 = vpop.f32.mrf.mxu0
        %v4332 = vadd.f32 %v4192, %v4331
        %v4333 = vpop.f32.mrf.mxu0
        %v4334 = vadd.f32 %v4194, %v4333
        %4335 = vmatmul.bf16.gmra.mxu0 %v4273
        %v4336 = vpop.f32.mrf.mxu0
        %v4337 = vadd.f32 %v4197, %v4336
        %v4338 = vpop.f32.mrf.mxu0
        %v4339 = vadd.f32 %v4199, %v4338
        %4340 = vmatmul.bf16.gmra.mxu0 %v4276
        %v4341 = vpop.f32.mrf.mxu0
        %v4342 = vadd.f32 %v4202, %v4341
        %v4343 = vpop.f32.mrf.mxu0
        %v4344 = vadd.f32 %v4204, %v4343
        %4345 = vmatmul.bf16.gmra.mxu0 %v4279
        %v4346 = vpop.f32.mrf.mxu0
        %v4347 = vadd.f32 %v4207, %v4346
        %v4348 = vpop.f32.mrf.mxu0
        %v4349 = vadd.f32 %v4209, %v4348
        %4350 = vmatmul.bf16.gmra.mxu0 %v4282
        %v4351 = vpop.f32.mrf.mxu0
        %v4352 = vadd.f32 %v4212, %v4351
        %v4353 = vpop.f32.mrf.mxu0
        %v4354 = vadd.f32 %v4214, %v4353
        %4355 = vmatmul.bf16.gmra.mxu0 %v4285
        %v4356 = vpop.f32.mrf.mxu0
        %v4357 = vadd.f32 %v4217, %v4356
        %v4358 = vpop.f32.mrf.mxu0
        %v4359 = vadd.f32 %v4219, %v4358
        %4360 = vmatmul.bf16.gmra.mxu0 %v4288
        %v4361 = vpop.f32.mrf.mxu0
        %v4362 = vadd.f32 %v4222, %v4361
        %v4363 = vpop.f32.mrf.mxu0
        %v4364 = vadd.f32 %v4224, %v4363
        %4365 = vmatmul.bf16.gmra.mxu0 %v4291
        %v4366 = vpop.f32.mrf.mxu0
        %v4367 = vadd.f32 %v4227, %v4366
        %v4368 = vpop.f32.mrf.mxu0
        %v4369 = vadd.f32 %v4229, %v4368
        %4370 = vmatmul.bf16.gmra.mxu0 %v4294
        %v4371 = vpop.f32.mrf.mxu0
        %v4372 = vadd.f32 %v4232, %v4371
        %v4373 = vpop.f32.mrf.mxu0
        %v4374 = vadd.f32 %v4234, %v4373
        %4375 = vmatmul.bf16.gmra.mxu0 %v4297
        %v4376 = vpop.f32.mrf.mxu0
        %v4377 = vadd.f32 %v4237, %v4376
        %v4378 = vpop.f32.mrf.mxu0
        %v4379 = vadd.f32 %v4239, %v4378
        %4380 = vmatmul.bf16.gmra.mxu0 %v4300
        %v4381 = vpop.f32.mrf.mxu0
        %v4382 = vadd.f32 %v4242, %v4381
        %v4383 = vpop.f32.mrf.mxu0
        %v4384 = vadd.f32 %v4244, %v4383
        %4385 = vmatmul.bf16.gmra.mxu0 %v4303
        %v4386 = vpop.f32.mrf.mxu0
        %v4387 = vadd.f32 %v4247, %v4386
        %v4388 = vpop.f32.mrf.mxu0
        %v4389 = vadd.f32 %v4249, %v4388
        %4390 = vmatmul.bf16.gmra.mxu0 %v4306
        %v4391 = vpop.f32.mrf.mxu0
        %v4392 = vadd.f32 %v4252, %v4391
        %v4393 = vpop.f32.mrf.mxu0
        %v4394 = vadd.f32 %v4254, %v4393
        %4395 = vmatmul.bf16.gmra.mxu0 %v4309
        %v4396 = vpop.f32.mrf.mxu0
        %v4397 = vadd.f32 %v4257, %v4396
        %v4398 = vpop.f32.mrf.mxu0
        %v4399 = vadd.f32 %v4259, %v4398
        %4400 = vmatmul.bf16.gmra.mxu0 %v4312
        %v4401 = vpop.f32.mrf.mxu0
        %v4402 = vadd.f32 %v4262, %v4401
        %v4403 = vpop.f32.mrf.mxu0
        %v4404 = vadd.f32 %v4264, %v4403
        %4405 = vdwg.mxu0
        %v4406 = vrot.slane %v3929, 1
        %v4407 = vrot.slane %v3930, 1
        %v4408 = vrot.slane %v3931, 1
        %v4409 = vrot.slane %v3932, 1
        %v4410 = vrot.slane %v3933, 1
        %v4411 = vrot.slane %v3934, 1
        %v4412 = vrot.slane %v3935, 1
        %v4413 = vrot.slane %v3936, 1
        %v4414 = vrot.slane %v3937, 1
        %v4415 = vrot.slane %v3938, 1
        %v4416 = vrot.slane %v3939, 1
        %v4417 = vrot.slane %v3940, 1
        %v4418 = vrot.slane %v3941, 1
        %v4419 = vrot.slane %v3942, 1
        %v4420 = vrot.slane %v3943, 1
        %v4421 = vrot.slane %v3944, 1
        %v4422 = vrot.slane %v3945, 1
        %v4423 = vrot.slane %v3946, 1
        %v4424 = vrot.slane %v3947, 1
        %v4425 = vrot.slane %v3948, 1
        %v4426 = vrot.slane %v3949, 1
        %v4427 = vrot.slane %v3950, 1
        %v4428 = vrot.slane %v3951, 1
        %v4429 = vrot.slane %v3952, 1
        %v4430 = vrot.slane %v3953, 1
        %v4431 = vrot.slane %v3954, 1
        %v4432 = vrot.slane %v3955, 1
        %v4433 = vrot.slane %v3956, 1
        %v4434 = vrot.slane %v3957, 1
        %v4435 = vrot.slane %v3958, 1
        %v4436 = vrot.slane %v3959, 1
        %v4437 = vrot.slane %v3960, 1
        %v4438 = vsel %vm1180, %v4436, %v4437
        %v4439 = vsel %vm1180, %v4435, %v4436
        %v4440 = vsel %vm1180, %v4434, %v4435
        %v4441 = vsel %vm1180, %v4433, %v4434
        %v4442 = vsel %vm1180, %v4432, %v4433
        %v4443 = vsel %vm1180, %v4431, %v4432
        %v4444 = vsel %vm1180, %v4430, %v4431
        %v4445 = vsel %vm1180, %v4429, %v4430
        %v4446 = vsel %vm1180, %v4428, %v4429
        %v4447 = vsel %vm1180, %v4427, %v4428
        %v4448 = vsel %vm1180, %v4426, %v4427
        %v4449 = vsel %vm1180, %v4425, %v4426
        %v4450 = vsel %vm1180, %v4424, %v4425
        %v4451 = vsel %vm1180, %v4423, %v4424
        %v4452 = vsel %vm1180, %v4422, %v4423
        %v4453 = vsel %vm1180, %v4421, %v4422
        %v4454 = vsel %vm1180, %v4420, %v4421
        %v4455 = vsel %vm1180, %v4419, %v4420
        %v4456 = vsel %vm1180, %v4418, %v4419
        %v4457 = vsel %vm1180, %v4417, %v4418
        %v4458 = vsel %vm1180, %v4416, %v4417
        %v4459 = vsel %vm1180, %v4415, %v4416
        %v4460 = vsel %vm1180, %v4414, %v4415
        %v4461 = vsel %vm1180, %v4413, %v4414
        %v4462 = vsel %vm1180, %v4412, %v4413
        %v4463 = vsel %vm1180, %v4411, %v4412
        %v4464 = vsel %vm1180, %v4410, %v4411
        %v4465 = vsel %vm1180, %v4409, %v4410
        %v4466 = vsel %vm1180, %v4408, %v4409
        %v4467 = vsel %vm1180, %v4407, %v4408
        %v4468 = vsel %vm1180, %v4406, %v4407
        %v4469 = vsel %vm1180, %v4437, %v4406
        %v4470 = vmul.f32 %v4438, %v1249
        %v4471 = vmul.f32 %v4469, %v1254
        %v4472 = vmul.f32 %v4468, %v1259
        %v4473 = vmul.f32 %v4467, %v1264
        %v4474 = vmul.f32 %v4466, %v1269
        %v4475 = vmul.f32 %v4465, %v1274
        %v4476 = vmul.f32 %v4464, %v1279
        %v4477 = vmul.f32 %v4463, %v1284
        %v4478 = vmul.f32 %v4462, %v1289
        %v4479 = vmul.f32 %v4461, %v1294
        %v4480 = vmul.f32 %v4460, %v1299
        %v4481 = vmul.f32 %v4459, %v1304
        %v4482 = vmul.f32 %v4458, %v1309
        %v4483 = vmul.f32 %v4457, %v1314
        %v4484 = vmul.f32 %v4456, %v1319
        %v4485 = vmul.f32 %v4455, %v1324
        %v4486 = vmul.f32 %v4454, %v1329
        %v4487 = vmul.f32 %v4453, %v1334
        %v4488 = vmul.f32 %v4452, %v1339
        %v4489 = vmul.f32 %v4451, %v1344
        %v4490 = vmul.f32 %v4450, %v1349
        %v4491 = vmul.f32 %v4449, %v1354
        %v4492 = vmul.f32 %v4448, %v1359
        %v4493 = vmul.f32 %v4447, %v1364
        %v4494 = vmul.f32 %v4446, %v1369
        %v4495 = vmul.f32 %v4445, %v1374
        %v4496 = vmul.f32 %v4444, %v1379
        %v4497 = vmul.f32 %v4443, %v1384
        %v4498 = vmul.f32 %v4442, %v1389
        %v4499 = vmul.f32 %v4441, %v1394
        %v4500 = vmul.f32 %v4440, %v1399
        %v4501 = vmul.f32 %v4439, %v1404
        %v4502 = vpack.c.bf16 %v4471, %v4470
        %v4503 = vpack.c.bf16 %v4473, %v4472
        %v4504 = vpack.c.bf16 %v4475, %v4474
        %v4505 = vpack.c.bf16 %v4477, %v4476
        %v4506 = vpack.c.bf16 %v4479, %v4478
        %v4507 = vpack.c.bf16 %v4481, %v4480
        %v4508 = vpack.c.bf16 %v4483, %v4482
        %v4509 = vpack.c.bf16 %v4485, %v4484
        %v4510 = vpack.c.bf16 %v4487, %v4486
        %v4511 = vpack.c.bf16 %v4489, %v4488
        %v4512 = vpack.c.bf16 %v4491, %v4490
        %v4513 = vpack.c.bf16 %v4493, %v4492
        %v4514 = vpack.c.bf16 %v4495, %v4494
        %v4515 = vpack.c.bf16 %v4497, %v4496
        %v4516 = vpack.c.bf16 %v4499, %v4498
        %v4517 = vpack.c.bf16 %v4501, %v4500
        %s4518 = scalar_lea.vmem %s4, 8
        %v4519 = vld [vmem:[%s4518] sm:$0xf]
        %v4521 = vsel %vm4124, %v4502, 0
        %v4524 = vsel %vm4124, %v4503, 0
        %v4527 = vsel %vm4124, %v4504, 0
        %v4530 = vsel %vm4124, %v4505, 0
        %v4533 = vsel %vm4124, %v4506, 0
        %v4536 = vsel %vm4124, %v4507, 0
        %v4539 = vsel %vm4124, %v4508, 0
        %v4542 = vsel %vm4124, %v4509, 0
        %v4545 = vsel %vm4124, %v4510, 0
        %v4548 = vsel %vm4124, %v4511, 0
        %v4551 = vsel %vm4124, %v4512, 0
        %v4554 = vsel %vm4124, %v4513, 0
        %v4557 = vsel %vm4124, %v4514, 0
        %v4560 = vsel %vm4124, %v4515, 0
        %v4563 = vsel %vm4124, %v4516, 0
        %v4566 = vsel %vm4124, %v4517, 0
        %v4569 = vsel %vm4173, %v4519, 0
        %4571 = vmatpush.bf16.msra.mxu0 0
        %4572 = vmatpush.bf16.msra.mxu0 0
        %4573 = vmatpush.bf16.msra.mxu0 0
        %4574 = vmatpush.bf16.msra.mxu0 0
        %4575 = vmatpush.bf16.msra.mxu0 0
        %4576 = vmatpush.bf16.msra.mxu0 0
        %4577 = vmatpush.bf16.msra.mxu0 0
        %4578 = vmatpush.bf16.msra.mxu0 %v4569
        %4579 = vmatmul.bf16.gmra.mxu0 %v4521
        %v4580 = vpop.f32.mrf.mxu0
        %v4581 = vadd.f32 0.0, %v4580
        %v4582 = vpop.f32.mrf.mxu0
        %v4583 = vadd.f32 0.0, %v4582
        %4584 = vmatmul.bf16.gmra.mxu0 %v4524
        %v4585 = vpop.f32.mrf.mxu0
        %v4586 = vadd.f32 0.0, %v4585
        %v4587 = vpop.f32.mrf.mxu0
        %v4588 = vadd.f32 0.0, %v4587
        %4589 = vmatmul.bf16.gmra.mxu0 %v4527
        %v4590 = vpop.f32.mrf.mxu0
        %v4591 = vadd.f32 0.0, %v4590
        %v4592 = vpop.f32.mrf.mxu0
        %v4593 = vadd.f32 0.0, %v4592
        %4594 = vmatmul.bf16.gmra.mxu0 %v4530
        %v4595 = vpop.f32.mrf.mxu0
        %v4596 = vadd.f32 0.0, %v4595
        %v4597 = vpop.f32.mrf.mxu0
        %v4598 = vadd.f32 0.0, %v4597
        %4599 = vmatmul.bf16.gmra.mxu0 %v4533
        %v4600 = vpop.f32.mrf.mxu0
        %v4601 = vadd.f32 0.0, %v4600
        %v4602 = vpop.f32.mrf.mxu0
        %v4603 = vadd.f32 0.0, %v4602
        %4604 = vmatmul.bf16.gmra.mxu0 %v4536
        %v4605 = vpop.f32.mrf.mxu0
        %v4606 = vadd.f32 0.0, %v4605
        %v4607 = vpop.f32.mrf.mxu0
        %v4608 = vadd.f32 0.0, %v4607
        %4609 = vmatmul.bf16.gmra.mxu0 %v4539
        %v4610 = vpop.f32.mrf.mxu0
        %v4611 = vadd.f32 0.0, %v4610
        %v4612 = vpop.f32.mrf.mxu0
        %v4613 = vadd.f32 0.0, %v4612
        %4614 = vmatmul.bf16.gmra.mxu0 %v4542
        %v4615 = vpop.f32.mrf.mxu0
        %v4616 = vadd.f32 0.0, %v4615
        %v4617 = vpop.f32.mrf.mxu0
        %v4618 = vadd.f32 0.0, %v4617
        %4619 = vmatmul.bf16.gmra.mxu0 %v4545
        %v4620 = vpop.f32.mrf.mxu0
        %v4621 = vadd.f32 0.0, %v4620
        %v4622 = vpop.f32.mrf.mxu0
        %v4623 = vadd.f32 0.0, %v4622
        %4624 = vmatmul.bf16.gmra.mxu0 %v4548
        %v4625 = vpop.f32.mrf.mxu0
        %v4626 = vadd.f32 0.0, %v4625
        %v4627 = vpop.f32.mrf.mxu0
        %v4628 = vadd.f32 0.0, %v4627
        %4629 = vmatmul.bf16.gmra.mxu0 %v4551
        %v4630 = vpop.f32.mrf.mxu0
        %v4631 = vadd.f32 0.0, %v4630
        %v4632 = vpop.f32.mrf.mxu0
        %v4633 = vadd.f32 0.0, %v4632
        %4634 = vmatmul.bf16.gmra.mxu0 %v4554
        %v4635 = vpop.f32.mrf.mxu0
        %v4636 = vadd.f32 0.0, %v4635
        %v4637 = vpop.f32.mrf.mxu0
        %v4638 = vadd.f32 0.0, %v4637
        %4639 = vmatmul.bf16.gmra.mxu0 %v4557
        %v4640 = vpop.f32.mrf.mxu0
        %v4641 = vadd.f32 0.0, %v4640
        %v4642 = vpop.f32.mrf.mxu0
        %v4643 = vadd.f32 0.0, %v4642
        %4644 = vmatmul.bf16.gmra.mxu0 %v4560
        %v4645 = vpop.f32.mrf.mxu0
        %v4646 = vadd.f32 0.0, %v4645
        %v4647 = vpop.f32.mrf.mxu0
        %v4648 = vadd.f32 0.0, %v4647
        %4649 = vmatmul.bf16.gmra.mxu0 %v4563
        %v4650 = vpop.f32.mrf.mxu0
        %v4651 = vadd.f32 0.0, %v4650
        %v4652 = vpop.f32.mrf.mxu0
        %v4653 = vadd.f32 0.0, %v4652
        %4654 = vmatmul.bf16.gmra.mxu0 %v4566
        %v4655 = vpop.f32.mrf.mxu0
        %v4656 = vadd.f32 0.0, %v4655
        %v4657 = vpop.f32.mrf.mxu0
        %v4658 = vadd.f32 0.0, %v4657
        %4659 = vdwg.mxu0
        %v4660 = vadd.f32 %v4327, %v4581
        %v4661 = vadd.f32 %v4329, %v4583
        %v4662 = vadd.f32 %v4332, %v4586
        %v4663 = vadd.f32 %v4334, %v4588
        %v4664 = vadd.f32 %v4337, %v4591
        %v4665 = vadd.f32 %v4339, %v4593
        %v4666 = vadd.f32 %v4342, %v4596
        %v4667 = vadd.f32 %v4344, %v4598
        %v4668 = vadd.f32 %v4347, %v4601
        %v4669 = vadd.f32 %v4349, %v4603
        %v4670 = vadd.f32 %v4352, %v4606
        %v4671 = vadd.f32 %v4354, %v4608
        %v4672 = vadd.f32 %v4357, %v4611
        %v4673 = vadd.f32 %v4359, %v4613
        %v4674 = vadd.f32 %v4362, %v4616
        %v4675 = vadd.f32 %v4364, %v4618
        %v4676 = vadd.f32 %v4367, %v4621
        %v4677 = vadd.f32 %v4369, %v4623
        %v4678 = vadd.f32 %v4372, %v4626
        %v4679 = vadd.f32 %v4374, %v4628
        %v4680 = vadd.f32 %v4377, %v4631
        %v4681 = vadd.f32 %v4379, %v4633
        %v4682 = vadd.f32 %v4382, %v4636
        %v4683 = vadd.f32 %v4384, %v4638
        %v4684 = vadd.f32 %v4387, %v4641
        %v4685 = vadd.f32 %v4389, %v4643
        %v4686 = vadd.f32 %v4392, %v4646
        %v4687 = vadd.f32 %v4394, %v4648
        %v4688 = vadd.f32 %v4397, %v4651
        %v4689 = vadd.f32 %v4399, %v4653
        %v4690 = vadd.f32 %v4402, %v4656
        %v4691 = vadd.f32 %v4404, %v4658
        %v4692 = vmul.f32 %v4024, %v1664
        %v4693 = vmul.f32 %v4023, %v1669
        %v4694 = vmul.f32 %v4022, %v1674
        %v4695 = vmul.f32 %v4021, %v1679
        %v4696 = vmul.f32 %v4020, %v1684
        %v4697 = vmul.f32 %v4019, %v1689
        %v4698 = vmul.f32 %v4018, %v1694
        %v4699 = vmul.f32 %v4017, %v1699
        %v4700 = vmul.f32 %v4016, %v1704
        %v4701 = vmul.f32 %v4015, %v1709
        %v4702 = vmul.f32 %v4014, %v1714
        %v4703 = vmul.f32 %v4013, %v1719
        %v4704 = vmul.f32 %v4012, %v1724
        %v4705 = vmul.f32 %v4011, %v1729
        %v4706 = vmul.f32 %v4010, %v1734
        %v4707 = vmul.f32 %v4009, %v1739
        %v4708 = vmul.f32 %v4008, %v1744
        %v4709 = vmul.f32 %v4007, %v1749
        %v4710 = vmul.f32 %v4006, %v1754
        %v4711 = vmul.f32 %v4005, %v1759
        %v4712 = vmul.f32 %v4004, %v1764
        %v4713 = vmul.f32 %v4003, %v1769
        %v4714 = vmul.f32 %v4002, %v1774
        %v4715 = vmul.f32 %v4001, %v1779
        %v4716 = vmul.f32 %v4000, %v1784
        %v4717 = vmul.f32 %v3999, %v1789
        %v4718 = vmul.f32 %v3998, %v1794
        %v4719 = vmul.f32 %v3997, %v1799
        %v4720 = vmul.f32 %v3996, %v1804
        %v4721 = vmul.f32 %v3995, %v1809
        %v4722 = vmul.f32 %v3994, %v1814
        %v4723 = vmul.f32 %v3993, %v1819
        %v4724 = vpack.c.bf16 %v4693, %v4692
        %v4725 = vpack.c.bf16 %v4695, %v4694
        %v4726 = vpack.c.bf16 %v4697, %v4696
        %v4727 = vpack.c.bf16 %v4699, %v4698
        %v4728 = vpack.c.bf16 %v4701, %v4700
        %v4729 = vpack.c.bf16 %v4703, %v4702
        %v4730 = vpack.c.bf16 %v4705, %v4704
        %v4731 = vpack.c.bf16 %v4707, %v4706
        %v4732 = vpack.c.bf16 %v4709, %v4708
        %v4733 = vpack.c.bf16 %v4711, %v4710
        %v4734 = vpack.c.bf16 %v4713, %v4712
        %v4735 = vpack.c.bf16 %v4715, %v4714
        %v4736 = vpack.c.bf16 %v4717, %v4716
        %v4737 = vpack.c.bf16 %v4719, %v4718
        %v4738 = vpack.c.bf16 %v4721, %v4720
        %v4739 = vpack.c.bf16 %v4723, %v4722
        %s4740 = scalar_lea.vmem %s4, 12
        %v4741 = vld [vmem:[%s4740] sm:$0xf]
        %v4743 = vsel %vm4124, %v4724, 0
        %v4746 = vsel %vm4124, %v4725, 0
        %v4749 = vsel %vm4124, %v4726, 0
        %v4752 = vsel %vm4124, %v4727, 0
        %v4755 = vsel %vm4124, %v4728, 0
        %v4758 = vsel %vm4124, %v4729, 0
        %v4761 = vsel %vm4124, %v4730, 0
        %v4764 = vsel %vm4124, %v4731, 0
        %v4767 = vsel %vm4124, %v4732, 0
        %v4770 = vsel %vm4124, %v4733, 0
        %v4773 = vsel %vm4124, %v4734, 0
        %v4776 = vsel %vm4124, %v4735, 0
        %v4779 = vsel %vm4124, %v4736, 0
        %v4782 = vsel %vm4124, %v4737, 0
        %v4785 = vsel %vm4124, %v4738, 0
        %v4788 = vsel %vm4124, %v4739, 0
        %v4791 = vsel %vm4173, %v4741, 0
        %4793 = vmatpush.bf16.msra.mxu0 0
        %4794 = vmatpush.bf16.msra.mxu0 0
        %4795 = vmatpush.bf16.msra.mxu0 0
        %4796 = vmatpush.bf16.msra.mxu0 0
        %4797 = vmatpush.bf16.msra.mxu0 0
        %4798 = vmatpush.bf16.msra.mxu0 0
        %4799 = vmatpush.bf16.msra.mxu0 0
        %4800 = vmatpush.bf16.msra.mxu0 %v4791
        %4801 = vmatmul.bf16.gmra.mxu0 %v4743
        %v4802 = vpop.f32.mrf.mxu0
        %v4803 = vadd.f32 0.0, %v4802
        %v4804 = vpop.f32.mrf.mxu0
        %v4805 = vadd.f32 0.0, %v4804
        %4806 = vmatmul.bf16.gmra.mxu0 %v4746
        %v4807 = vpop.f32.mrf.mxu0
        %v4808 = vadd.f32 0.0, %v4807
        %v4809 = vpop.f32.mrf.mxu0
        %v4810 = vadd.f32 0.0, %v4809
        %4811 = vmatmul.bf16.gmra.mxu0 %v4749
        %v4812 = vpop.f32.mrf.mxu0
        %v4813 = vadd.f32 0.0, %v4812
        %v4814 = vpop.f32.mrf.mxu0
        %v4815 = vadd.f32 0.0, %v4814
        %4816 = vmatmul.bf16.gmra.mxu0 %v4752
        %v4817 = vpop.f32.mrf.mxu0
        %v4818 = vadd.f32 0.0, %v4817
        %v4819 = vpop.f32.mrf.mxu0
        %v4820 = vadd.f32 0.0, %v4819
        %4821 = vmatmul.bf16.gmra.mxu0 %v4755
        %v4822 = vpop.f32.mrf.mxu0
        %v4823 = vadd.f32 0.0, %v4822
        %v4824 = vpop.f32.mrf.mxu0
        %v4825 = vadd.f32 0.0, %v4824
        %4826 = vmatmul.bf16.gmra.mxu0 %v4758
        %v4827 = vpop.f32.mrf.mxu0
        %v4828 = vadd.f32 0.0, %v4827
        %v4829 = vpop.f32.mrf.mxu0
        %v4830 = vadd.f32 0.0, %v4829
        %4831 = vmatmul.bf16.gmra.mxu0 %v4761
        %v4832 = vpop.f32.mrf.mxu0
        %v4833 = vadd.f32 0.0, %v4832
        %v4834 = vpop.f32.mrf.mxu0
        %v4835 = vadd.f32 0.0, %v4834
        %4836 = vmatmul.bf16.gmra.mxu0 %v4764
        %v4837 = vpop.f32.mrf.mxu0
        %v4838 = vadd.f32 0.0, %v4837
        %v4839 = vpop.f32.mrf.mxu0
        %v4840 = vadd.f32 0.0, %v4839
        %4841 = vmatmul.bf16.gmra.mxu0 %v4767
        %v4842 = vpop.f32.mrf.mxu0
        %v4843 = vadd.f32 0.0, %v4842
        %v4844 = vpop.f32.mrf.mxu0
        %v4845 = vadd.f32 0.0, %v4844
        %4846 = vmatmul.bf16.gmra.mxu0 %v4770
        %v4847 = vpop.f32.mrf.mxu0
        %v4848 = vadd.f32 0.0, %v4847
        %v4849 = vpop.f32.mrf.mxu0
        %v4850 = vadd.f32 0.0, %v4849
        %4851 = vmatmul.bf16.gmra.mxu0 %v4773
        %v4852 = vpop.f32.mrf.mxu0
        %v4853 = vadd.f32 0.0, %v4852
        %v4854 = vpop.f32.mrf.mxu0
        %v4855 = vadd.f32 0.0, %v4854
        %4856 = vmatmul.bf16.gmra.mxu0 %v4776
        %v4857 = vpop.f32.mrf.mxu0
        %v4858 = vadd.f32 0.0, %v4857
        %v4859 = vpop.f32.mrf.mxu0
        %v4860 = vadd.f32 0.0, %v4859
        %4861 = vmatmul.bf16.gmra.mxu0 %v4779
        %v4862 = vpop.f32.mrf.mxu0
        %v4863 = vadd.f32 0.0, %v4862
        %v4864 = vpop.f32.mrf.mxu0
        %v4865 = vadd.f32 0.0, %v4864
        %4866 = vmatmul.bf16.gmra.mxu0 %v4782
        %v4867 = vpop.f32.mrf.mxu0
        %v4868 = vadd.f32 0.0, %v4867
        %v4869 = vpop.f32.mrf.mxu0
        %v4870 = vadd.f32 0.0, %v4869
        %4871 = vmatmul.bf16.gmra.mxu0 %v4785
        %v4872 = vpop.f32.mrf.mxu0
        %v4873 = vadd.f32 0.0, %v4872
        %v4874 = vpop.f32.mrf.mxu0
        %v4875 = vadd.f32 0.0, %v4874
        %4876 = vmatmul.bf16.gmra.mxu0 %v4788
        %v4877 = vpop.f32.mrf.mxu0
        %v4878 = vadd.f32 0.0, %v4877
        %v4879 = vpop.f32.mrf.mxu0
        %v4880 = vadd.f32 0.0, %v4879
        %4881 = vdwg.mxu0
        %v4882 = vadd.f32 %v4660, %v4803
        %v4883 = vadd.f32 %v4661, %v4805
        %v4884 = vadd.f32 %v4662, %v4808
        %v4885 = vadd.f32 %v4663, %v4810
        %v4886 = vadd.f32 %v4664, %v4813
        %v4887 = vadd.f32 %v4665, %v4815
        %v4888 = vadd.f32 %v4666, %v4818
        %v4889 = vadd.f32 %v4667, %v4820
        %v4890 = vadd.f32 %v4668, %v4823
        %v4891 = vadd.f32 %v4669, %v4825
        %v4892 = vadd.f32 %v4670, %v4828
        %v4893 = vadd.f32 %v4671, %v4830
        %v4894 = vadd.f32 %v4672, %v4833
        %v4895 = vadd.f32 %v4673, %v4835
        %v4896 = vadd.f32 %v4674, %v4838
        %v4897 = vadd.f32 %v4675, %v4840
        %v4898 = vadd.f32 %v4676, %v4843
        %v4899 = vadd.f32 %v4677, %v4845
        %v4900 = vadd.f32 %v4678, %v4848
        %v4901 = vadd.f32 %v4679, %v4850
        %v4902 = vadd.f32 %v4680, %v4853
        %v4903 = vadd.f32 %v4681, %v4855
        %v4904 = vadd.f32 %v4682, %v4858
        %v4905 = vadd.f32 %v4683, %v4860
        %v4906 = vadd.f32 %v4684, %v4863
        %v4907 = vadd.f32 %v4685, %v4865
        %v4908 = vadd.f32 %v4686, %v4868
        %v4909 = vadd.f32 %v4687, %v4870
        %v4910 = vadd.f32 %v4688, %v4873
        %v4911 = vadd.f32 %v4689, %v4875
        %v4912 = vadd.f32 %v4690, %v4878
        %v4913 = vadd.f32 %v4691, %v4880
        %v4914 = vpack.c.bf16 %v3930, %v3929
        %v4915 = vpack.c.bf16 %v3932, %v3931
        %v4916 = vpack.c.bf16 %v3934, %v3933
        %v4917 = vpack.c.bf16 %v3936, %v3935
        %v4918 = vpack.c.bf16 %v3938, %v3937
        %v4919 = vpack.c.bf16 %v3940, %v3939
        %v4920 = vpack.c.bf16 %v3942, %v3941
        %v4921 = vpack.c.bf16 %v3944, %v3943
        %v4922 = vpack.c.bf16 %v3946, %v3945
        %v4923 = vpack.c.bf16 %v3948, %v3947
        %v4924 = vpack.c.bf16 %v3950, %v3949
        %v4925 = vpack.c.bf16 %v3952, %v3951
        %v4926 = vpack.c.bf16 %v3954, %v3953
        %v4927 = vpack.c.bf16 %v3956, %v3955
        %v4928 = vpack.c.bf16 %v3958, %v3957
        %v4929 = vpack.c.bf16 %v3960, %v3959
        %s4930 = scalar_lea.vmem %s4, 16
        %v4931 = vld [vmem:[%s4930] sm:$0xf]
        %v4933 = vsel %vm4124, %v4914, 0
        %v4936 = vsel %vm4124, %v4915, 0
        %v4939 = vsel %vm4124, %v4916, 0
        %v4942 = vsel %vm4124, %v4917, 0
        %v4945 = vsel %vm4124, %v4918, 0
        %v4948 = vsel %vm4124, %v4919, 0
        %v4951 = vsel %vm4124, %v4920, 0
        %v4954 = vsel %vm4124, %v4921, 0
        %v4957 = vsel %vm4124, %v4922, 0
        %v4960 = vsel %vm4124, %v4923, 0
        %v4963 = vsel %vm4124, %v4924, 0
        %v4966 = vsel %vm4124, %v4925, 0
        %v4969 = vsel %vm4124, %v4926, 0
        %v4972 = vsel %vm4124, %v4927, 0
        %v4975 = vsel %vm4124, %v4928, 0
        %v4978 = vsel %vm4124, %v4929, 0
        %v4981 = vsel %vm4173, %v4931, 0
        %4983 = vmatpush.bf16.msra.mxu0 0
        %4984 = vmatpush.bf16.msra.mxu0 0
        %4985 = vmatpush.bf16.msra.mxu0 0
        %4986 = vmatpush.bf16.msra.mxu0 0
        %4987 = vmatpush.bf16.msra.mxu0 0
        %4988 = vmatpush.bf16.msra.mxu0 0
        %4989 = vmatpush.bf16.msra.mxu0 0
        %4990 = vmatpush.bf16.msra.mxu0 %v4981
        %4991 = vmatmul.bf16.gmra.mxu0 %v4933
        %v4992 = vpop.f32.mrf.mxu0
        %v4993 = vadd.f32 0.0, %v4992
        %v4994 = vpop.f32.mrf.mxu0
        %v4995 = vadd.f32 0.0, %v4994
        %4996 = vmatmul.bf16.gmra.mxu0 %v4936
        %v4997 = vpop.f32.mrf.mxu0
        %v4998 = vadd.f32 0.0, %v4997
        %v4999 = vpop.f32.mrf.mxu0
        %v5000 = vadd.f32 0.0, %v4999
        %5001 = vmatmul.bf16.gmra.mxu0 %v4939
        %v5002 = vpop.f32.mrf.mxu0
        %v5003 = vadd.f32 0.0, %v5002
        %v5004 = vpop.f32.mrf.mxu0
        %v5005 = vadd.f32 0.0, %v5004
        %5006 = vmatmul.bf16.gmra.mxu0 %v4942
        %v5007 = vpop.f32.mrf.mxu0
        %v5008 = vadd.f32 0.0, %v5007
        %v5009 = vpop.f32.mrf.mxu0
        %v5010 = vadd.f32 0.0, %v5009
        %5011 = vmatmul.bf16.gmra.mxu0 %v4945
        %v5012 = vpop.f32.mrf.mxu0
        %v5013 = vadd.f32 0.0, %v5012
        %v5014 = vpop.f32.mrf.mxu0
        %v5015 = vadd.f32 0.0, %v5014
        %5016 = vmatmul.bf16.gmra.mxu0 %v4948
        %v5017 = vpop.f32.mrf.mxu0
        %v5018 = vadd.f32 0.0, %v5017
        %v5019 = vpop.f32.mrf.mxu0
        %v5020 = vadd.f32 0.0, %v5019
        %5021 = vmatmul.bf16.gmra.mxu0 %v4951
        %v5022 = vpop.f32.mrf.mxu0
        %v5023 = vadd.f32 0.0, %v5022
        %v5024 = vpop.f32.mrf.mxu0
        %v5025 = vadd.f32 0.0, %v5024
        %5026 = vmatmul.bf16.gmra.mxu0 %v4954
        %v5027 = vpop.f32.mrf.mxu0
        %v5028 = vadd.f32 0.0, %v5027
        %v5029 = vpop.f32.mrf.mxu0
        %v5030 = vadd.f32 0.0, %v5029
        %5031 = vmatmul.bf16.gmra.mxu0 %v4957
        %v5032 = vpop.f32.mrf.mxu0
        %v5033 = vadd.f32 0.0, %v5032
        %v5034 = vpop.f32.mrf.mxu0
        %v5035 = vadd.f32 0.0, %v5034
        %5036 = vmatmul.bf16.gmra.mxu0 %v4960
        %v5037 = vpop.f32.mrf.mxu0
        %v5038 = vadd.f32 0.0, %v5037
        %v5039 = vpop.f32.mrf.mxu0
        %v5040 = vadd.f32 0.0, %v5039
        %5041 = vmatmul.bf16.gmra.mxu0 %v4963
        %v5042 = vpop.f32.mrf.mxu0
        %v5043 = vadd.f32 0.0, %v5042
        %v5044 = vpop.f32.mrf.mxu0
        %v5045 = vadd.f32 0.0, %v5044
        %5046 = vmatmul.bf16.gmra.mxu0 %v4966
        %v5047 = vpop.f32.mrf.mxu0
        %v5048 = vadd.f32 0.0, %v5047
        %v5049 = vpop.f32.mrf.mxu0
        %v5050 = vadd.f32 0.0, %v5049
        %5051 = vmatmul.bf16.gmra.mxu0 %v4969
        %v5052 = vpop.f32.mrf.mxu0
        %v5053 = vadd.f32 0.0, %v5052
        %v5054 = vpop.f32.mrf.mxu0
        %v5055 = vadd.f32 0.0, %v5054
        %5056 = vmatmul.bf16.gmra.mxu0 %v4972
        %v5057 = vpop.f32.mrf.mxu0
        %v5058 = vadd.f32 0.0, %v5057
        %v5059 = vpop.f32.mrf.mxu0
        %v5060 = vadd.f32 0.0, %v5059
        %5061 = vmatmul.bf16.gmra.mxu0 %v4975
        %v5062 = vpop.f32.mrf.mxu0
        %v5063 = vadd.f32 0.0, %v5062
        %v5064 = vpop.f32.mrf.mxu0
        %v5065 = vadd.f32 0.0, %v5064
        %5066 = vmatmul.bf16.gmra.mxu0 %v4978
        %v5067 = vpop.f32.mrf.mxu0
        %v5068 = vadd.f32 0.0, %v5067
        %v5069 = vpop.f32.mrf.mxu0
        %v5070 = vadd.f32 0.0, %v5069
        %5071 = vdwg.mxu0
        %v5072 = vadd.f32 %v4882, %v4993
        %v5073 = vadd.f32 %v4883, %v4995
        %v5074 = vadd.f32 %v4884, %v4998
        %v5075 = vadd.f32 %v4885, %v5000
        %v5076 = vadd.f32 %v4886, %v5003
        %v5077 = vadd.f32 %v4887, %v5005
        %v5078 = vadd.f32 %v4888, %v5008
        %v5079 = vadd.f32 %v4889, %v5010
        %v5080 = vadd.f32 %v4890, %v5013
        %v5081 = vadd.f32 %v4891, %v5015
        %v5082 = vadd.f32 %v4892, %v5018
        %v5083 = vadd.f32 %v4893, %v5020
        %v5084 = vadd.f32 %v4894, %v5023
        %v5085 = vadd.f32 %v4895, %v5025
        %v5086 = vadd.f32 %v4896, %v5028
        %v5087 = vadd.f32 %v4897, %v5030
        %v5088 = vadd.f32 %v4898, %v5033
        %v5089 = vadd.f32 %v4899, %v5035
        %v5090 = vadd.f32 %v4900, %v5038
        %v5091 = vadd.f32 %v4901, %v5040
        %v5092 = vadd.f32 %v4902, %v5043
        %v5093 = vadd.f32 %v4903, %v5045
        %v5094 = vadd.f32 %v4904, %v5048
        %v5095 = vadd.f32 %v4905, %v5050
        %v5096 = vadd.f32 %v4906, %v5053
        %v5097 = vadd.f32 %v4907, %v5055
        %v5098 = vadd.f32 %v4908, %v5058
        %v5099 = vadd.f32 %v4909, %v5060
        %v5100 = vadd.f32 %v4910, %v5063
        %v5101 = vadd.f32 %v4911, %v5065
        %v5102 = vadd.f32 %v4912, %v5068
        %v5103 = vadd.f32 %v4913, %v5070
        %v5104 = vmul.f32 %v4468, %v2269
        %v5105 = vmul.f32 %v4467, %v2274
        %v5106 = vmul.f32 %v4466, %v2279
        %v5107 = vmul.f32 %v4465, %v2284
        %v5108 = vmul.f32 %v4464, %v2289
        %v5109 = vmul.f32 %v4463, %v2294
        %v5110 = vmul.f32 %v4462, %v2299
        %v5111 = vmul.f32 %v4461, %v2304
        %v5112 = vmul.f32 %v4460, %v2309
        %v5113 = vmul.f32 %v4459, %v2314
        %v5114 = vmul.f32 %v4458, %v2319
        %v5115 = vmul.f32 %v4457, %v2324
        %v5116 = vmul.f32 %v4456, %v2329
        %v5117 = vmul.f32 %v4455, %v2334
        %v5118 = vmul.f32 %v4454, %v2339
        %v5119 = vmul.f32 %v4453, %v2344
        %v5120 = vmul.f32 %v4452, %v2349
        %v5121 = vmul.f32 %v4451, %v2354
        %v5122 = vmul.f32 %v4450, %v2359
        %v5123 = vmul.f32 %v4449, %v2364
        %v5124 = vmul.f32 %v4448, %v2369
        %v5125 = vmul.f32 %v4447, %v2374
        %v5126 = vmul.f32 %v4446, %v2379
        %v5127 = vmul.f32 %v4445, %v2384
        %v5128 = vmul.f32 %v4444, %v2389
        %v5129 = vmul.f32 %v4443, %v2394
        %v5130 = vmul.f32 %v4442, %v2399
        %v5131 = vmul.f32 %v4441, %v2404
        %v5132 = vmul.f32 %v4440, %v2409
        %v5133 = vmul.f32 %v4439, %v2414
        %v5134 = vmul.f32 %v4438, %v2419
        %v5135 = vmul.f32 %v4469, %v2424
        %v5136 = vpack.c.bf16 %v5105, %v5104
        %v5137 = vpack.c.bf16 %v5107, %v5106
        %v5138 = vpack.c.bf16 %v5109, %v5108
        %v5139 = vpack.c.bf16 %v5111, %v5110
        %v5140 = vpack.c.bf16 %v5113, %v5112
        %v5141 = vpack.c.bf16 %v5115, %v5114
        %v5142 = vpack.c.bf16 %v5117, %v5116
        %v5143 = vpack.c.bf16 %v5119, %v5118
        %v5144 = vpack.c.bf16 %v5121, %v5120
        %v5145 = vpack.c.bf16 %v5123, %v5122
        %v5146 = vpack.c.bf16 %v5125, %v5124
        %v5147 = vpack.c.bf16 %v5127, %v5126
        %v5148 = vpack.c.bf16 %v5129, %v5128
        %v5149 = vpack.c.bf16 %v5131, %v5130
        %v5150 = vpack.c.bf16 %v5133, %v5132
        %v5151 = vpack.c.bf16 %v5135, %v5134
        %s5152 = scalar_lea.vmem %s4, 20
        %v5153 = vld [vmem:[%s5152] sm:$0xf]
        %v5155 = vsel %vm4124, %v5136, 0
        %v5158 = vsel %vm4124, %v5137, 0
        %v5161 = vsel %vm4124, %v5138, 0
        %v5164 = vsel %vm4124, %v5139, 0
        %v5167 = vsel %vm4124, %v5140, 0
        %v5170 = vsel %vm4124, %v5141, 0
        %v5173 = vsel %vm4124, %v5142, 0
        %v5176 = vsel %vm4124, %v5143, 0
        %v5179 = vsel %vm4124, %v5144, 0
        %v5182 = vsel %vm4124, %v5145, 0
        %v5185 = vsel %vm4124, %v5146, 0
        %v5188 = vsel %vm4124, %v5147, 0
        %v5191 = vsel %vm4124, %v5148, 0
        %v5194 = vsel %vm4124, %v5149, 0
        %v5197 = vsel %vm4124, %v5150, 0
        %v5200 = vsel %vm4124, %v5151, 0
        %v5203 = vsel %vm4173, %v5153, 0
        %5205 = vmatpush.bf16.msra.mxu0 0
        %5206 = vmatpush.bf16.msra.mxu0 0
        %5207 = vmatpush.bf16.msra.mxu0 0
        %5208 = vmatpush.bf16.msra.mxu0 0
        %5209 = vmatpush.bf16.msra.mxu0 0
        %5210 = vmatpush.bf16.msra.mxu0 0
        %5211 = vmatpush.bf16.msra.mxu0 0
        %5212 = vmatpush.bf16.msra.mxu0 %v5203
        %5213 = vmatmul.bf16.gmra.mxu0 %v5155
        %v5214 = vpop.f32.mrf.mxu0
        %v5215 = vadd.f32 0.0, %v5214
        %v5216 = vpop.f32.mrf.mxu0
        %v5217 = vadd.f32 0.0, %v5216
        %5218 = vmatmul.bf16.gmra.mxu0 %v5158
        %v5219 = vpop.f32.mrf.mxu0
        %v5220 = vadd.f32 0.0, %v5219
        %v5221 = vpop.f32.mrf.mxu0
        %v5222 = vadd.f32 0.0, %v5221
        %5223 = vmatmul.bf16.gmra.mxu0 %v5161
        %v5224 = vpop.f32.mrf.mxu0
        %v5225 = vadd.f32 0.0, %v5224
        %v5226 = vpop.f32.mrf.mxu0
        %v5227 = vadd.f32 0.0, %v5226
        %5228 = vmatmul.bf16.gmra.mxu0 %v5164
        %v5229 = vpop.f32.mrf.mxu0
        %v5230 = vadd.f32 0.0, %v5229
        %v5231 = vpop.f32.mrf.mxu0
        %v5232 = vadd.f32 0.0, %v5231
        %5233 = vmatmul.bf16.gmra.mxu0 %v5167
        %v5234 = vpop.f32.mrf.mxu0
        %v5235 = vadd.f32 0.0, %v5234
        %v5236 = vpop.f32.mrf.mxu0
        %v5237 = vadd.f32 0.0, %v5236
        %5238 = vmatmul.bf16.gmra.mxu0 %v5170
        %v5239 = vpop.f32.mrf.mxu0
        %v5240 = vadd.f32 0.0, %v5239
        %v5241 = vpop.f32.mrf.mxu0
        %v5242 = vadd.f32 0.0, %v5241
        %5243 = vmatmul.bf16.gmra.mxu0 %v5173
        %v5244 = vpop.f32.mrf.mxu0
        %v5245 = vadd.f32 0.0, %v5244
        %v5246 = vpop.f32.mrf.mxu0
        %v5247 = vadd.f32 0.0, %v5246
        %5248 = vmatmul.bf16.gmra.mxu0 %v5176
        %v5249 = vpop.f32.mrf.mxu0
        %v5250 = vadd.f32 0.0, %v5249
        %v5251 = vpop.f32.mrf.mxu0
        %v5252 = vadd.f32 0.0, %v5251
        %5253 = vmatmul.bf16.gmra.mxu0 %v5179
        %v5254 = vpop.f32.mrf.mxu0
        %v5255 = vadd.f32 0.0, %v5254
        %v5256 = vpop.f32.mrf.mxu0
        %v5257 = vadd.f32 0.0, %v5256
        %5258 = vmatmul.bf16.gmra.mxu0 %v5182
        %v5259 = vpop.f32.mrf.mxu0
        %v5260 = vadd.f32 0.0, %v5259
        %v5261 = vpop.f32.mrf.mxu0
        %v5262 = vadd.f32 0.0, %v5261
        %5263 = vmatmul.bf16.gmra.mxu0 %v5185
        %v5264 = vpop.f32.mrf.mxu0
        %v5265 = vadd.f32 0.0, %v5264
        %v5266 = vpop.f32.mrf.mxu0
        %v5267 = vadd.f32 0.0, %v5266
        %5268 = vmatmul.bf16.gmra.mxu0 %v5188
        %v5269 = vpop.f32.mrf.mxu0
        %v5270 = vadd.f32 0.0, %v5269
        %v5271 = vpop.f32.mrf.mxu0
        %v5272 = vadd.f32 0.0, %v5271
        %5273 = vmatmul.bf16.gmra.mxu0 %v5191
        %v5274 = vpop.f32.mrf.mxu0
        %v5275 = vadd.f32 0.0, %v5274
        %v5276 = vpop.f32.mrf.mxu0
        %v5277 = vadd.f32 0.0, %v5276
        %5278 = vmatmul.bf16.gmra.mxu0 %v5194
        %v5279 = vpop.f32.mrf.mxu0
        %v5280 = vadd.f32 0.0, %v5279
        %v5281 = vpop.f32.mrf.mxu0
        %v5282 = vadd.f32 0.0, %v5281
        %5283 = vmatmul.bf16.gmra.mxu0 %v5197
        %v5284 = vpop.f32.mrf.mxu0
        %v5285 = vadd.f32 0.0, %v5284
        %v5286 = vpop.f32.mrf.mxu0
        %v5287 = vadd.f32 0.0, %v5286
        %5288 = vmatmul.bf16.gmra.mxu0 %v5200
        %v5289 = vpop.f32.mrf.mxu0
        %v5290 = vadd.f32 0.0, %v5289
        %v5291 = vpop.f32.mrf.mxu0
        %v5292 = vadd.f32 0.0, %v5291
        %5293 = vdwg.mxu0
        %v5294 = vadd.f32 %v5072, %v5215
        %v5295 = vadd.f32 %v5073, %v5217
        %v5296 = vadd.f32 %v5074, %v5220
        %v5297 = vadd.f32 %v5075, %v5222
        %v5298 = vadd.f32 %v5076, %v5225
        %v5299 = vadd.f32 %v5077, %v5227
        %v5300 = vadd.f32 %v5078, %v5230
        %v5301 = vadd.f32 %v5079, %v5232
        %v5302 = vadd.f32 %v5080, %v5235
        %v5303 = vadd.f32 %v5081, %v5237
        %v5304 = vadd.f32 %v5082, %v5240
        %v5305 = vadd.f32 %v5083, %v5242
        %v5306 = vadd.f32 %v5084, %v5245
        %v5307 = vadd.f32 %v5085, %v5247
        %v5308 = vadd.f32 %v5086, %v5250
        %v5309 = vadd.f32 %v5087, %v5252
        %v5310 = vadd.f32 %v5088, %v5255
        %v5311 = vadd.f32 %v5089, %v5257
        %v5312 = vadd.f32 %v5090, %v5260
        %v5313 = vadd.f32 %v5091, %v5262
        %v5314 = vadd.f32 %v5092, %v5265
        %v5315 = vadd.f32 %v5093, %v5267
        %v5316 = vadd.f32 %v5094, %v5270
        %v5317 = vadd.f32 %v5095, %v5272
        %v5318 = vadd.f32 %v5096, %v5275
        %v5319 = vadd.f32 %v5097, %v5277
        %v5320 = vadd.f32 %v5098, %v5280
        %v5321 = vadd.f32 %v5099, %v5282
        %v5322 = vadd.f32 %v5100, %v5285
        %v5323 = vadd.f32 %v5101, %v5287
        %v5324 = vadd.f32 %v5102, %v5290
        %v5325 = vadd.f32 %v5103, %v5292
        %v5326 = vmul.f32 %v4022, %v2684
        %v5327 = vmul.f32 %v4021, %v2689
        %v5328 = vmul.f32 %v4020, %v2694
        %v5329 = vmul.f32 %v4019, %v2699
        %v5330 = vmul.f32 %v4018, %v2704
        %v5331 = vmul.f32 %v4017, %v2709
        %v5332 = vmul.f32 %v4016, %v2714
        %v5333 = vmul.f32 %v4015, %v2719
        %v5334 = vmul.f32 %v4014, %v2724
        %v5335 = vmul.f32 %v4013, %v2729
        %v5336 = vmul.f32 %v4012, %v2734
        %v5337 = vmul.f32 %v4011, %v2739
        %v5338 = vmul.f32 %v4010, %v2744
        %v5339 = vmul.f32 %v4009, %v2749
        %v5340 = vmul.f32 %v4008, %v2754
        %v5341 = vmul.f32 %v4007, %v2759
        %v5342 = vmul.f32 %v4006, %v2764
        %v5343 = vmul.f32 %v4005, %v2769
        %v5344 = vmul.f32 %v4004, %v2774
        %v5345 = vmul.f32 %v4003, %v2779
        %v5346 = vmul.f32 %v4002, %v2784
        %v5347 = vmul.f32 %v4001, %v2789
        %v5348 = vmul.f32 %v4000, %v2794
        %v5349 = vmul.f32 %v3999, %v2799
        %v5350 = vmul.f32 %v3998, %v2804
        %v5351 = vmul.f32 %v3997, %v2809
        %v5352 = vmul.f32 %v3996, %v2814
        %v5353 = vmul.f32 %v3995, %v2819
        %v5354 = vmul.f32 %v3994, %v2824
        %v5355 = vmul.f32 %v3993, %v2829
        %v5356 = vmul.f32 %v4024, %v2834
        %v5357 = vmul.f32 %v4023, %v2839
        %v5358 = vpack.c.bf16 %v5327, %v5326
        %v5359 = vpack.c.bf16 %v5329, %v5328
        %v5360 = vpack.c.bf16 %v5331, %v5330
        %v5361 = vpack.c.bf16 %v5333, %v5332
        %v5362 = vpack.c.bf16 %v5335, %v5334
        %v5363 = vpack.c.bf16 %v5337, %v5336
        %v5364 = vpack.c.bf16 %v5339, %v5338
        %v5365 = vpack.c.bf16 %v5341, %v5340
        %v5366 = vpack.c.bf16 %v5343, %v5342
        %v5367 = vpack.c.bf16 %v5345, %v5344
        %v5368 = vpack.c.bf16 %v5347, %v5346
        %v5369 = vpack.c.bf16 %v5349, %v5348
        %v5370 = vpack.c.bf16 %v5351, %v5350
        %v5371 = vpack.c.bf16 %v5353, %v5352
        %v5372 = vpack.c.bf16 %v5355, %v5354
        %v5373 = vpack.c.bf16 %v5357, %v5356
        %s5374 = scalar_lea.vmem %s4, 24
        %v5375 = vld [vmem:[%s5374] sm:$0xf]
        %v5377 = vsel %vm4124, %v5358, 0
        %v5380 = vsel %vm4124, %v5359, 0
        %v5383 = vsel %vm4124, %v5360, 0
        %v5386 = vsel %vm4124, %v5361, 0
        %v5389 = vsel %vm4124, %v5362, 0
        %v5392 = vsel %vm4124, %v5363, 0
        %v5395 = vsel %vm4124, %v5364, 0
        %v5398 = vsel %vm4124, %v5365, 0
        %v5401 = vsel %vm4124, %v5366, 0
        %v5404 = vsel %vm4124, %v5367, 0
        %v5407 = vsel %vm4124, %v5368, 0
        %v5410 = vsel %vm4124, %v5369, 0
        %v5413 = vsel %vm4124, %v5370, 0
        %v5416 = vsel %vm4124, %v5371, 0
        %v5419 = vsel %vm4124, %v5372, 0
        %v5422 = vsel %vm4124, %v5373, 0
        %v5425 = vsel %vm4173, %v5375, 0
        %5427 = vmatpush.bf16.msra.mxu0 0
        %5428 = vmatpush.bf16.msra.mxu0 0
        %5429 = vmatpush.bf16.msra.mxu0 0
        %5430 = vmatpush.bf16.msra.mxu0 0
        %5431 = vmatpush.bf16.msra.mxu0 0
        %5432 = vmatpush.bf16.msra.mxu0 0
        %5433 = vmatpush.bf16.msra.mxu0 0
        %5434 = vmatpush.bf16.msra.mxu0 %v5425
        %5435 = vmatmul.bf16.gmra.mxu0 %v5377
        %v5436 = vpop.f32.mrf.mxu0
        %v5437 = vadd.f32 0.0, %v5436
        %v5438 = vpop.f32.mrf.mxu0
        %v5439 = vadd.f32 0.0, %v5438
        %5440 = vmatmul.bf16.gmra.mxu0 %v5380
        %v5441 = vpop.f32.mrf.mxu0
        %v5442 = vadd.f32 0.0, %v5441
        %v5443 = vpop.f32.mrf.mxu0
        %v5444 = vadd.f32 0.0, %v5443
        %5445 = vmatmul.bf16.gmra.mxu0 %v5383
        %v5446 = vpop.f32.mrf.mxu0
        %v5447 = vadd.f32 0.0, %v5446
        %v5448 = vpop.f32.mrf.mxu0
        %v5449 = vadd.f32 0.0, %v5448
        %5450 = vmatmul.bf16.gmra.mxu0 %v5386
        %v5451 = vpop.f32.mrf.mxu0
        %v5452 = vadd.f32 0.0, %v5451
        %v5453 = vpop.f32.mrf.mxu0
        %v5454 = vadd.f32 0.0, %v5453
        %5455 = vmatmul.bf16.gmra.mxu0 %v5389
        %v5456 = vpop.f32.mrf.mxu0
        %v5457 = vadd.f32 0.0, %v5456
        %v5458 = vpop.f32.mrf.mxu0
        %v5459 = vadd.f32 0.0, %v5458
        %5460 = vmatmul.bf16.gmra.mxu0 %v5392
        %v5461 = vpop.f32.mrf.mxu0
        %v5462 = vadd.f32 0.0, %v5461
        %v5463 = vpop.f32.mrf.mxu0
        %v5464 = vadd.f32 0.0, %v5463
        %5465 = vmatmul.bf16.gmra.mxu0 %v5395
        %v5466 = vpop.f32.mrf.mxu0
        %v5467 = vadd.f32 0.0, %v5466
        %v5468 = vpop.f32.mrf.mxu0
        %v5469 = vadd.f32 0.0, %v5468
        %5470 = vmatmul.bf16.gmra.mxu0 %v5398
        %v5471 = vpop.f32.mrf.mxu0
        %v5472 = vadd.f32 0.0, %v5471
        %v5473 = vpop.f32.mrf.mxu0
        %v5474 = vadd.f32 0.0, %v5473
        %5475 = vmatmul.bf16.gmra.mxu0 %v5401
        %v5476 = vpop.f32.mrf.mxu0
        %v5477 = vadd.f32 0.0, %v5476
        %v5478 = vpop.f32.mrf.mxu0
        %v5479 = vadd.f32 0.0, %v5478
        %5480 = vmatmul.bf16.gmra.mxu0 %v5404
        %v5481 = vpop.f32.mrf.mxu0
        %v5482 = vadd.f32 0.0, %v5481
        %v5483 = vpop.f32.mrf.mxu0
        %v5484 = vadd.f32 0.0, %v5483
        %5485 = vmatmul.bf16.gmra.mxu0 %v5407
        %v5486 = vpop.f32.mrf.mxu0
        %v5487 = vadd.f32 0.0, %v5486
        %v5488 = vpop.f32.mrf.mxu0
        %v5489 = vadd.f32 0.0, %v5488
        %5490 = vmatmul.bf16.gmra.mxu0 %v5410
        %v5491 = vpop.f32.mrf.mxu0
        %v5492 = vadd.f32 0.0, %v5491
        %v5493 = vpop.f32.mrf.mxu0
        %v5494 = vadd.f32 0.0, %v5493
        %5495 = vmatmul.bf16.gmra.mxu0 %v5413
        %v5496 = vpop.f32.mrf.mxu0
        %v5497 = vadd.f32 0.0, %v5496
        %v5498 = vpop.f32.mrf.mxu0
        %v5499 = vadd.f32 0.0, %v5498
        %5500 = vmatmul.bf16.gmra.mxu0 %v5416
        %v5501 = vpop.f32.mrf.mxu0
        %v5502 = vadd.f32 0.0, %v5501
        %v5503 = vpop.f32.mrf.mxu0
        %v5504 = vadd.f32 0.0, %v5503
        %5505 = vmatmul.bf16.gmra.mxu0 %v5419
        %v5506 = vpop.f32.mrf.mxu0
        %v5507 = vadd.f32 0.0, %v5506
        %v5508 = vpop.f32.mrf.mxu0
        %v5509 = vadd.f32 0.0, %v5508
        %5510 = vmatmul.bf16.gmra.mxu0 %v5422
        %v5511 = vpop.f32.mrf.mxu0
        %v5512 = vadd.f32 0.0, %v5511
        %v5513 = vpop.f32.mrf.mxu0
        %v5514 = vadd.f32 0.0, %v5513
        %5515 = vdwg.mxu0
        %v5516 = vadd.f32 %v5294, %v5437
        %v5517 = vadd.f32 %v5295, %v5439
        %v5518 = vadd.f32 %v5296, %v5442
        %v5519 = vadd.f32 %v5297, %v5444
        %v5520 = vadd.f32 %v5298, %v5447
        %v5521 = vadd.f32 %v5299, %v5449
        %v5522 = vadd.f32 %v5300, %v5452
        %v5523 = vadd.f32 %v5301, %v5454
        %v5524 = vadd.f32 %v5302, %v5457
        %v5525 = vadd.f32 %v5303, %v5459
        %v5526 = vadd.f32 %v5304, %v5462
        %v5527 = vadd.f32 %v5305, %v5464
        %v5528 = vadd.f32 %v5306, %v5467
        %v5529 = vadd.f32 %v5307, %v5469
        %v5530 = vadd.f32 %v5308, %v5472
        %v5531 = vadd.f32 %v5309, %v5474
        %v5532 = vadd.f32 %v5310, %v5477
        %v5533 = vadd.f32 %v5311, %v5479
        %v5534 = vadd.f32 %v5312, %v5482
        %v5535 = vadd.f32 %v5313, %v5484
        %v5536 = vadd.f32 %v5314, %v5487
        %v5537 = vadd.f32 %v5315, %v5489
        %v5538 = vadd.f32 %v5316, %v5492
        %v5539 = vadd.f32 %v5317, %v5494
        %v5540 = vadd.f32 %v5318, %v5497
        %v5541 = vadd.f32 %v5319, %v5499
        %v5542 = vadd.f32 %v5320, %v5502
        %v5543 = vadd.f32 %v5321, %v5504
        %v5544 = vadd.f32 %v5322, %v5507
        %v5545 = vadd.f32 %v5323, %v5509
        %v5546 = vadd.f32 %v5324, %v5512
        %v5547 = vadd.f32 %v5325, %v5514
        %v5548 = vmul.f32 %v3931, %v3099
        %v5549 = vmul.f32 %v3932, %v3104
        %v5550 = vmul.f32 %v3933, %v3109
        %v5551 = vmul.f32 %v3934, %v3114
        %v5552 = vmul.f32 %v3935, %v3119
        %v5553 = vmul.f32 %v3936, %v3124
        %v5554 = vmul.f32 %v3937, %v3129
        %v5555 = vmul.f32 %v3938, %v3134
        %v5556 = vmul.f32 %v3939, %v3139
        %v5557 = vmul.f32 %v3940, %v3144
        %v5558 = vmul.f32 %v3941, %v3149
        %v5559 = vmul.f32 %v3942, %v3154
        %v5560 = vmul.f32 %v3943, %v3159
        %v5561 = vmul.f32 %v3944, %v3164
        %v5562 = vmul.f32 %v3945, %v3169
        %v5563 = vmul.f32 %v3946, %v3174
        %v5564 = vmul.f32 %v3947, %v3179
        %v5565 = vmul.f32 %v3948, %v3184
        %v5566 = vmul.f32 %v3949, %v3189
        %v5567 = vmul.f32 %v3950, %v3194
        %v5568 = vmul.f32 %v3951, %v3199
        %v5569 = vmul.f32 %v3952, %v3204
        %v5570 = vmul.f32 %v3953, %v3209
        %v5571 = vmul.f32 %v3954, %v3214
        %v5572 = vmul.f32 %v3955, %v3219
        %v5573 = vmul.f32 %v3956, %v3224
        %v5574 = vmul.f32 %v3957, %v3229
        %v5575 = vmul.f32 %v3958, %v3234
        %v5576 = vmul.f32 %v3959, %v3239
        %v5577 = vmul.f32 %v3960, %v3244
        %v5578 = vmul.f32 %v3929, %v3249
        %v5579 = vmul.f32 %v3930, %v3254
        %v5580 = vpack.c.bf16 %v5549, %v5548
        %v5581 = vpack.c.bf16 %v5551, %v5550
        %v5582 = vpack.c.bf16 %v5553, %v5552
        %v5583 = vpack.c.bf16 %v5555, %v5554
        %v5584 = vpack.c.bf16 %v5557, %v5556
        %v5585 = vpack.c.bf16 %v5559, %v5558
        %v5586 = vpack.c.bf16 %v5561, %v5560
        %v5587 = vpack.c.bf16 %v5563, %v5562
        %v5588 = vpack.c.bf16 %v5565, %v5564
        %v5589 = vpack.c.bf16 %v5567, %v5566
        %v5590 = vpack.c.bf16 %v5569, %v5568
        %v5591 = vpack.c.bf16 %v5571, %v5570
        %v5592 = vpack.c.bf16 %v5573, %v5572
        %v5593 = vpack.c.bf16 %v5575, %v5574
        %v5594 = vpack.c.bf16 %v5577, %v5576
        %v5595 = vpack.c.bf16 %v5579, %v5578
        %s5596 = scalar_lea.vmem %s4, 28
        %v5597 = vld [vmem:[%s5596] sm:$0xf]
        %v5599 = vsel %vm4124, %v5580, 0
        %v5602 = vsel %vm4124, %v5581, 0
        %v5605 = vsel %vm4124, %v5582, 0
        %v5608 = vsel %vm4124, %v5583, 0
        %v5611 = vsel %vm4124, %v5584, 0
        %v5614 = vsel %vm4124, %v5585, 0
        %v5617 = vsel %vm4124, %v5586, 0
        %v5620 = vsel %vm4124, %v5587, 0
        %v5623 = vsel %vm4124, %v5588, 0
        %v5626 = vsel %vm4124, %v5589, 0
        %v5629 = vsel %vm4124, %v5590, 0
        %v5632 = vsel %vm4124, %v5591, 0
        %v5635 = vsel %vm4124, %v5592, 0
        %v5638 = vsel %vm4124, %v5593, 0
        %v5641 = vsel %vm4124, %v5594, 0
        %v5644 = vsel %vm4124, %v5595, 0
        %v5647 = vsel %vm4173, %v5597, 0
        %5649 = vmatpush.bf16.msra.mxu0 0
        %5650 = vmatpush.bf16.msra.mxu0 0
        %5651 = vmatpush.bf16.msra.mxu0 0
        %5652 = vmatpush.bf16.msra.mxu0 0
        %5653 = vmatpush.bf16.msra.mxu0 0
        %5654 = vmatpush.bf16.msra.mxu0 0
        %5655 = vmatpush.bf16.msra.mxu0 0
        %5656 = vmatpush.bf16.msra.mxu0 %v5647
        %5657 = vmatmul.bf16.gmra.mxu0 %v5599
        %v5658 = vpop.f32.mrf.mxu0
        %v5659 = vadd.f32 0.0, %v5658
        %v5660 = vpop.f32.mrf.mxu0
        %v5661 = vadd.f32 0.0, %v5660
        %5662 = vmatmul.bf16.gmra.mxu0 %v5602
        %v5663 = vpop.f32.mrf.mxu0
        %v5664 = vadd.f32 0.0, %v5663
        %v5665 = vpop.f32.mrf.mxu0
        %v5666 = vadd.f32 0.0, %v5665
        %5667 = vmatmul.bf16.gmra.mxu0 %v5605
        %v5668 = vpop.f32.mrf.mxu0
        %v5669 = vadd.f32 0.0, %v5668
        %v5670 = vpop.f32.mrf.mxu0
        %v5671 = vadd.f32 0.0, %v5670
        %5672 = vmatmul.bf16.gmra.mxu0 %v5608
        %v5673 = vpop.f32.mrf.mxu0
        %v5674 = vadd.f32 0.0, %v5673
        %v5675 = vpop.f32.mrf.mxu0
        %v5676 = vadd.f32 0.0, %v5675
        %5677 = vmatmul.bf16.gmra.mxu0 %v5611
        %v5678 = vpop.f32.mrf.mxu0
        %v5679 = vadd.f32 0.0, %v5678
        %v5680 = vpop.f32.mrf.mxu0
        %v5681 = vadd.f32 0.0, %v5680
        %5682 = vmatmul.bf16.gmra.mxu0 %v5614
        %v5683 = vpop.f32.mrf.mxu0
        %v5684 = vadd.f32 0.0, %v5683
        %v5685 = vpop.f32.mrf.mxu0
        %v5686 = vadd.f32 0.0, %v5685
        %5687 = vmatmul.bf16.gmra.mxu0 %v5617
        %v5688 = vpop.f32.mrf.mxu0
        %v5689 = vadd.f32 0.0, %v5688
        %v5690 = vpop.f32.mrf.mxu0
        %v5691 = vadd.f32 0.0, %v5690
        %5692 = vmatmul.bf16.gmra.mxu0 %v5620
        %v5693 = vpop.f32.mrf.mxu0
        %v5694 = vadd.f32 0.0, %v5693
        %v5695 = vpop.f32.mrf.mxu0
        %v5696 = vadd.f32 0.0, %v5695
        %5697 = vmatmul.bf16.gmra.mxu0 %v5623
        %v5698 = vpop.f32.mrf.mxu0
        %v5699 = vadd.f32 0.0, %v5698
        %v5700 = vpop.f32.mrf.mxu0
        %v5701 = vadd.f32 0.0, %v5700
        %5702 = vmatmul.bf16.gmra.mxu0 %v5626
        %v5703 = vpop.f32.mrf.mxu0
        %v5704 = vadd.f32 0.0, %v5703
        %v5705 = vpop.f32.mrf.mxu0
        %v5706 = vadd.f32 0.0, %v5705
        %5707 = vmatmul.bf16.gmra.mxu0 %v5629
        %v5708 = vpop.f32.mrf.mxu0
        %v5709 = vadd.f32 0.0, %v5708
        %v5710 = vpop.f32.mrf.mxu0
        %v5711 = vadd.f32 0.0, %v5710
        %5712 = vmatmul.bf16.gmra.mxu0 %v5632
        %v5713 = vpop.f32.mrf.mxu0
        %v5714 = vadd.f32 0.0, %v5713
        %v5715 = vpop.f32.mrf.mxu0
        %v5716 = vadd.f32 0.0, %v5715
        %5717 = vmatmul.bf16.gmra.mxu0 %v5635
        %v5718 = vpop.f32.mrf.mxu0
        %v5719 = vadd.f32 0.0, %v5718
        %v5720 = vpop.f32.mrf.mxu0
        %v5721 = vadd.f32 0.0, %v5720
        %5722 = vmatmul.bf16.gmra.mxu0 %v5638
        %v5723 = vpop.f32.mrf.mxu0
        %v5724 = vadd.f32 0.0, %v5723
        %v5725 = vpop.f32.mrf.mxu0
        %v5726 = vadd.f32 0.0, %v5725
        %5727 = vmatmul.bf16.gmra.mxu0 %v5641
        %v5728 = vpop.f32.mrf.mxu0
        %v5729 = vadd.f32 0.0, %v5728
        %v5730 = vpop.f32.mrf.mxu0
        %v5731 = vadd.f32 0.0, %v5730
        %5732 = vmatmul.bf16.gmra.mxu0 %v5644
        %v5733 = vpop.f32.mrf.mxu0
        %v5734 = vadd.f32 0.0, %v5733
        %v5735 = vpop.f32.mrf.mxu0
        %v5736 = vadd.f32 0.0, %v5735
        %5737 = vdwg.mxu0
        %v5738 = vadd.f32 %v5516, %v5659
        %v5739 = vadd.f32 %v5517, %v5661
        %v5740 = vadd.f32 %v5518, %v5664
        %v5741 = vadd.f32 %v5519, %v5666
        %v5742 = vadd.f32 %v5520, %v5669
        %v5743 = vadd.f32 %v5521, %v5671
        %v5744 = vadd.f32 %v5522, %v5674
        %v5745 = vadd.f32 %v5523, %v5676
        %v5746 = vadd.f32 %v5524, %v5679
        %v5747 = vadd.f32 %v5525, %v5681
        %v5748 = vadd.f32 %v5526, %v5684
        %v5749 = vadd.f32 %v5527, %v5686
        %v5750 = vadd.f32 %v5528, %v5689
        %v5751 = vadd.f32 %v5529, %v5691
        %v5752 = vadd.f32 %v5530, %v5694
        %v5753 = vadd.f32 %v5531, %v5696
        %v5754 = vadd.f32 %v5532, %v5699
        %v5755 = vadd.f32 %v5533, %v5701
        %v5756 = vadd.f32 %v5534, %v5704
        %v5757 = vadd.f32 %v5535, %v5706
        %v5758 = vadd.f32 %v5536, %v5709
        %v5759 = vadd.f32 %v5537, %v5711
        %v5760 = vadd.f32 %v5538, %v5714
        %v5761 = vadd.f32 %v5539, %v5716
        %v5762 = vadd.f32 %v5540, %v5719
        %v5763 = vadd.f32 %v5541, %v5721
        %v5764 = vadd.f32 %v5542, %v5724
        %v5765 = vadd.f32 %v5543, %v5726
        %v5766 = vadd.f32 %v5544, %v5729
        %v5767 = vadd.f32 %v5545, %v5731
        %v5768 = vadd.f32 %v5546, %v5734
        %v5769 = vadd.f32 %v5547, %v5736
        %v5770 = vmul.f32 %v4466, %v3514
        %v5771 = vmul.f32 %v4465, %v3519
        %v5772 = vmul.f32 %v4464, %v3524
        %v5773 = vmul.f32 %v4463, %v3529
        %v5774 = vmul.f32 %v4462, %v3534
        %v5775 = vmul.f32 %v4461, %v3539
        %v5776 = vmul.f32 %v4460, %v3544
        %v5777 = vmul.f32 %v4459, %v3549
        %v5778 = vmul.f32 %v4458, %v3554
        %v5779 = vmul.f32 %v4457, %v3559
        %v5780 = vmul.f32 %v4456, %v3564
        %v5781 = vmul.f32 %v4455, %v3569
        %v5782 = vmul.f32 %v4454, %v3574
        %v5783 = vmul.f32 %v4453, %v3579
        %v5784 = vmul.f32 %v4452, %v3584
        %v5785 = vmul.f32 %v4451, %v3589
        %v5786 = vmul.f32 %v4450, %v3594
        %v5787 = vmul.f32 %v4449, %v3599
        %v5788 = vmul.f32 %v4448, %v3604
        %v5789 = vmul.f32 %v4447, %v3609
        %v5790 = vmul.f32 %v4446, %v3614
        %v5791 = vmul.f32 %v4445, %v3619
        %v5792 = vmul.f32 %v4444, %v3624
        %v5793 = vmul.f32 %v4443, %v3629
        %v5794 = vmul.f32 %v4442, %v3634
        %v5795 = vmul.f32 %v4441, %v3639
        %v5796 = vmul.f32 %v4440, %v3644
        %v5797 = vmul.f32 %v4439, %v3649
        %v5798 = vmul.f32 %v4438, %v3654
        %v5799 = vmul.f32 %v4469, %v3659
        %v5800 = vmul.f32 %v4468, %v3664
        %v5801 = vmul.f32 %v4467, %v3669
        %v5802 = vpack.c.bf16 %v5771, %v5770
        %v5803 = vpack.c.bf16 %v5773, %v5772
        %v5804 = vpack.c.bf16 %v5775, %v5774
        %v5805 = vpack.c.bf16 %v5777, %v5776
        %v5806 = vpack.c.bf16 %v5779, %v5778
        %v5807 = vpack.c.bf16 %v5781, %v5780
        %v5808 = vpack.c.bf16 %v5783, %v5782
        %v5809 = vpack.c.bf16 %v5785, %v5784
        %v5810 = vpack.c.bf16 %v5787, %v5786
        %v5811 = vpack.c.bf16 %v5789, %v5788
        %v5812 = vpack.c.bf16 %v5791, %v5790
        %v5813 = vpack.c.bf16 %v5793, %v5792
        %v5814 = vpack.c.bf16 %v5795, %v5794
        %v5815 = vpack.c.bf16 %v5797, %v5796
        %v5816 = vpack.c.bf16 %v5799, %v5798
        %v5817 = vpack.c.bf16 %v5801, %v5800
        %s5818 = scalar_lea.vmem %s4, 32
        %v5819 = vld [vmem:[%s5818] sm:$0xf]
        %v5821 = vsel %vm4124, %v5802, 0
        %v5824 = vsel %vm4124, %v5803, 0
        %v5827 = vsel %vm4124, %v5804, 0
        %v5830 = vsel %vm4124, %v5805, 0
        %v5833 = vsel %vm4124, %v5806, 0
        %v5836 = vsel %vm4124, %v5807, 0
        %v5839 = vsel %vm4124, %v5808, 0
        %v5842 = vsel %vm4124, %v5809, 0
        %v5845 = vsel %vm4124, %v5810, 0
        %v5848 = vsel %vm4124, %v5811, 0
        %v5851 = vsel %vm4124, %v5812, 0
        %v5854 = vsel %vm4124, %v5813, 0
        %v5857 = vsel %vm4124, %v5814, 0
        %v5860 = vsel %vm4124, %v5815, 0
        %v5863 = vsel %vm4124, %v5816, 0
        %v5866 = vsel %vm4124, %v5817, 0
        %v5869 = vsel %vm4173, %v5819, 0
        %5871 = vmatpush.bf16.msra.mxu0 0
        %5872 = vmatpush.bf16.msra.mxu0 0
        %5873 = vmatpush.bf16.msra.mxu0 0
        %5874 = vmatpush.bf16.msra.mxu0 0
        %5875 = vmatpush.bf16.msra.mxu0 0
        %5876 = vmatpush.bf16.msra.mxu0 0
        %5877 = vmatpush.bf16.msra.mxu0 0
        %5878 = vmatpush.bf16.msra.mxu0 %v5869
        %5879 = vmatmul.bf16.gmra.mxu0 %v5821
        %v5880 = vpop.f32.mrf.mxu0
        %v5881 = vadd.f32 0.0, %v5880
        %v5882 = vpop.f32.mrf.mxu0
        %v5883 = vadd.f32 0.0, %v5882
        %5884 = vmatmul.bf16.gmra.mxu0 %v5824
        %v5885 = vpop.f32.mrf.mxu0
        %v5886 = vadd.f32 0.0, %v5885
        %v5887 = vpop.f32.mrf.mxu0
        %v5888 = vadd.f32 0.0, %v5887
        %5889 = vmatmul.bf16.gmra.mxu0 %v5827
        %v5890 = vpop.f32.mrf.mxu0
        %v5891 = vadd.f32 0.0, %v5890
        %v5892 = vpop.f32.mrf.mxu0
        %v5893 = vadd.f32 0.0, %v5892
        %5894 = vmatmul.bf16.gmra.mxu0 %v5830
        %v5895 = vpop.f32.mrf.mxu0
        %v5896 = vadd.f32 0.0, %v5895
        %v5897 = vpop.f32.mrf.mxu0
        %v5898 = vadd.f32 0.0, %v5897
        %5899 = vmatmul.bf16.gmra.mxu0 %v5833
        %v5900 = vpop.f32.mrf.mxu0
        %v5901 = vadd.f32 0.0, %v5900
        %v5902 = vpop.f32.mrf.mxu0
        %v5903 = vadd.f32 0.0, %v5902
        %5904 = vmatmul.bf16.gmra.mxu0 %v5836
        %v5905 = vpop.f32.mrf.mxu0
        %v5906 = vadd.f32 0.0, %v5905
        %v5907 = vpop.f32.mrf.mxu0
        %v5908 = vadd.f32 0.0, %v5907
        %5909 = vmatmul.bf16.gmra.mxu0 %v5839
        %v5910 = vpop.f32.mrf.mxu0
        %v5911 = vadd.f32 0.0, %v5910
        %v5912 = vpop.f32.mrf.mxu0
        %v5913 = vadd.f32 0.0, %v5912
        %5914 = vmatmul.bf16.gmra.mxu0 %v5842
        %v5915 = vpop.f32.mrf.mxu0
        %v5916 = vadd.f32 0.0, %v5915
        %v5917 = vpop.f32.mrf.mxu0
        %v5918 = vadd.f32 0.0, %v5917
        %5919 = vmatmul.bf16.gmra.mxu0 %v5845
        %v5920 = vpop.f32.mrf.mxu0
        %v5921 = vadd.f32 0.0, %v5920
        %v5922 = vpop.f32.mrf.mxu0
        %v5923 = vadd.f32 0.0, %v5922
        %5924 = vmatmul.bf16.gmra.mxu0 %v5848
        %v5925 = vpop.f32.mrf.mxu0
        %v5926 = vadd.f32 0.0, %v5925
        %v5927 = vpop.f32.mrf.mxu0
        %v5928 = vadd.f32 0.0, %v5927
        %5929 = vmatmul.bf16.gmra.mxu0 %v5851
        %v5930 = vpop.f32.mrf.mxu0
        %v5931 = vadd.f32 0.0, %v5930
        %v5932 = vpop.f32.mrf.mxu0
        %v5933 = vadd.f32 0.0, %v5932
        %5934 = vmatmul.bf16.gmra.mxu0 %v5854
        %v5935 = vpop.f32.mrf.mxu0
        %v5936 = vadd.f32 0.0, %v5935
        %v5937 = vpop.f32.mrf.mxu0
        %v5938 = vadd.f32 0.0, %v5937
        %5939 = vmatmul.bf16.gmra.mxu0 %v5857
        %v5940 = vpop.f32.mrf.mxu0
        %v5941 = vadd.f32 0.0, %v5940
        %v5942 = vpop.f32.mrf.mxu0
        %v5943 = vadd.f32 0.0, %v5942
        %5944 = vmatmul.bf16.gmra.mxu0 %v5860
        %v5945 = vpop.f32.mrf.mxu0
        %v5946 = vadd.f32 0.0, %v5945
        %v5947 = vpop.f32.mrf.mxu0
        %v5948 = vadd.f32 0.0, %v5947
        %5949 = vmatmul.bf16.gmra.mxu0 %v5863
        %v5950 = vpop.f32.mrf.mxu0
        %v5951 = vadd.f32 0.0, %v5950
        %v5952 = vpop.f32.mrf.mxu0
        %v5953 = vadd.f32 0.0, %v5952
        %5954 = vmatmul.bf16.gmra.mxu0 %v5866
        %v5955 = vpop.f32.mrf.mxu0
        %v5956 = vadd.f32 0.0, %v5955
        %v5957 = vpop.f32.mrf.mxu0
        %v5958 = vadd.f32 0.0, %v5957
        %5959 = vdwg.mxu0
        %v5960 = vadd.f32 %v5738, %v5881
        %v5961 = vadd.f32 %v5739, %v5883
        %v5962 = vadd.f32 %v5740, %v5886
        %v5963 = vadd.f32 %v5741, %v5888
        %v5964 = vadd.f32 %v5742, %v5891
        %v5965 = vadd.f32 %v5743, %v5893
        %v5966 = vadd.f32 %v5744, %v5896
        %v5967 = vadd.f32 %v5745, %v5898
        %v5968 = vadd.f32 %v5746, %v5901
        %v5969 = vadd.f32 %v5747, %v5903
        %v5970 = vadd.f32 %v5748, %v5906
        %v5971 = vadd.f32 %v5749, %v5908
        %v5972 = vadd.f32 %v5750, %v5911
        %v5973 = vadd.f32 %v5751, %v5913
        %v5974 = vadd.f32 %v5752, %v5916
        %v5975 = vadd.f32 %v5753, %v5918
        %v5976 = vadd.f32 %v5754, %v5921
        %v5977 = vadd.f32 %v5755, %v5923
        %v5978 = vadd.f32 %v5756, %v5926
        %v5979 = vadd.f32 %v5757, %v5928
        %v5980 = vadd.f32 %v5758, %v5931
        %v5981 = vadd.f32 %v5759, %v5933
        %v5982 = vadd.f32 %v5760, %v5936
        %v5983 = vadd.f32 %v5761, %v5938
        %v5984 = vadd.f32 %v5762, %v5941
        %v5985 = vadd.f32 %v5763, %v5943
        %v5986 = vadd.f32 %v5764, %v5946
        %v5987 = vadd.f32 %v5765, %v5948
        %v5988 = vadd.f32 %v5766, %v5951
        %v5989 = vadd.f32 %v5767, %v5953
        %v5990 = vadd.f32 %v5768, %v5956
        %v5991 = vadd.f32 %v5769, %v5958
        %v5992 = vld [vmem:[%s5] sm:$0x1]
        %v5994 = vperm.slane %v5992, 0
        %v5996 = vadd.f32 %v5960, %v5994
        %v5997 = vadd.f32 %v5961, %v5994
        %v5998 = vadd.f32 %v5962, %v5994
        %v5999 = vadd.f32 %v5963, %v5994
        %v6000 = vadd.f32 %v5964, %v5994
        %v6001 = vadd.f32 %v5965, %v5994
        %v6002 = vadd.f32 %v5966, %v5994
        %v6003 = vadd.f32 %v5967, %v5994
        %v6004 = vadd.f32 %v5968, %v5994
        %v6005 = vadd.f32 %v5969, %v5994
        %v6006 = vadd.f32 %v5970, %v5994
        %v6007 = vadd.f32 %v5971, %v5994
        %v6008 = vadd.f32 %v5972, %v5994
        %v6009 = vadd.f32 %v5973, %v5994
        %v6010 = vadd.f32 %v5974, %v5994
        %v6011 = vadd.f32 %v5975, %v5994
        %v6012 = vadd.f32 %v5976, %v5994
        %v6013 = vadd.f32 %v5977, %v5994
        %v6014 = vadd.f32 %v5978, %v5994
        %v6015 = vadd.f32 %v5979, %v5994
        %v6016 = vadd.f32 %v5980, %v5994
        %v6017 = vadd.f32 %v5981, %v5994
        %v6018 = vadd.f32 %v5982, %v5994
        %v6019 = vadd.f32 %v5983, %v5994
        %v6020 = vadd.f32 %v5984, %v5994
        %v6021 = vadd.f32 %v5985, %v5994
        %v6022 = vadd.f32 %v5986, %v5994
        %v6023 = vadd.f32 %v5987, %v5994
        %v6024 = vadd.f32 %v5988, %v5994
        %v6025 = vadd.f32 %v5989, %v5994
        %v6026 = vadd.f32 %v5990, %v5994
        %v6027 = vadd.f32 %v5991, %v5994
        %v6028 = vmax.f32 %v5996, 0.0
        %v6029 = vmax.f32 %v5997, 0.0
        %v6030 = vmax.f32 %v5998, 0.0
        %v6031 = vmax.f32 %v5999, 0.0
        %v6032 = vmax.f32 %v6000, 0.0
        %v6033 = vmax.f32 %v6001, 0.0
        %v6034 = vmax.f32 %v6002, 0.0
        %v6035 = vmax.f32 %v6003, 0.0
        %v6036 = vmax.f32 %v6004, 0.0
        %v6037 = vmax.f32 %v6005, 0.0
        %v6038 = vmax.f32 %v6006, 0.0
        %v6039 = vmax.f32 %v6007, 0.0
        %v6040 = vmax.f32 %v6008, 0.0
        %v6041 = vmax.f32 %v6009, 0.0
        %v6042 = vmax.f32 %v6010, 0.0
        %v6043 = vmax.f32 %v6011, 0.0
        %v6044 = vmax.f32 %v6012, 0.0
        %v6045 = vmax.f32 %v6013, 0.0
        %v6046 = vmax.f32 %v6014, 0.0
        %v6047 = vmax.f32 %v6015, 0.0
        %v6048 = vmax.f32 %v6016, 0.0
        %v6049 = vmax.f32 %v6017, 0.0
        %v6050 = vmax.f32 %v6018, 0.0
        %v6051 = vmax.f32 %v6019, 0.0
        %v6052 = vmax.f32 %v6020, 0.0
        %v6053 = vmax.f32 %v6021, 0.0
        %v6054 = vmax.f32 %v6022, 0.0
        %v6055 = vmax.f32 %v6023, 0.0
        %v6056 = vmax.f32 %v6024, 0.0
        %v6057 = vmax.f32 %v6025, 0.0
        %v6058 = vmax.f32 %v6026, 0.0
        %v6059 = vmax.f32 %v6027, 0.0
        %v6060 = vsel %vm4124, %v6028, -inf
        %v6061 = vsel %vm4124, %v6030, -inf
        %v6062 = vmax.f32 %v6060, %v6061
        %v6063 = vsel %vm4124, %v6029, -inf
        %v6064 = vsel %vm4124, %v6031, -inf
        %v6065 = vmax.f32 %v6063, %v6064
        %v6066 = vsel %vm4124, %v6032, -inf
        %v6067 = vsel %vm4124, %v6034, -inf
        %v6068 = vmax.f32 %v6066, %v6067
        %v6069 = vsel %vm4124, %v6033, -inf
        %v6070 = vsel %vm4124, %v6035, -inf
        %v6071 = vmax.f32 %v6069, %v6070
        %v6072 = vsel %vm4124, %v6036, -inf
        %v6073 = vsel %vm4124, %v6038, -inf
        %v6074 = vmax.f32 %v6072, %v6073
        %v6075 = vsel %vm4124, %v6037, -inf
        %v6076 = vsel %vm4124, %v6039, -inf
        %v6077 = vmax.f32 %v6075, %v6076
        %v6078 = vsel %vm4124, %v6040, -inf
        %v6079 = vsel %vm4124, %v6042, -inf
        %v6080 = vmax.f32 %v6078, %v6079
        %v6081 = vsel %vm4124, %v6041, -inf
        %v6082 = vsel %vm4124, %v6043, -inf
        %v6083 = vmax.f32 %v6081, %v6082
        %v6084 = vsel %vm4124, %v6044, -inf
        %v6085 = vsel %vm4124, %v6046, -inf
        %v6086 = vmax.f32 %v6084, %v6085
        %v6087 = vsel %vm4124, %v6045, -inf
        %v6088 = vsel %vm4124, %v6047, -inf
        %v6089 = vmax.f32 %v6087, %v6088
        %v6090 = vsel %vm4124, %v6048, -inf
        %v6091 = vsel %vm4124, %v6050, -inf
        %v6092 = vmax.f32 %v6090, %v6091
        %v6093 = vsel %vm4124, %v6049, -inf
        %v6094 = vsel %vm4124, %v6051, -inf
        %v6095 = vmax.f32 %v6093, %v6094
        %v6096 = vsel %vm4124, %v6052, -inf
        %v6097 = vsel %vm4124, %v6054, -inf
        %v6098 = vmax.f32 %v6096, %v6097
        %v6099 = vsel %vm4124, %v6053, -inf
        %v6100 = vsel %vm4124, %v6055, -inf
        %v6101 = vmax.f32 %v6099, %v6100
        %v6102 = vsel %vm4124, %v6056, -inf
        %v6103 = vsel %vm4124, %v6058, -inf
        %v6104 = vmax.f32 %v6102, %v6103
        %v6105 = vsel %vm4124, %v6057, -inf
        %v6106 = vsel %vm4124, %v6059, -inf
        %v6107 = vmax.f32 %v6105, %v6106
        %v6124 = vrot.slane %v6062, 2
        %v6125 = vrot.slane %v6062, 4
        %v6126 = vrot.slane %v6062, 6
        %v6127 = vrot.slane %v6065, 2
        %v6128 = vrot.slane %v6065, 4
        %v6129 = vrot.slane %v6065, 6
        %v6130 = vrot.slane %v6068, 2
        %v6131 = vrot.slane %v6068, 4
        %v6132 = vrot.slane %v6068, 6
        %v6133 = vrot.slane %v6071, 2
        %v6134 = vrot.slane %v6071, 4
        %v6135 = vrot.slane %v6071, 6
        %v6136 = vrot.slane %v6074, 2
        %v6137 = vrot.slane %v6074, 4
        %v6138 = vrot.slane %v6074, 6
        %v6139 = vrot.slane %v6077, 2
        %v6140 = vrot.slane %v6077, 4
        %v6141 = vrot.slane %v6077, 6
        %v6142 = vrot.slane %v6080, 2
        %v6143 = vrot.slane %v6080, 4
        %v6144 = vrot.slane %v6080, 6
        %v6145 = vrot.slane %v6083, 2
        %v6146 = vrot.slane %v6083, 4
        %v6147 = vrot.slane %v6083, 6
        %v6148 = vrot.slane %v6086, 2
        %v6149 = vrot.slane %v6086, 4
        %v6150 = vrot.slane %v6086, 6
        %v6151 = vrot.slane %v6089, 2
        %v6152 = vrot.slane %v6089, 4
        %v6153 = vrot.slane %v6089, 6
        %v6154 = vrot.slane %v6092, 2
        %v6155 = vrot.slane %v6092, 4
        %v6156 = vrot.slane %v6092, 6
        %v6157 = vrot.slane %v6095, 2
        %v6158 = vrot.slane %v6095, 4
        %v6159 = vrot.slane %v6095, 6
        %v6160 = vrot.slane %v6098, 2
        %v6161 = vrot.slane %v6098, 4
        %v6162 = vrot.slane %v6098, 6
        %v6163 = vrot.slane %v6101, 2
        %v6164 = vrot.slane %v6101, 4
        %v6165 = vrot.slane %v6101, 6
        %v6166 = vrot.slane %v6104, 2
        %v6167 = vrot.slane %v6104, 4
        %v6168 = vrot.slane %v6104, 6
        %v6169 = vrot.slane %v6107, 2
        %v6170 = vrot.slane %v6107, 4
        %v6171 = vrot.slane %v6107, 6
        %vm6220 = vcmask 58368
        %v6221 = vsel %vm6220, %v6062, -inf
        %v6222 = vrot.slane %v6221, 4
        %v6223 = vmax.f32 %v6221, %v6222
        %v6224 = vrot.slane %v6223, 2
        %v6225 = vmax.f32 %v6223, %v6224
        %v6226 = vrot.slane %v6225, 1
        %v6227 = vmax.f32 %v6225, %v6226
        %v6228 = vsel %vm6220, %v6124, -inf
        %v6229 = vrot.slane %v6228, 4
        %v6230 = vmax.f32 %v6228, %v6229
        %v6231 = vrot.slane %v6230, 2
        %v6232 = vmax.f32 %v6230, %v6231
        %v6233 = vrot.slane %v6232, 1
        %v6234 = vmax.f32 %v6232, %v6233
        %v6235 = vsel %vm6220, %v6125, -inf
        %v6236 = vrot.slane %v6235, 4
        %v6237 = vmax.f32 %v6235, %v6236
        %v6238 = vrot.slane %v6237, 2
        %v6239 = vmax.f32 %v6237, %v6238
        %v6240 = vrot.slane %v6239, 1
        %v6241 = vmax.f32 %v6239, %v6240
        %v6242 = vsel %vm6220, %v6126, -inf
        %v6243 = vrot.slane %v6242, 4
        %v6244 = vmax.f32 %v6242, %v6243
        %v6245 = vrot.slane %v6244, 2
        %v6246 = vmax.f32 %v6244, %v6245
        %v6247 = vrot.slane %v6246, 1
        %v6248 = vmax.f32 %v6246, %v6247
        %v6249 = vsel %vm6220, %v6065, -inf
        %v6250 = vrot.slane %v6249, 4
        %v6251 = vmax.f32 %v6249, %v6250
        %v6252 = vrot.slane %v6251, 2
        %v6253 = vmax.f32 %v6251, %v6252
        %v6254 = vrot.slane %v6253, 1
        %v6255 = vmax.f32 %v6253, %v6254
        %v6256 = vsel %vm6220, %v6127, -inf
        %v6257 = vrot.slane %v6256, 4
        %v6258 = vmax.f32 %v6256, %v6257
        %v6259 = vrot.slane %v6258, 2
        %v6260 = vmax.f32 %v6258, %v6259
        %v6261 = vrot.slane %v6260, 1
        %v6262 = vmax.f32 %v6260, %v6261
        %v6263 = vsel %vm6220, %v6128, -inf
        %v6264 = vrot.slane %v6263, 4
        %v6265 = vmax.f32 %v6263, %v6264
        %v6266 = vrot.slane %v6265, 2
        %v6267 = vmax.f32 %v6265, %v6266
        %v6268 = vrot.slane %v6267, 1
        %v6269 = vmax.f32 %v6267, %v6268
        %v6270 = vsel %vm6220, %v6129, -inf
        %v6271 = vrot.slane %v6270, 4
        %v6272 = vmax.f32 %v6270, %v6271
        %v6273 = vrot.slane %v6272, 2
        %v6274 = vmax.f32 %v6272, %v6273
        %v6275 = vrot.slane %v6274, 1
        %v6276 = vmax.f32 %v6274, %v6275
        %v6277 = vsel %vm6220, %v6068, -inf
        %v6278 = vrot.slane %v6277, 4
        %v6279 = vmax.f32 %v6277, %v6278
        %v6280 = vrot.slane %v6279, 2
        %v6281 = vmax.f32 %v6279, %v6280
        %v6282 = vrot.slane %v6281, 1
        %v6283 = vmax.f32 %v6281, %v6282
        %v6284 = vsel %vm6220, %v6130, -inf
        %v6285 = vrot.slane %v6284, 4
        %v6286 = vmax.f32 %v6284, %v6285
        %v6287 = vrot.slane %v6286, 2
        %v6288 = vmax.f32 %v6286, %v6287
        %v6289 = vrot.slane %v6288, 1
        %v6290 = vmax.f32 %v6288, %v6289
        %v6291 = vsel %vm6220, %v6131, -inf
        %v6292 = vrot.slane %v6291, 4
        %v6293 = vmax.f32 %v6291, %v6292
        %v6294 = vrot.slane %v6293, 2
        %v6295 = vmax.f32 %v6293, %v6294
        %v6296 = vrot.slane %v6295, 1
        %v6297 = vmax.f32 %v6295, %v6296
        %v6298 = vsel %vm6220, %v6132, -inf
        %v6299 = vrot.slane %v6298, 4
        %v6300 = vmax.f32 %v6298, %v6299
        %v6301 = vrot.slane %v6300, 2
        %v6302 = vmax.f32 %v6300, %v6301
        %v6303 = vrot.slane %v6302, 1
        %v6304 = vmax.f32 %v6302, %v6303
        %v6305 = vsel %vm6220, %v6071, -inf
        %v6306 = vrot.slane %v6305, 4
        %v6307 = vmax.f32 %v6305, %v6306
        %v6308 = vrot.slane %v6307, 2
        %v6309 = vmax.f32 %v6307, %v6308
        %v6310 = vrot.slane %v6309, 1
        %v6311 = vmax.f32 %v6309, %v6310
        %v6312 = vsel %vm6220, %v6133, -inf
        %v6313 = vrot.slane %v6312, 4
        %v6314 = vmax.f32 %v6312, %v6313
        %v6315 = vrot.slane %v6314, 2
        %v6316 = vmax.f32 %v6314, %v6315
        %v6317 = vrot.slane %v6316, 1
        %v6318 = vmax.f32 %v6316, %v6317
        %v6319 = vsel %vm6220, %v6134, -inf
        %v6320 = vrot.slane %v6319, 4
        %v6321 = vmax.f32 %v6319, %v6320
        %v6322 = vrot.slane %v6321, 2
        %v6323 = vmax.f32 %v6321, %v6322
        %v6324 = vrot.slane %v6323, 1
        %v6325 = vmax.f32 %v6323, %v6324
        %v6326 = vsel %vm6220, %v6135, -inf
        %v6327 = vrot.slane %v6326, 4
        %v6328 = vmax.f32 %v6326, %v6327
        %v6329 = vrot.slane %v6328, 2
        %v6330 = vmax.f32 %v6328, %v6329
        %v6331 = vrot.slane %v6330, 1
        %v6332 = vmax.f32 %v6330, %v6331
        %v6333 = vsel %vm6220, %v6074, -inf
        %v6334 = vrot.slane %v6333, 4
        %v6335 = vmax.f32 %v6333, %v6334
        %v6336 = vrot.slane %v6335, 2
        %v6337 = vmax.f32 %v6335, %v6336
        %v6338 = vrot.slane %v6337, 1
        %v6339 = vmax.f32 %v6337, %v6338
        %v6340 = vsel %vm6220, %v6136, -inf
        %v6341 = vrot.slane %v6340, 4
        %v6342 = vmax.f32 %v6340, %v6341
        %v6343 = vrot.slane %v6342, 2
        %v6344 = vmax.f32 %v6342, %v6343
        %v6345 = vrot.slane %v6344, 1
        %v6346 = vmax.f32 %v6344, %v6345
        %v6347 = vsel %vm6220, %v6137, -inf
        %v6348 = vrot.slane %v6347, 4
        %v6349 = vmax.f32 %v6347, %v6348
        %v6350 = vrot.slane %v6349, 2
        %v6351 = vmax.f32 %v6349, %v6350
        %v6352 = vrot.slane %v6351, 1
        %v6353 = vmax.f32 %v6351, %v6352
        %v6354 = vsel %vm6220, %v6138, -inf
        %v6355 = vrot.slane %v6354, 4
        %v6356 = vmax.f32 %v6354, %v6355
        %v6357 = vrot.slane %v6356, 2
        %v6358 = vmax.f32 %v6356, %v6357
        %v6359 = vrot.slane %v6358, 1
        %v6360 = vmax.f32 %v6358, %v6359
        %v6361 = vsel %vm6220, %v6077, -inf
        %v6362 = vrot.slane %v6361, 4
        %v6363 = vmax.f32 %v6361, %v6362
        %v6364 = vrot.slane %v6363, 2
        %v6365 = vmax.f32 %v6363, %v6364
        %v6366 = vrot.slane %v6365, 1
        %v6367 = vmax.f32 %v6365, %v6366
        %v6368 = vsel %vm6220, %v6139, -inf
        %v6369 = vrot.slane %v6368, 4
        %v6370 = vmax.f32 %v6368, %v6369
        %v6371 = vrot.slane %v6370, 2
        %v6372 = vmax.f32 %v6370, %v6371
        %v6373 = vrot.slane %v6372, 1
        %v6374 = vmax.f32 %v6372, %v6373
        %v6375 = vsel %vm6220, %v6140, -inf
        %v6376 = vrot.slane %v6375, 4
        %v6377 = vmax.f32 %v6375, %v6376
        %v6378 = vrot.slane %v6377, 2
        %v6379 = vmax.f32 %v6377, %v6378
        %v6380 = vrot.slane %v6379, 1
        %v6381 = vmax.f32 %v6379, %v6380
        %v6382 = vsel %vm6220, %v6141, -inf
        %v6383 = vrot.slane %v6382, 4
        %v6384 = vmax.f32 %v6382, %v6383
        %v6385 = vrot.slane %v6384, 2
        %v6386 = vmax.f32 %v6384, %v6385
        %v6387 = vrot.slane %v6386, 1
        %v6388 = vmax.f32 %v6386, %v6387
        %v6389 = vsel %vm6220, %v6080, -inf
        %v6390 = vrot.slane %v6389, 4
        %v6391 = vmax.f32 %v6389, %v6390
        %v6392 = vrot.slane %v6391, 2
        %v6393 = vmax.f32 %v6391, %v6392
        %v6394 = vrot.slane %v6393, 1
        %v6395 = vmax.f32 %v6393, %v6394
        %v6396 = vsel %vm6220, %v6142, -inf
        %v6397 = vrot.slane %v6396, 4
        %v6398 = vmax.f32 %v6396, %v6397
        %v6399 = vrot.slane %v6398, 2
        %v6400 = vmax.f32 %v6398, %v6399
        %v6401 = vrot.slane %v6400, 1
        %v6402 = vmax.f32 %v6400, %v6401
        %v6403 = vsel %vm6220, %v6143, -inf
        %v6404 = vrot.slane %v6403, 4
        %v6405 = vmax.f32 %v6403, %v6404
        %v6406 = vrot.slane %v6405, 2
        %v6407 = vmax.f32 %v6405, %v6406
        %v6408 = vrot.slane %v6407, 1
        %v6409 = vmax.f32 %v6407, %v6408
        %v6410 = vsel %vm6220, %v6144, -inf
        %v6411 = vrot.slane %v6410, 4
        %v6412 = vmax.f32 %v6410, %v6411
        %v6413 = vrot.slane %v6412, 2
        %v6414 = vmax.f32 %v6412, %v6413
        %v6415 = vrot.slane %v6414, 1
        %v6416 = vmax.f32 %v6414, %v6415
        %v6417 = vsel %vm6220, %v6083, -inf
        %v6418 = vrot.slane %v6417, 4
        %v6419 = vmax.f32 %v6417, %v6418
        %v6420 = vrot.slane %v6419, 2
        %v6421 = vmax.f32 %v6419, %v6420
        %v6422 = vrot.slane %v6421, 1
        %v6423 = vmax.f32 %v6421, %v6422
        %v6424 = vsel %vm6220, %v6145, -inf
        %v6425 = vrot.slane %v6424, 4
        %v6426 = vmax.f32 %v6424, %v6425
        %v6427 = vrot.slane %v6426, 2
        %v6428 = vmax.f32 %v6426, %v6427
        %v6429 = vrot.slane %v6428, 1
        %v6430 = vmax.f32 %v6428, %v6429
        %v6431 = vsel %vm6220, %v6146, -inf
        %v6432 = vrot.slane %v6431, 4
        %v6433 = vmax.f32 %v6431, %v6432
        %v6434 = vrot.slane %v6433, 2
        %v6435 = vmax.f32 %v6433, %v6434
        %v6436 = vrot.slane %v6435, 1
        %v6437 = vmax.f32 %v6435, %v6436
        %v6438 = vsel %vm6220, %v6147, -inf
        %v6439 = vrot.slane %v6438, 4
        %v6440 = vmax.f32 %v6438, %v6439
        %v6441 = vrot.slane %v6440, 2
        %v6442 = vmax.f32 %v6440, %v6441
        %v6443 = vrot.slane %v6442, 1
        %v6444 = vmax.f32 %v6442, %v6443
        %v6445 = vsel %vm6220, %v6086, -inf
        %v6446 = vrot.slane %v6445, 4
        %v6447 = vmax.f32 %v6445, %v6446
        %v6448 = vrot.slane %v6447, 2
        %v6449 = vmax.f32 %v6447, %v6448
        %v6450 = vrot.slane %v6449, 1
        %v6451 = vmax.f32 %v6449, %v6450
        %v6452 = vsel %vm6220, %v6148, -inf
        %v6453 = vrot.slane %v6452, 4
        %v6454 = vmax.f32 %v6452, %v6453
        %v6455 = vrot.slane %v6454, 2
        %v6456 = vmax.f32 %v6454, %v6455
        %v6457 = vrot.slane %v6456, 1
        %v6458 = vmax.f32 %v6456, %v6457
        %v6459 = vsel %vm6220, %v6149, -inf
        %v6460 = vrot.slane %v6459, 4
        %v6461 = vmax.f32 %v6459, %v6460
        %v6462 = vrot.slane %v6461, 2
        %v6463 = vmax.f32 %v6461, %v6462
        %v6464 = vrot.slane %v6463, 1
        %v6465 = vmax.f32 %v6463, %v6464
        %v6466 = vsel %vm6220, %v6150, -inf
        %v6467 = vrot.slane %v6466, 4
        %v6468 = vmax.f32 %v6466, %v6467
        %v6469 = vrot.slane %v6468, 2
        %v6470 = vmax.f32 %v6468, %v6469
        %v6471 = vrot.slane %v6470, 1
        %v6472 = vmax.f32 %v6470, %v6471
        %v6473 = vsel %vm6220, %v6089, -inf
        %v6474 = vrot.slane %v6473, 4
        %v6475 = vmax.f32 %v6473, %v6474
        %v6476 = vrot.slane %v6475, 2
        %v6477 = vmax.f32 %v6475, %v6476
        %v6478 = vrot.slane %v6477, 1
        %v6479 = vmax.f32 %v6477, %v6478
        %v6480 = vsel %vm6220, %v6151, -inf
        %v6481 = vrot.slane %v6480, 4
        %v6482 = vmax.f32 %v6480, %v6481
        %v6483 = vrot.slane %v6482, 2
        %v6484 = vmax.f32 %v6482, %v6483
        %v6485 = vrot.slane %v6484, 1
        %v6486 = vmax.f32 %v6484, %v6485
        %v6487 = vsel %vm6220, %v6152, -inf
        %v6488 = vrot.slane %v6487, 4
        %v6489 = vmax.f32 %v6487, %v6488
        %v6490 = vrot.slane %v6489, 2
        %v6491 = vmax.f32 %v6489, %v6490
        %v6492 = vrot.slane %v6491, 1
        %v6493 = vmax.f32 %v6491, %v6492
        %v6494 = vsel %vm6220, %v6153, -inf
        %v6495 = vrot.slane %v6494, 4
        %v6496 = vmax.f32 %v6494, %v6495
        %v6497 = vrot.slane %v6496, 2
        %v6498 = vmax.f32 %v6496, %v6497
        %v6499 = vrot.slane %v6498, 1
        %v6500 = vmax.f32 %v6498, %v6499
        %v6501 = vsel %vm6220, %v6092, -inf
        %v6502 = vrot.slane %v6501, 4
        %v6503 = vmax.f32 %v6501, %v6502
        %v6504 = vrot.slane %v6503, 2
        %v6505 = vmax.f32 %v6503, %v6504
        %v6506 = vrot.slane %v6505, 1
        %v6507 = vmax.f32 %v6505, %v6506
        %v6508 = vsel %vm6220, %v6154, -inf
        %v6509 = vrot.slane %v6508, 4
        %v6510 = vmax.f32 %v6508, %v6509
        %v6511 = vrot.slane %v6510, 2
        %v6512 = vmax.f32 %v6510, %v6511
        %v6513 = vrot.slane %v6512, 1
        %v6514 = vmax.f32 %v6512, %v6513
        %v6515 = vsel %vm6220, %v6155, -inf
        %v6516 = vrot.slane %v6515, 4
        %v6517 = vmax.f32 %v6515, %v6516
        %v6518 = vrot.slane %v6517, 2
        %v6519 = vmax.f32 %v6517, %v6518
        %v6520 = vrot.slane %v6519, 1
        %v6521 = vmax.f32 %v6519, %v6520
        %v6522 = vsel %vm6220, %v6156, -inf
        %v6523 = vrot.slane %v6522, 4
        %v6524 = vmax.f32 %v6522, %v6523
        %v6525 = vrot.slane %v6524, 2
        %v6526 = vmax.f32 %v6524, %v6525
        %v6527 = vrot.slane %v6526, 1
        %v6528 = vmax.f32 %v6526, %v6527
        %v6529 = vsel %vm6220, %v6095, -inf
        %v6530 = vrot.slane %v6529, 4
        %v6531 = vmax.f32 %v6529, %v6530
        %v6532 = vrot.slane %v6531, 2
        %v6533 = vmax.f32 %v6531, %v6532
        %v6534 = vrot.slane %v6533, 1
        %v6535 = vmax.f32 %v6533, %v6534
        %v6536 = vsel %vm6220, %v6157, -inf
        %v6537 = vrot.slane %v6536, 4
        %v6538 = vmax.f32 %v6536, %v6537
        %v6539 = vrot.slane %v6538, 2
        %v6540 = vmax.f32 %v6538, %v6539
        %v6541 = vrot.slane %v6540, 1
        %v6542 = vmax.f32 %v6540, %v6541
        %v6543 = vsel %vm6220, %v6158, -inf
        %v6544 = vrot.slane %v6543, 4
        %v6545 = vmax.f32 %v6543, %v6544
        %v6546 = vrot.slane %v6545, 2
        %v6547 = vmax.f32 %v6545, %v6546
        %v6548 = vrot.slane %v6547, 1
        %v6549 = vmax.f32 %v6547, %v6548
        %v6550 = vsel %vm6220, %v6159, -inf
        %v6551 = vrot.slane %v6550, 4
        %v6552 = vmax.f32 %v6550, %v6551
        %v6553 = vrot.slane %v6552, 2
        %v6554 = vmax.f32 %v6552, %v6553
        %v6555 = vrot.slane %v6554, 1
        %v6556 = vmax.f32 %v6554, %v6555
        %v6557 = vsel %vm6220, %v6098, -inf
        %v6558 = vrot.slane %v6557, 4
        %v6559 = vmax.f32 %v6557, %v6558
        %v6560 = vrot.slane %v6559, 2
        %v6561 = vmax.f32 %v6559, %v6560
        %v6562 = vrot.slane %v6561, 1
        %v6563 = vmax.f32 %v6561, %v6562
        %v6564 = vsel %vm6220, %v6160, -inf
        %v6565 = vrot.slane %v6564, 4
        %v6566 = vmax.f32 %v6564, %v6565
        %v6567 = vrot.slane %v6566, 2
        %v6568 = vmax.f32 %v6566, %v6567
        %v6569 = vrot.slane %v6568, 1
        %v6570 = vmax.f32 %v6568, %v6569
        %v6571 = vsel %vm6220, %v6161, -inf
        %v6572 = vrot.slane %v6571, 4
        %v6573 = vmax.f32 %v6571, %v6572
        %v6574 = vrot.slane %v6573, 2
        %v6575 = vmax.f32 %v6573, %v6574
        %v6576 = vrot.slane %v6575, 1
        %v6577 = vmax.f32 %v6575, %v6576
        %v6578 = vsel %vm6220, %v6162, -inf
        %v6579 = vrot.slane %v6578, 4
        %v6580 = vmax.f32 %v6578, %v6579
        %v6581 = vrot.slane %v6580, 2
        %v6582 = vmax.f32 %v6580, %v6581
        %v6583 = vrot.slane %v6582, 1
        %v6584 = vmax.f32 %v6582, %v6583
        %v6585 = vsel %vm6220, %v6101, -inf
        %v6586 = vrot.slane %v6585, 4
        %v6587 = vmax.f32 %v6585, %v6586
        %v6588 = vrot.slane %v6587, 2
        %v6589 = vmax.f32 %v6587, %v6588
        %v6590 = vrot.slane %v6589, 1
        %v6591 = vmax.f32 %v6589, %v6590
        %v6592 = vsel %vm6220, %v6163, -inf
        %v6593 = vrot.slane %v6592, 4
        %v6594 = vmax.f32 %v6592, %v6593
        %v6595 = vrot.slane %v6594, 2
        %v6596 = vmax.f32 %v6594, %v6595
        %v6597 = vrot.slane %v6596, 1
        %v6598 = vmax.f32 %v6596, %v6597
        %v6599 = vsel %vm6220, %v6164, -inf
        %v6600 = vrot.slane %v6599, 4
        %v6601 = vmax.f32 %v6599, %v6600
        %v6602 = vrot.slane %v6601, 2
        %v6603 = vmax.f32 %v6601, %v6602
        %v6604 = vrot.slane %v6603, 1
        %v6605 = vmax.f32 %v6603, %v6604
        %v6606 = vsel %vm6220, %v6165, -inf
        %v6607 = vrot.slane %v6606, 4
        %v6608 = vmax.f32 %v6606, %v6607
        %v6609 = vrot.slane %v6608, 2
        %v6610 = vmax.f32 %v6608, %v6609
        %v6611 = vrot.slane %v6610, 1
        %v6612 = vmax.f32 %v6610, %v6611
        %v6613 = vsel %vm6220, %v6104, -inf
        %v6614 = vrot.slane %v6613, 4
        %v6615 = vmax.f32 %v6613, %v6614
        %v6616 = vrot.slane %v6615, 2
        %v6617 = vmax.f32 %v6615, %v6616
        %v6618 = vrot.slane %v6617, 1
        %v6619 = vmax.f32 %v6617, %v6618
        %v6620 = vsel %vm6220, %v6166, -inf
        %v6621 = vrot.slane %v6620, 4
        %v6622 = vmax.f32 %v6620, %v6621
        %v6623 = vrot.slane %v6622, 2
        %v6624 = vmax.f32 %v6622, %v6623
        %v6625 = vrot.slane %v6624, 1
        %v6626 = vmax.f32 %v6624, %v6625
        %v6627 = vsel %vm6220, %v6167, -inf
        %v6628 = vrot.slane %v6627, 4
        %v6629 = vmax.f32 %v6627, %v6628
        %v6630 = vrot.slane %v6629, 2
        %v6631 = vmax.f32 %v6629, %v6630
        %v6632 = vrot.slane %v6631, 1
        %v6633 = vmax.f32 %v6631, %v6632
        %v6634 = vsel %vm6220, %v6168, -inf
        %v6635 = vrot.slane %v6634, 4
        %v6636 = vmax.f32 %v6634, %v6635
        %v6637 = vrot.slane %v6636, 2
        %v6638 = vmax.f32 %v6636, %v6637
        %v6639 = vrot.slane %v6638, 1
        %v6640 = vmax.f32 %v6638, %v6639
        %v6641 = vsel %vm6220, %v6107, -inf
        %v6642 = vrot.slane %v6641, 4
        %v6643 = vmax.f32 %v6641, %v6642
        %v6644 = vrot.slane %v6643, 2
        %v6645 = vmax.f32 %v6643, %v6644
        %v6646 = vrot.slane %v6645, 1
        %v6647 = vmax.f32 %v6645, %v6646
        %v6648 = vsel %vm6220, %v6169, -inf
        %v6649 = vrot.slane %v6648, 4
        %v6650 = vmax.f32 %v6648, %v6649
        %v6651 = vrot.slane %v6650, 2
        %v6652 = vmax.f32 %v6650, %v6651
        %v6653 = vrot.slane %v6652, 1
        %v6654 = vmax.f32 %v6652, %v6653
        %v6655 = vsel %vm6220, %v6170, -inf
        %v6656 = vrot.slane %v6655, 4
        %v6657 = vmax.f32 %v6655, %v6656
        %v6658 = vrot.slane %v6657, 2
        %v6659 = vmax.f32 %v6657, %v6658
        %v6660 = vrot.slane %v6659, 1
        %v6661 = vmax.f32 %v6659, %v6660
        %v6662 = vsel %vm6220, %v6171, -inf
        %v6663 = vrot.slane %v6662, 4
        %v6664 = vmax.f32 %v6662, %v6663
        %v6665 = vrot.slane %v6664, 2
        %v6666 = vmax.f32 %v6664, %v6665
        %v6667 = vrot.slane %v6666, 1
        %v6668 = vmax.f32 %v6666, %v6667
        %vm6733 = vcmask 1041409
        %v6734 = vsel %vm6733, %v6234, %v6227
        %vm6735 = vcmask 1042434
        %v6736 = vsel %vm6735, %v6241, %v6734
        %vm6737 = vcmask 1043459
        %v6738 = vsel %vm6737, %v6248, %v6736
        %vm6739 = vcmask 1044484
        %v6740 = vsel %vm6739, %v6255, %v6738
        %vm6741 = vcmask 1045509
        %v6742 = vsel %vm6741, %v6262, %v6740
        %vm6743 = vcmask 1046534
        %v6744 = vsel %vm6743, %v6269, %v6742
        %vm6745 = vcmask 1047559
        %v6746 = vsel %vm6745, %v6276, %v6744
        %v6747 = vsel %vm6733, %v6290, %v6283
        %v6748 = vsel %vm6735, %v6297, %v6747
        %v6749 = vsel %vm6737, %v6304, %v6748
        %v6750 = vsel %vm6739, %v6311, %v6749
        %v6751 = vsel %vm6741, %v6318, %v6750
        %v6752 = vsel %vm6743, %v6325, %v6751
        %v6753 = vsel %vm6745, %v6332, %v6752
        %v6754 = vsel %vm6733, %v6346, %v6339
        %v6755 = vsel %vm6735, %v6353, %v6754
        %v6756 = vsel %vm6737, %v6360, %v6755
        %v6757 = vsel %vm6739, %v6367, %v6756
        %v6758 = vsel %vm6741, %v6374, %v6757
        %v6759 = vsel %vm6743, %v6381, %v6758
        %v6760 = vsel %vm6745, %v6388, %v6759
        %v6761 = vsel %vm6733, %v6402, %v6395
        %v6762 = vsel %vm6735, %v6409, %v6761
        %v6763 = vsel %vm6737, %v6416, %v6762
        %v6764 = vsel %vm6739, %v6423, %v6763
        %v6765 = vsel %vm6741, %v6430, %v6764
        %v6766 = vsel %vm6743, %v6437, %v6765
        %v6767 = vsel %vm6745, %v6444, %v6766
        %v6768 = vsel %vm6733, %v6458, %v6451
        %v6769 = vsel %vm6735, %v6465, %v6768
        %v6770 = vsel %vm6737, %v6472, %v6769
        %v6771 = vsel %vm6739, %v6479, %v6770
        %v6772 = vsel %vm6741, %v6486, %v6771
        %v6773 = vsel %vm6743, %v6493, %v6772
        %v6774 = vsel %vm6745, %v6500, %v6773
        %v6775 = vsel %vm6733, %v6514, %v6507
        %v6776 = vsel %vm6735, %v6521, %v6775
        %v6777 = vsel %vm6737, %v6528, %v6776
        %v6778 = vsel %vm6739, %v6535, %v6777
        %v6779 = vsel %vm6741, %v6542, %v6778
        %v6780 = vsel %vm6743, %v6549, %v6779
        %v6781 = vsel %vm6745, %v6556, %v6780
        %v6782 = vsel %vm6733, %v6570, %v6563
        %v6783 = vsel %vm6735, %v6577, %v6782
        %v6784 = vsel %vm6737, %v6584, %v6783
        %v6785 = vsel %vm6739, %v6591, %v6784
        %v6786 = vsel %vm6741, %v6598, %v6785
        %v6787 = vsel %vm6743, %v6605, %v6786
        %v6788 = vsel %vm6745, %v6612, %v6787
        %v6789 = vsel %vm6733, %v6626, %v6619
        %v6790 = vsel %vm6735, %v6633, %v6789
        %v6791 = vsel %vm6737, %v6640, %v6790
        %v6792 = vsel %vm6739, %v6647, %v6791
        %v6793 = vsel %vm6741, %v6654, %v6792
        %v6794 = vsel %vm6743, %v6661, %v6793
        %v6795 = vsel %vm6745, %v6668, %v6794
        %v6804 = vrot.slane %v6760, 4
        %vm6805 = vcmask 1047556
        %v6806 = vsel %vm6805, %v6804, %v6746
        %v6807 = vrot.slane %v6746, 4
        %v6808 = vsel %vm6805, %v6760, %v6807
        %v6810 = vunpack.c.l.s4 1983009808
        %v6811 = vunpack.c.0.s8 %v6810
        %v6812 = vperm.slane %v6806, %v6811
        %v6814 = vunpack.c.l.s4 1983009808
        %v6815 = vunpack.c.0.s8 %v6814
        %v6816 = vperm.slane %v6808, %v6815
        %v6817 = vrot.slane %v6767, 4
        %v6818 = vsel %vm6805, %v6817, %v6753
        %v6819 = vrot.slane %v6753, 4
        %v6820 = vsel %vm6805, %v6767, %v6819
        %v6822 = vunpack.c.l.s4 1983009808
        %v6823 = vunpack.c.0.s8 %v6822
        %v6824 = vperm.slane %v6818, %v6823
        %v6826 = vunpack.c.l.s4 1983009808
        %v6827 = vunpack.c.0.s8 %v6826
        %v6828 = vperm.slane %v6820, %v6827
        %v6829 = vrot.slane %v6788, 4
        %v6830 = vsel %vm6805, %v6829, %v6774
        %v6831 = vrot.slane %v6774, 4
        %v6832 = vsel %vm6805, %v6788, %v6831
        %v6834 = vunpack.c.l.s4 1983009808
        %v6835 = vunpack.c.0.s8 %v6834
        %v6836 = vperm.slane %v6830, %v6835
        %v6838 = vunpack.c.l.s4 1983009808
        %v6839 = vunpack.c.0.s8 %v6838
        %v6840 = vperm.slane %v6832, %v6839
        %v6841 = vrot.slane %v6795, 4
        %v6842 = vsel %vm6805, %v6841, %v6781
        %v6843 = vrot.slane %v6781, 4
        %v6844 = vsel %vm6805, %v6795, %v6843
        %v6846 = vunpack.c.l.s4 1983009808
        %v6847 = vunpack.c.0.s8 %v6846
        %v6848 = vperm.slane %v6842, %v6847
        %v6850 = vunpack.c.l.s4 1983009808
        %v6851 = vunpack.c.0.s8 %v6850
        %v6852 = vperm.slane %v6844, %v6851
        %v6853 = vrot.slane %v6824, 4
        %v6854 = vsel %vm6805, %v6853, %v6812
        %v6855 = vrot.slane %v6812, 4
        %v6856 = vsel %vm6805, %v6824, %v6855
        %v6858 = vunpack.c.l.s4 1934713408
        %v6859 = vunpack.c.0.s8 %v6858
        %v6860 = vperm.slane %v6854, %v6859
        %v6862 = vunpack.c.l.s4 1934713408
        %v6863 = vunpack.c.0.s8 %v6862
        %v6864 = vperm.slane %v6856, %v6863
        %v6865 = vrot.slane %v6828, 4
        %v6866 = vsel %vm6805, %v6865, %v6816
        %v6867 = vrot.slane %v6816, 4
        %v6868 = vsel %vm6805, %v6828, %v6867
        %v6870 = vunpack.c.l.s4 1934713408
        %v6871 = vunpack.c.0.s8 %v6870
        %v6872 = vperm.slane %v6866, %v6871
        %v6874 = vunpack.c.l.s4 1934713408
        %v6875 = vunpack.c.0.s8 %v6874
        %v6876 = vperm.slane %v6868, %v6875
        %v6877 = vrot.slane %v6848, 4
        %v6878 = vsel %vm6805, %v6877, %v6836
        %v6879 = vrot.slane %v6836, 4
        %v6880 = vsel %vm6805, %v6848, %v6879
        %v6882 = vunpack.c.l.s4 1934713408
        %v6883 = vunpack.c.0.s8 %v6882
        %v6884 = vperm.slane %v6878, %v6883
        %v6886 = vunpack.c.l.s4 1934713408
        %v6887 = vunpack.c.0.s8 %v6886
        %v6888 = vperm.slane %v6880, %v6887
        %v6889 = vrot.slane %v6852, 4
        %v6890 = vsel %vm6805, %v6889, %v6840
        %v6891 = vrot.slane %v6840, 4
        %v6892 = vsel %vm6805, %v6852, %v6891
        %v6894 = vunpack.c.l.s4 1934713408
        %v6895 = vunpack.c.0.s8 %v6894
        %v6896 = vperm.slane %v6890, %v6895
        %v6898 = vunpack.c.l.s4 1934713408
        %v6899 = vunpack.c.0.s8 %v6898
        %v6900 = vperm.slane %v6892, %v6899
        %v6901 = vrot.slane %v6884, 4
        %v6902 = vsel %vm6805, %v6901, %v6860
        %v6903 = vrot.slane %v6860, 4
        %v6904 = vsel %vm6805, %v6884, %v6903
        %v6905 = vrot.slane %v6888, 4
        %v6906 = vsel %vm6805, %v6905, %v6864
        %v6907 = vrot.slane %v6864, 4
        %v6908 = vsel %vm6805, %v6888, %v6907
        %v6909 = vrot.slane %v6896, 4
        %v6910 = vsel %vm6805, %v6909, %v6872
        %v6911 = vrot.slane %v6872, 4
        %v6912 = vsel %vm6805, %v6896, %v6911
        %v6913 = vrot.slane %v6900, 4
        %v6914 = vsel %vm6805, %v6913, %v6876
        %v6915 = vrot.slane %v6876, 4
        %v6916 = vsel %vm6805, %v6900, %v6915
        %6918 = vrot.lane.b32.xlu0 %v6904, 8
        %v6919 = vpop.permute.xlu0 %6918
        %6922 = vrot.lane.b32.xlu0 %v6906, 16
        %v6923 = vpop.permute.xlu0 %6922
        %6926 = vrot.lane.b32.xlu0 %v6908, 24
        %v6927 = vpop.permute.xlu0 %6926
        %6930 = vrot.lane.b32.xlu0 %v6910, 32
        %v6931 = vpop.permute.xlu0 %6930
        %6934 = vrot.lane.b32.xlu0 %v6912, 40
        %v6935 = vpop.permute.xlu0 %6934
        %6938 = vrot.lane.b32.xlu0 %v6914, 48
        %v6939 = vpop.permute.xlu0 %6938
        %6942 = vrot.lane.b32.xlu0 %v6916, 56
        %v6943 = vpop.permute.xlu0 %6942
        %v6945 = vsel %vm4124, %v6902, %v6919
        %vm6946 = vcmask 130048
        %v6947 = vsel %vm6946, %v6945, %v6923
        %vm6948 = vcmask 195584
        %v6949 = vsel %vm6948, %v6947, %v6927
        %vm6950 = vcmask 261120
        %v6951 = vsel %vm6950, %v6949, %v6931
        %vm6952 = vcmask 326656
        %v6953 = vsel %vm6952, %v6951, %v6935
        %vm6954 = vcmask 392192
        %v6955 = vsel %vm6954, %v6953, %v6939
        %vm6956 = vcmask 457728
        %v6957 = vsel %vm6956, %v6955, %v6943
        %vm6958 = vcmask 523264
        %6959 = vst.msk [vmem:[%s244] sm:$0xff] %vm6958, %v6957
        %s6960 = sand.u32 %s159, 1
        %s6961 = scalar_lea.sflag [#allocation3], %s6960
        %s6962 = sand.u32 %s159, 1
        %s6963 = smul.addr %s6962, 8
        %s6964 = scalar_lea.vmem [#allocation2], %s6963
        // Predicated region
        $region45: #{tpu_custom_call.1} parent=43 // pred_check
          %p6965 = pneg %p169
        $region46: #{tpu_custom_call.1} parent=43 // pred_check_branch
          %6967 = sbr.rel (%p6965) target = $region48
        $region47: #{tpu_custom_call.1} parent=43 // pred_region
          %6969 = vsyncadd %s6961, 0
          %s6970 = smul.addr %s20, 8
          %s6971 = scalar_lea.hbm %s6, %s6970
          %s6973 = sshll.u32 %s6964, 4
          %s6974 = int_to_ptr.vmem [resolvable:$true] %s6973
          %s6975 = sshll.u32 %s6971, 4
          %s6976 = int_to_ptr.hbm [resolvable:$true] %s6975
          %6978 = dma.vmem_to_hbm [thread:$0]  %s6974, 128, %s6976, %s6961
        $region48: #{tpu_custom_call.1} parent=43 // pred_fallthru
          _
      $region44: #{tpu_custom_call.1} parent=5 // pred_fallthru
        _
      %p6979 = scmp.le.s32.totalorder 2, %s15
      // Predicated region
      $region49: #{tpu_custom_call.1} parent=5 // pred_check
        %p6980 = pneg %p6979
      $region50: #{tpu_custom_call.1} parent=5 // pred_check_branch
        %6982 = sbr.rel (%p6980) target = $region52
      $region51: #{tpu_custom_call.1} parent=5 // pred_region
        %s6983 = ssub.s32 %s15, 2
        // Predicated region
        $region53: #{tpu_custom_call.1} parent=51 // pred_check
          %p6984 = pneg %p175
        $region54: #{tpu_custom_call.1} parent=51 // pred_check_branch
          %6986 = sbr.rel (%p6984) target = $region56
        $region55: #{tpu_custom_call.1} parent=51 // pred_region
          %s6987 = sand.u32 %s160, 1
          %s6988 = scalar_lea.sflag [#allocation3], %s6987
          %s6989 = sand.u32 %s160, 1
          %s6990 = smul.addr %s6989, 8
          %s6991 = scalar_lea.vmem [#allocation2], %s6990
          %6993 = dma.done %s6988, 128
        $region56: #{tpu_custom_call.1} parent=51 // pred_fallthru
          _
      $region52: #{tpu_custom_call.1} parent=5 // pred_fallthru
        _
    $region6: #{tpu_custom_call.1} parent=1 // loop_footer
      %s19 = sadd.s32 1, %s15
    $region7: #{tpu_custom_call.1} parent=1 // loop_footer_branch
      %14 = sbr.rel target = $region3
    $region8: #{tpu_custom_call.1} parent=1 // loop_exit
      _
    %6994 = vsyncpa [#allocation3], 1
    %s6995 = scalar_lea.sflag [#allocation3], 1
    %6996 = vsyncpa %s6995, 1

</llo_original>
